<compile_context>
chip_gen: v5e
topology: v5e:2x2
jax: 0.10.0
libtpu: 0.0.40
codegen_flags: <defaults>
</compile_context>

<pallas_src>
import math
import functools

import numpy as np
import jax
import jax.numpy as jnp
from jax.experimental import pallas as pl
from jax.experimental.pallas import tpu as pltpu

LN_EPS = 1e-5
BN_EPS = 1e-5
NEG_INF = -1e30


def _relu6(x):
    return jnp.minimum(jnp.maximum(x, 0.0), 6.0)


def _h_sigmoid(x):
    return _relu6(x + 3.0) * (1.0 / 6.0)


def _h_swish(x):
    return x * _h_sigmoid(x)


def _round_up(v, m):
    return ((v + m - 1) // m) * m


# ------------------------------ fused kernel --------------------------------
# one grid step == TB batch elements:
#   xa  = x + proj(softmax(q k^T) v)                 (q,k,v from LayerNorm(x))
#   out = [cls row of xa ; patches + LocalityFeedForward(patches)]

def _block_kernel(x_ref, wattn_ref, wh_ref, wo_ref, hslab_ref, cslab_ref, tmask_ref,
                  o_ref, attn_scr, *, num_heads, n_tokens, grid_h, grid_w):
    TB, N_pad, C = x_ref.shape
    R = TB * N_pad                                 # flattened rows (batch-major, token)
    P = grid_h * grid_w                            # number of patch tokens
    hd = C // num_heads
    red = wh_ref.shape[0] - C                      # SE reduction width
    f32, bf16 = jnp.float32, jnp.bfloat16

    w_attn = wattn_ref[...]                        # (C, 4C) bf16: [wq*scale | wk | wv | wproj]
    w_h = wh_ref[...]                              # (C+red, hidden) bf16: [w1*bn1s ; w_fc2]
    w_o = wo_ref[...]                              # (hidden, C+red) bf16: [w2*bn3s | w_fc1]
    hslab = hslab_ref[...]                         # (12, hidden) f32
    cslab = cslab_ref[...]                         # (5, C) f32

    ln_g, ln_b = cslab[0:1, :], cslab[1:2, :]
    bproj, bn3_sh = cslab[2:3, :], cslab[3:4, :]
    b_fc1 = cslab[4:5, :][:, :red]
    bn1_sh, bn2_sh, b_fc2 = hslab[9:10, :], hslab[10:11, :], hslab[11:12, :]

    # host-precomputed per-token masks, replicated over the TB images of this block
    tm = jnp.broadcast_to(tmask_ref[...][None], (TB, N_pad, tmask_ref.shape[1]))
    tm = tm.reshape(R, -1)
    patch_mask = tm[:, 9:10]                       # 1.0 on patch rows, 0 on cls / padding

    x = x_ref[...].reshape(R, C)                   # (R, C) f32

    # ------------------------- attention (+ residual) -------------------------
    mu = jnp.mean(x, axis=-1, keepdims=True)
    var = jnp.mean((x - mu) ** 2, axis=-1, keepdims=True)
    xn = (x - mu) * jax.lax.rsqrt(var + LN_EPS)
    xn = xn * ln_g + ln_b

    qkv = jnp.dot(xn.astype(bf16), w_attn[:, 0:3 * C],
                  preferred_element_type=f32)      # (R, 3C); attn scale folded into wq

    # padded key columns must not receive softmax weight
    key_valid = jax.lax.broadcasted_iota(jnp.int32, (1, 1, N_pad), 2) < n_tokens

    for h in range(num_heads):                     # static unroll; contraction K = hd
        qh = qkv[:, h * hd:(h + 1) * hd].reshape(TB, N_pad, hd).astype(bf16)
        kh = qkv[:, C + h * hd:C + (h + 1) * hd].reshape(TB, N_pad, hd).astype(bf16)
        vh = qkv[:, 2 * C + h * hd:2 * C + (h + 1) * hd].reshape(TB, N_pad, hd).astype(bf16)
        s = jnp.einsum('bnd,bmd->bnm', qh, kh, preferred_element_type=f32)
        s = jnp.where(key_valid, s, NEG_INF)
        s = s - jnp.max(s, axis=-1, keepdims=True)
        p = jnp.exp(s)
        p = p / jnp.sum(p, axis=-1, keepdims=True)          # exact softmax denominator
        oh = jnp.einsum('bnm,bmd->bnd', p.astype(bf16), vh,
                        preferred_element_type=f32)         # (TB, N_pad, hd)
        attn_scr[:, h * hd:(h + 1) * hd] = oh.reshape(R, hd).astype(bf16)

    proj = jnp.dot(attn_scr[...], w_attn[:, 3 * C:4 * C],
                   preferred_element_type=f32) + bproj
    xa = x + proj                                  # token 0 of each image = cls token

    # ------- LocalityFeedForward on the patch rows (+ its inner residual) -------
    # 1x1 conv (BN1 scale folded) + h_swish
    h1 = jnp.dot(xa.astype(bf16), w_h[0:C, :], preferred_element_type=f32) + bn1_sh
    h1 = _h_swish(h1)                              # (R, hidden)

    # depthwise 3x3 conv (padding=1): 9 sublane rolls + boundary masks + per-channel taps
    dw = jnp.zeros_like(h1)
    for ky in range(3):
        for kx in range(3):
            kk = ky * 3 + kx
            delta = (ky - 1) * grid_w + (kx - 1)   # source row = output row + delta
            src = h1 if delta == 0 else pltpu.roll(h1, shift=(-delta) % R, axis=0)
            dw = dw + src * (tm[:, kk:kk + 1] * hslab[kk:kk + 1, :])
    dw = _h_swish(dw + bn2_sh)                     # BN2 scale folded into the taps

    # SE: masked mean over the P patch rows of each image -> fc -> ReLU -> fc -> h_sigmoid
    dw3 = dw.reshape(TB, N_pad, -1)
    pooled = jnp.sum(dw3 * patch_mask.reshape(TB, N_pad, 1), axis=1) * (1.0 / P)
    se = jnp.dot(pooled.astype(bf16), w_o[:, C:C + red],
                 preferred_element_type=f32) + b_fc1
    se = jnp.maximum(se, 0.0)
    se = jnp.dot(se.astype(bf16), w_h[C:C + red, :],
                 preferred_element_type=f32) + b_fc2
    se = _h_sigmoid(se)                            # (TB, hidden)
    h3 = (dw3 * se[:, None, :]).reshape(R, -1)

    # 1x1 conv (BN3 scale folded); residual applied only to the patch rows
    out = jnp.dot(h3.astype(bf16), w_o[:, 0:C], preferred_element_type=f32) + bn3_sh
    o_ref[...] = (xa + out * patch_mask).reshape(TB, N_pad, C)


# --------------------------------- wrapper ----------------------------------

def _choose_block_batch(B, n_pad):
    """Largest divisor of B that (a) keeps >=2 grid steps (v7x: one per TensorCore)
    and (b) targets >=256 flattened rows per step to fill the MXU M dimension."""
    target = max(1, -(-256 // n_pad))
    tb = min(target, max(1, B // 2))
    while B % tb:
        tb -= 1
    return tb


def block_forward(x, params, num_heads, block_batch=None):
    B, N, C = x.shape
    P = N - 1
    H = int(math.isqrt(P))
    assert H * H == P, "token count must be a square spatial grid + cls"
    assert C % num_heads == 0
    n_pad = _round_up(N, 8)                        # full (8,*) sublane tiles for all rows
    assert params['tmask'].shape[0] == n_pad

    TB = block_batch if block_batch is not None else _choose_block_batch(B, n_pad)
    assert B % TB == 0
    steps = B // TB

    x_pad = jnp.pad(x, ((0, 0), (0, n_pad - N), (0, 0))) if n_pad != N else x

    kernel = functools.partial(_block_kernel, num_heads=num_heads, n_tokens=N,
                               grid_h=H, grid_w=H)

    def const_spec(arr):                           # weights: resident, single-buffered
        nd = arr.ndim
        return pl.BlockSpec(arr.shape, lambda b: (0,) * nd,
                            pipeline_mode=pl.Buffered(1))

    y = pl.pallas_call(
        kernel,
        out_shape=jax.ShapeDtypeStruct((B, n_pad, C), jnp.float32),
        grid=(steps,),
        in_specs=[
            pl.BlockSpec((TB, n_pad, C), lambda b: (b, 0, 0)),
            const_spec(params['w_attn']),
            const_spec(params['w_h']),
            const_spec(params['w_o']),
            const_spec(params['hslab']),
            const_spec(params['cslab']),
            const_spec(params['tmask']),
        ],
        out_specs=pl.BlockSpec((TB, n_pad, C), lambda b: (b, 0, 0)),
        scratch_shapes=[pltpu.VMEM((TB * n_pad, C), jnp.bfloat16)],
        compiler_params=pltpu.CompilerParams(
            dimension_semantics=("parallel",)),    # v7x: blocks split across TensorCores
    )(x_pad, params['w_attn'], params['w_h'], params['w_o'],
      params['hslab'], params['cslab'], params['tmask'])
    return y[:, :N, :]


# ------------------------------ param building ------------------------------

def build_token_masks(H, W, n_pad):
    """(n_pad, 16) f32: cols 0..8 = validity of 3x3 tap (ky*3+kx) for each token
    (cls row 0 and padded rows excluded), col 9 = patch-row mask; rest zero."""
    tm = np.zeros((n_pad, 16), dtype=np.float32)
    for t in range(1, 1 + H * W):
        h, w = divmod(t - 1, W)
        for ky in range(3):
            for kx in range(3):
                if 0 <= h + ky - 1 < H and 0 <= w + kx - 1 < W:
                    tm[t, ky * 3 + kx] = 1.0
        tm[t, 9] = 1.0
    return jnp.asarray(tm)


def init_params(key, dim, num_heads, mlp_ratio, reduction, num_patches):
    hidden = int(dim * mlp_ratio)
    red = hidden // reduction
    H = int(math.isqrt(num_patches))
    assert H * H == num_patches
    assert red <= dim, "b_fc1 packing assumes SE reduction width <= dim"
    n_pad = _round_up(num_patches + 1, 8)
    scale = (dim // num_heads) ** -0.5
    keys = jax.random.split(key, 20)

    def nrm(k, shape, s=0.02):
        return s * jax.random.normal(k, shape, dtype=jnp.float32)

    ln_g = 1.0 + nrm(keys[0], (1, dim), 0.1)
    ln_b = nrm(keys[1], (1, dim), 0.1)
    wq = nrm(keys[2], (dim, dim))
    wk = nrm(keys[3], (dim, dim))
    wv = nrm(keys[4], (dim, dim))
    wproj = nrm(keys[5], (dim, dim))
    bproj = nrm(keys[6], (1, dim))

    def bn(kw, kb, ch):                            # inference-folded BatchNorm
        w = 1.0 + 0.1 * jax.random.normal(kw, (1, ch), dtype=jnp.float32)
        b = 0.1 * jax.random.normal(kb, (1, ch), dtype=jnp.float32)
        rm = jnp.zeros((1, ch), jnp.float32)       # fresh running stats (synthetic init);
        rv = jnp.ones((1, ch), jnp.float32)        # fold real stats when loading a checkpoint
        s = w / jnp.sqrt(rv + BN_EPS)
        return s, b - rm * s

    bn1s, bn1b = bn(keys[7], keys[8], hidden)
    bn2s, bn2b = bn(keys[9], keys[10], hidden)
    bn3s, bn3b = bn(keys[11], keys[12], dim)

    w1 = nrm(keys[13], (dim, hidden))
    wdw = nrm(keys[14], (9, hidden), 0.1)          # depthwise taps (ky*3+kx, channel)
    w_fc1 = nrm(keys[15], (hidden, red))
    b_fc1 = nrm(keys[16], (1, red))
    w_fc2 = nrm(keys[17], (red, hidden))
    b_fc2 = nrm(keys[18], (1, hidden))
    w2 = nrm(keys[19], (hidden, dim))

    # fold multiplicative constants into weights, store MXU operands in bf16,
    # pack small per-channel vectors into two f32 slabs to cut DMA descriptors
    bf16 = jnp.bfloat16
    w_attn = jnp.concatenate([wq * scale, wk, wv, wproj], axis=1).astype(bf16)   # (dim, 4*dim)
    w_h = jnp.concatenate([w1 * bn1s, w_fc2], axis=0).astype(bf16)               # (dim+red, hidden)
    w_o = jnp.concatenate([w2 * bn3s, w_fc1], axis=1).astype(bf16)               # (hidden, dim+red)
    hslab = jnp.concatenate([wdw * bn2s, bn1b, bn2b, b_fc2], axis=0)             # (12, hidden) f32
    b_fc1p = jnp.pad(b_fc1, ((0, 0), (0, dim - red)))
    cslab = jnp.concatenate([ln_g, ln_b, bproj, bn3b, b_fc1p], axis=0)           # (5, dim) f32
    tmask = build_token_masks(H, H, n_pad)

    return dict(w_attn=w_attn, w_h=w_h, w_o=w_o, hslab=hslab, cslab=cslab, tmask=tmask)


if __name__ == "__main__":
    dim, num_heads, mlp_ratio, reduction = 128, 4, 4.0, 4
    num_patches = 16                               # 4 x 4 spatial grid
    B = 4
    N = num_patches + 1                            # + cls token

    key = jax.random.PRNGKey(0)
    kx, kp = jax.random.split(key)
    x = jax.random.normal(kx, (B, N, dim), dtype=jnp.float32)
    params = init_params(kp, dim, num_heads, mlp_ratio, reduction, num_patches)

    y = block_forward(x, params, num_heads)
    y = jax.block_until_ready(y)
    assert y.shape == (B, N, dim) and y.dtype == jnp.float32
    assert bool(jnp.all(jnp.isfinite(y)))
    print("KERNEL_OK")
</pallas_src>

<mosaic_0001>
module attributes {stable_mosaic.version = 11 : i64} {
  func.func @_block_kernel(%arg0: i32, %arg1: memref<2x24x128xf32, #tpu.memory_space<vmem>>, %arg2: memref<128x512xbf16, #tpu.memory_space<vmem>>, %arg3: memref<256x512xbf16, #tpu.memory_space<vmem>>, %arg4: memref<512x256xbf16, #tpu.memory_space<vmem>>, %arg5: memref<12x512xf32, #tpu.memory_space<vmem>>, %arg6: memref<5x128xf32, #tpu.memory_space<vmem>>, %arg7: memref<24x16xf32, #tpu.memory_space<vmem>>, %arg8: memref<2x24x128xf32, #tpu.memory_space<vmem>>, %arg9: memref<48x128xbf16, #tpu.memory_space<vmem>>) attributes {dimension_semantics = [#tpu.dimension_semantics<parallel>], iteration_bounds = array<i64: 2>, scalar_prefetch = 0 : i64, scratch_operands = 1 : i64, tpu.core_type = #tpu.core_type<tc>, window_params = [{transform_indices = @transform_0, window_bounds = array<i64: 2, 24, 128>}, {pipeline_mode = #tpu.pipeline_mode<synchronous>, transform_indices = @transform_1, window_bounds = array<i64: 128, 512>}, {pipeline_mode = #tpu.pipeline_mode<synchronous>, transform_indices = @transform_2, window_bounds = array<i64: 256, 512>}, {pipeline_mode = #tpu.pipeline_mode<synchronous>, transform_indices = @transform_3, window_bounds = array<i64: 512, 256>}, {pipeline_mode = #tpu.pipeline_mode<synchronous>, transform_indices = @transform_4, window_bounds = array<i64: 12, 512>}, {pipeline_mode = #tpu.pipeline_mode<synchronous>, transform_indices = @transform_5, window_bounds = array<i64: 5, 128>}, {pipeline_mode = #tpu.pipeline_mode<synchronous>, transform_indices = @transform_6, window_bounds = array<i64: 24, 16>}, {transform_indices = @transform_7, window_bounds = array<i64: 2, 24, 128>}]} {
    %c0 = arith.constant 0 : index
    %c0_0 = arith.constant 0 : index
    %0 = vector.load %arg2[%c0, %c0_0] : memref<128x512xbf16, #tpu.memory_space<vmem>>, vector<128x512xbf16>
    %c0_1 = arith.constant 0 : index
    %c0_2 = arith.constant 0 : index
    %1 = vector.load %arg3[%c0_1, %c0_2] : memref<256x512xbf16, #tpu.memory_space<vmem>>, vector<256x512xbf16>
    %c0_3 = arith.constant 0 : index
    %c0_4 = arith.constant 0 : index
    %2 = vector.load %arg4[%c0_3, %c0_4] : memref<512x256xbf16, #tpu.memory_space<vmem>>, vector<512x256xbf16>
    %c0_5 = arith.constant 0 : index
    %c0_6 = arith.constant 0 : index
    %3 = vector.load %arg5[%c0_5, %c0_6] : memref<12x512xf32, #tpu.memory_space<vmem>>, vector<12x512xf32>
    %c0_7 = arith.constant 0 : index
    %c0_8 = arith.constant 0 : index
    %4 = vector.load %arg6[%c0_7, %c0_8] : memref<5x128xf32, #tpu.memory_space<vmem>>, vector<5x128xf32>
    %5 = vector.extract_strided_slice %4 {offsets = [0, 0], sizes = [1, 128], strides = [1, 1]} : vector<5x128xf32> to vector<1x128xf32>
    %6 = vector.extract_strided_slice %4 {offsets = [1, 0], sizes = [1, 128], strides = [1, 1]} : vector<5x128xf32> to vector<1x128xf32>
    %7 = vector.extract_strided_slice %4 {offsets = [2, 0], sizes = [1, 128], strides = [1, 1]} : vector<5x128xf32> to vector<1x128xf32>
    %8 = vector.extract_strided_slice %4 {offsets = [3, 0], sizes = [1, 128], strides = [1, 1]} : vector<5x128xf32> to vector<1x128xf32>
    %9 = vector.extract_strided_slice %4 {offsets = [4, 0], sizes = [1, 128], strides = [1, 1]} : vector<5x128xf32> to vector<1x128xf32>
    %10 = vector.extract_strided_slice %3 {offsets = [9, 0], sizes = [1, 512], strides = [1, 1]} : vector<12x512xf32> to vector<1x512xf32>
    %11 = vector.extract_strided_slice %3 {offsets = [10, 0], sizes = [1, 512], strides = [1, 1]} : vector<12x512xf32> to vector<1x512xf32>
    %12 = vector.extract_strided_slice %3 {offsets = [11, 0], sizes = [1, 512], strides = [1, 1]} : vector<12x512xf32> to vector<1x512xf32>
    %c0_9 = arith.constant 0 : index
    %c0_10 = arith.constant 0 : index
    %13 = vector.load %arg7[%c0_9, %c0_10] : memref<24x16xf32, #tpu.memory_space<vmem>>, vector<24x16xf32>
    %14 = vector.shape_cast %13 : vector<24x16xf32> to vector<1x24x16xf32>
    %15 = vector.shape_cast %14 : vector<1x24x16xf32> to vector<1x24x16xf32>
    %16 = vector.broadcast %15 : vector<1x24x16xf32> to vector<2x24x16xf32>
    %17 = vector.shape_cast %16 : vector<2x24x16xf32> to vector<48x16xf32>
    %18 = vector.extract_strided_slice %17 {offsets = [0, 9], sizes = [48, 1], strides = [1, 1]} : vector<48x16xf32> to vector<48x1xf32>
    %c0_11 = arith.constant 0 : index
    %c0_12 = arith.constant 0 : index
    %c0_13 = arith.constant 0 : index
    %19 = vector.load %arg1[%c0_11, %c0_12, %c0_13] : memref<2x24x128xf32, #tpu.memory_space<vmem>>, vector<2x24x128xf32>
    %20 = vector.shape_cast %19 : vector<2x24x128xf32> to vector<48x128xf32>
    %cst = arith.constant dense<0.000000e+00> : vector<48xf32>
    %21 = vector.multi_reduction <add>, %20, %cst [1] : vector<48x128xf32> to vector<48xf32>
    %22 = vector.shape_cast %21 : vector<48xf32> to vector<48x1xf32>
    %cst_14 = arith.constant 1.280000e+02 : f32
    %23 = vector.broadcast %cst_14 : f32 to vector<48x1xf32>
    %24 = arith.divf %22, %23 : vector<48x1xf32>
    %25 = vector.broadcast %24 : vector<48x1xf32> to vector<48x128xf32>
    %26 = arith.subf %20, %25 : vector<48x128xf32>
    %27 = arith.mulf %26, %26 : vector<48x128xf32>
    %cst_15 = arith.constant dense<0.000000e+00> : vector<48xf32>
    %28 = vector.multi_reduction <add>, %27, %cst_15 [1] : vector<48x128xf32> to vector<48xf32>
    %29 = vector.shape_cast %28 : vector<48xf32> to vector<48x1xf32>
    %cst_16 = arith.constant 1.280000e+02 : f32
    %30 = vector.broadcast %cst_16 : f32 to vector<48x1xf32>
    %31 = arith.divf %29, %30 : vector<48x1xf32>
    %32 = vector.broadcast %24 : vector<48x1xf32> to vector<48x128xf32>
    %33 = arith.subf %20, %32 : vector<48x128xf32>
    %cst_17 = arith.constant 9.99999974E-6 : f32
    %34 = vector.broadcast %cst_17 : f32 to vector<48x1xf32>
    %35 = arith.addf %31, %34 : vector<48x1xf32>
    %36 = math.rsqrt %35 : vector<48x1xf32>
    %37 = vector.broadcast %36 : vector<48x1xf32> to vector<48x128xf32>
    %38 = arith.mulf %33, %37 : vector<48x128xf32>
    %39 = vector.broadcast %5 : vector<1x128xf32> to vector<48x128xf32>
    %40 = arith.mulf %38, %39 : vector<48x128xf32>
    %41 = vector.broadcast %6 : vector<1x128xf32> to vector<48x128xf32>
    %42 = arith.addf %40, %41 : vector<48x128xf32>
    %43 = arith.truncf %42 : vector<48x128xf32> to vector<48x128xbf16>
    %44 = vector.extract_strided_slice %0 {offsets = [0, 0], sizes = [128, 384], strides = [1, 1]} : vector<128x512xbf16> to vector<128x384xbf16>
    %cst_18 = arith.constant dense<0.000000e+00> : vector<48x384xf32>
    %45 = tpu.matmul %43, %44, %cst_18 {dimension_numbers = #tpu.dot_dimension_numbers<[1], [0], [0], [1], [0, 0, 1, 1], [], []>} : vector<48x128xbf16>, vector<128x384xbf16>, vector<48x384xf32> -> vector<48x384xf32>
    %46 = tpu.iota {dimensions = array<i32: 2>} : vector<1x1x24xi32>
    %c17_i32 = arith.constant 17 : i32
    %47 = vector.broadcast %c17_i32 : i32 to vector<1x1x24xi32>
    %48 = arith.cmpi slt, %46, %47 : vector<1x1x24xi32>
    %49 = vector.extract_strided_slice %45 {offsets = [0, 0], sizes = [48, 32], strides = [1, 1]} : vector<48x384xf32> to vector<48x32xf32>
    %50 = vector.shape_cast %49 : vector<48x32xf32> to vector<2x24x32xf32>
    %51 = arith.truncf %50 : vector<2x24x32xf32> to vector<2x24x32xbf16>
    %52 = vector.extract_strided_slice %45 {offsets = [0, 128], sizes = [48, 32], strides = [1, 1]} : vector<48x384xf32> to vector<48x32xf32>
    %53 = vector.shape_cast %52 : vector<48x32xf32> to vector<2x24x32xf32>
    %54 = arith.truncf %53 : vector<2x24x32xf32> to vector<2x24x32xbf16>
    %55 = vector.extract_strided_slice %45 {offsets = [0, 256], sizes = [48, 32], strides = [1, 1]} : vector<48x384xf32> to vector<48x32xf32>
    %56 = vector.shape_cast %55 : vector<48x32xf32> to vector<2x24x32xf32>
    %57 = arith.truncf %56 : vector<2x24x32xf32> to vector<2x24x32xbf16>
    "tpu.trace_start"() <{level = 10 : i32, message = "bnd,bmd->bnm"}> : () -> ()
    %cst_19 = arith.constant dense<0.000000e+00> : vector<2x24x24xf32>
    %58 = tpu.matmul %51, %54, %cst_19 {dimension_numbers = #tpu.dot_dimension_numbers<[2], [2], [1], [1], [0, 0, 0, 1, 1, 1], [0], [0]>} : vector<2x24x32xbf16>, vector<2x24x32xbf16>, vector<2x24x24xf32> -> vector<2x24x24xf32>
    %cst_20 = arith.constant -1.000000e+30 : f32
    "tpu.trace_stop"() : () -> ()
    %59 = vector.shape_cast %48 : vector<1x1x24xi1> to vector<1x1x24xi1>
    %60 = vector.broadcast %59 : vector<1x1x24xi1> to vector<2x24x24xi1>
    %61 = vector.broadcast %cst_20 : f32 to vector<2x24x24xf32>
    %62 = arith.select %60, %58, %61 : vector<2x24x24xi1>, vector<2x24x24xf32>
    %cst_21 = arith.constant dense<0xFF800000> : vector<2x24xf32>
    %63 = vector.multi_reduction <maximumf>, %62, %cst_21 [2] : vector<2x24x24xf32> to vector<2x24xf32>
    %64 = vector.shape_cast %63 : vector<2x24xf32> to vector<2x24x1xf32>
    %65 = vector.broadcast %64 : vector<2x24x1xf32> to vector<2x24x24xf32>
    %66 = arith.subf %62, %65 : vector<2x24x24xf32>
    %67 = math.exp %66 : vector<2x24x24xf32>
    %cst_22 = arith.constant dense<0.000000e+00> : vector<2x24xf32>
    %68 = vector.multi_reduction <add>, %67, %cst_22 [2] : vector<2x24x24xf32> to vector<2x24xf32>
    %69 = vector.shape_cast %68 : vector<2x24xf32> to vector<2x24x1xf32>
    %70 = vector.broadcast %69 : vector<2x24x1xf32> to vector<2x24x24xf32>
    %71 = arith.divf %67, %70 : vector<2x24x24xf32>
    %72 = arith.truncf %71 : vector<2x24x24xf32> to vector<2x24x24xbf16>
    "tpu.trace_start"() <{level = 10 : i32, message = "bnm,bmd->bnd"}> : () -> ()
    %cst_23 = arith.constant dense<0.000000e+00> : vector<2x24x32xf32>
    %73 = tpu.matmul %72, %57, %cst_23 {dimension_numbers = #tpu.dot_dimension_numbers<[2], [1], [1], [2], [0, 0, 0, 1, 1, 2], [0], [0]>} : vector<2x24x24xbf16>, vector<2x24x32xbf16>, vector<2x24x32xf32> -> vector<2x24x32xf32>
    "tpu.trace_stop"() : () -> ()
    %74 = vector.shape_cast %73 : vector<2x24x32xf32> to vector<48x32xf32>
    %75 = arith.truncf %74 : vector<48x32xf32> to vector<48x32xbf16>
    %c0_24 = arith.constant 0 : index
    %c0_25 = arith.constant 0 : index
    %76 = vector.load %arg9[%c0_24, %c0_25] : memref<48x128xbf16, #tpu.memory_space<vmem>>, vector<48x32xbf16>
    tpu.vector_store %arg9[%c0_24, %c0_25], %75 {strides = array<i32>} : memref<48x128xbf16, #tpu.memory_space<vmem>>, vector<48x32xbf16>,
    %77 = vector.extract_strided_slice %45 {offsets = [0, 32], sizes = [48, 32], strides = [1, 1]} : vector<48x384xf32> to vector<48x32xf32>
    %78 = vector.shape_cast %77 : vector<48x32xf32> to vector<2x24x32xf32>
    %79 = arith.truncf %78 : vector<2x24x32xf32> to vector<2x24x32xbf16>
    %80 = vector.extract_strided_slice %45 {offsets = [0, 160], sizes = [48, 32], strides = [1, 1]} : vector<48x384xf32> to vector<48x32xf32>
    %81 = vector.shape_cast %80 : vector<48x32xf32> to vector<2x24x32xf32>
    %82 = arith.truncf %81 : vector<2x24x32xf32> to vector<2x24x32xbf16>
    %83 = vector.extract_strided_slice %45 {offsets = [0, 288], sizes = [48, 32], strides = [1, 1]} : vector<48x384xf32> to vector<48x32xf32>
    %84 = vector.shape_cast %83 : vector<48x32xf32> to vector<2x24x32xf32>
    %85 = arith.truncf %84 : vector<2x24x32xf32> to vector<2x24x32xbf16>
    "tpu.trace_start"() <{level = 10 : i32, message = "bnd,bmd->bnm"}> : () -> ()
    %cst_26 = arith.constant dense<0.000000e+00> : vector<2x24x24xf32>
    %86 = tpu.matmul %79, %82, %cst_26 {dimension_numbers = #tpu.dot_dimension_numbers<[2], [2], [1], [1], [0, 0, 0, 1, 1, 1], [0], [0]>} : vector<2x24x32xbf16>, vector<2x24x32xbf16>, vector<2x24x24xf32> -> vector<2x24x24xf32>
    %cst_27 = arith.constant -1.000000e+30 : f32
    "tpu.trace_stop"() : () -> ()
    %87 = vector.shape_cast %48 : vector<1x1x24xi1> to vector<1x1x24xi1>
    %88 = vector.broadcast %87 : vector<1x1x24xi1> to vector<2x24x24xi1>
    %89 = vector.broadcast %cst_27 : f32 to vector<2x24x24xf32>
    %90 = arith.select %88, %86, %89 : vector<2x24x24xi1>, vector<2x24x24xf32>
    %cst_28 = arith.constant dense<0xFF800000> : vector<2x24xf32>
    %91 = vector.multi_reduction <maximumf>, %90, %cst_28 [2] : vector<2x24x24xf32> to vector<2x24xf32>
    %92 = vector.shape_cast %91 : vector<2x24xf32> to vector<2x24x1xf32>
    %93 = vector.broadcast %92 : vector<2x24x1xf32> to vector<2x24x24xf32>
    %94 = arith.subf %90, %93 : vector<2x24x24xf32>
    %95 = math.exp %94 : vector<2x24x24xf32>
    %cst_29 = arith.constant dense<0.000000e+00> : vector<2x24xf32>
    %96 = vector.multi_reduction <add>, %95, %cst_29 [2] : vector<2x24x24xf32> to vector<2x24xf32>
    %97 = vector.shape_cast %96 : vector<2x24xf32> to vector<2x24x1xf32>
    %98 = vector.broadcast %97 : vector<2x24x1xf32> to vector<2x24x24xf32>
    %99 = arith.divf %95, %98 : vector<2x24x24xf32>
    %100 = arith.truncf %99 : vector<2x24x24xf32> to vector<2x24x24xbf16>
    "tpu.trace_start"() <{level = 10 : i32, message = "bnm,bmd->bnd"}> : () -> ()
    %cst_30 = arith.constant dense<0.000000e+00> : vector<2x24x32xf32>
    %101 = tpu.matmul %100, %85, %cst_30 {dimension_numbers = #tpu.dot_dimension_numbers<[2], [1], [1], [2], [0, 0, 0, 1, 1, 2], [0], [0]>} : vector<2x24x24xbf16>, vector<2x24x32xbf16>, vector<2x24x32xf32> -> vector<2x24x32xf32>
    "tpu.trace_stop"() : () -> ()
    %102 = vector.shape_cast %101 : vector<2x24x32xf32> to vector<48x32xf32>
    %103 = arith.truncf %102 : vector<48x32xf32> to vector<48x32xbf16>
    %c0_31 = arith.constant 0 : index
    %c32 = arith.constant 32 : index
    %104 = vector.load %arg9[%c0_31, %c32] : memref<48x128xbf16, #tpu.memory_space<vmem>>, vector<48x32xbf16>
    tpu.vector_store %arg9[%c0_31, %c32], %103 {strides = array<i32>} : memref<48x128xbf16, #tpu.memory_space<vmem>>, vector<48x32xbf16>,
    %105 = vector.extract_strided_slice %45 {offsets = [0, 64], sizes = [48, 32], strides = [1, 1]} : vector<48x384xf32> to vector<48x32xf32>
    %106 = vector.shape_cast %105 : vector<48x32xf32> to vector<2x24x32xf32>
    %107 = arith.truncf %106 : vector<2x24x32xf32> to vector<2x24x32xbf16>
    %108 = vector.extract_strided_slice %45 {offsets = [0, 192], sizes = [48, 32], strides = [1, 1]} : vector<48x384xf32> to vector<48x32xf32>
    %109 = vector.shape_cast %108 : vector<48x32xf32> to vector<2x24x32xf32>
    %110 = arith.truncf %109 : vector<2x24x32xf32> to vector<2x24x32xbf16>
    %111 = vector.extract_strided_slice %45 {offsets = [0, 320], sizes = [48, 32], strides = [1, 1]} : vector<48x384xf32> to vector<48x32xf32>
    %112 = vector.shape_cast %111 : vector<48x32xf32> to vector<2x24x32xf32>
    %113 = arith.truncf %112 : vector<2x24x32xf32> to vector<2x24x32xbf16>
    "tpu.trace_start"() <{level = 10 : i32, message = "bnd,bmd->bnm"}> : () -> ()
    %cst_32 = arith.constant dense<0.000000e+00> : vector<2x24x24xf32>
    %114 = tpu.matmul %107, %110, %cst_32 {dimension_numbers = #tpu.dot_dimension_numbers<[2], [2], [1], [1], [0, 0, 0, 1, 1, 1], [0], [0]>} : vector<2x24x32xbf16>, vector<2x24x32xbf16>, vector<2x24x24xf32> -> vector<2x24x24xf32>
    %cst_33 = arith.constant -1.000000e+30 : f32
    "tpu.trace_stop"() : () -> ()
    %115 = vector.shape_cast %48 : vector<1x1x24xi1> to vector<1x1x24xi1>
    %116 = vector.broadcast %115 : vector<1x1x24xi1> to vector<2x24x24xi1>
    %117 = vector.broadcast %cst_33 : f32 to vector<2x24x24xf32>
    %118 = arith.select %116, %114, %117 : vector<2x24x24xi1>, vector<2x24x24xf32>
    %cst_34 = arith.constant dense<0xFF800000> : vector<2x24xf32>
    %119 = vector.multi_reduction <maximumf>, %118, %cst_34 [2] : vector<2x24x24xf32> to vector<2x24xf32>
    %120 = vector.shape_cast %119 : vector<2x24xf32> to vector<2x24x1xf32>
    %121 = vector.broadcast %120 : vector<2x24x1xf32> to vector<2x24x24xf32>
    %122 = arith.subf %118, %121 : vector<2x24x24xf32>
    %123 = math.exp %122 : vector<2x24x24xf32>
    %cst_35 = arith.constant dense<0.000000e+00> : vector<2x24xf32>
    %124 = vector.multi_reduction <add>, %123, %cst_35 [2] : vector<2x24x24xf32> to vector<2x24xf32>
    %125 = vector.shape_cast %124 : vector<2x24xf32> to vector<2x24x1xf32>
    %126 = vector.broadcast %125 : vector<2x24x1xf32> to vector<2x24x24xf32>
    %127 = arith.divf %123, %126 : vector<2x24x24xf32>
    %128 = arith.truncf %127 : vector<2x24x24xf32> to vector<2x24x24xbf16>
    "tpu.trace_start"() <{level = 10 : i32, message = "bnm,bmd->bnd"}> : () -> ()
    %cst_36 = arith.constant dense<0.000000e+00> : vector<2x24x32xf32>
    %129 = tpu.matmul %128, %113, %cst_36 {dimension_numbers = #tpu.dot_dimension_numbers<[2], [1], [1], [2], [0, 0, 0, 1, 1, 2], [0], [0]>} : vector<2x24x24xbf16>, vector<2x24x32xbf16>, vector<2x24x32xf32> -> vector<2x24x32xf32>
    "tpu.trace_stop"() : () -> ()
    %130 = vector.shape_cast %129 : vector<2x24x32xf32> to vector<48x32xf32>
    %131 = arith.truncf %130 : vector<48x32xf32> to vector<48x32xbf16>
    %c0_37 = arith.constant 0 : index
    %c64 = arith.constant 64 : index
    %132 = vector.load %arg9[%c0_37, %c64] : memref<48x128xbf16, #tpu.memory_space<vmem>>, vector<48x32xbf16>
    tpu.vector_store %arg9[%c0_37, %c64], %131 {strides = array<i32>} : memref<48x128xbf16, #tpu.memory_space<vmem>>, vector<48x32xbf16>,
    %133 = vector.extract_strided_slice %45 {offsets = [0, 96], sizes = [48, 32], strides = [1, 1]} : vector<48x384xf32> to vector<48x32xf32>
    %134 = vector.shape_cast %133 : vector<48x32xf32> to vector<2x24x32xf32>
    %135 = arith.truncf %134 : vector<2x24x32xf32> to vector<2x24x32xbf16>
    %136 = vector.extract_strided_slice %45 {offsets = [0, 224], sizes = [48, 32], strides = [1, 1]} : vector<48x384xf32> to vector<48x32xf32>
    %137 = vector.shape_cast %136 : vector<48x32xf32> to vector<2x24x32xf32>
    %138 = arith.truncf %137 : vector<2x24x32xf32> to vector<2x24x32xbf16>
    %139 = vector.extract_strided_slice %45 {offsets = [0, 352], sizes = [48, 32], strides = [1, 1]} : vector<48x384xf32> to vector<48x32xf32>
    %140 = vector.shape_cast %139 : vector<48x32xf32> to vector<2x24x32xf32>
    %141 = arith.truncf %140 : vector<2x24x32xf32> to vector<2x24x32xbf16>
    "tpu.trace_start"() <{level = 10 : i32, message = "bnd,bmd->bnm"}> : () -> ()
    %cst_38 = arith.constant dense<0.000000e+00> : vector<2x24x24xf32>
    %142 = tpu.matmul %135, %138, %cst_38 {dimension_numbers = #tpu.dot_dimension_numbers<[2], [2], [1], [1], [0, 0, 0, 1, 1, 1], [0], [0]>} : vector<2x24x32xbf16>, vector<2x24x32xbf16>, vector<2x24x24xf32> -> vector<2x24x24xf32>
    %cst_39 = arith.constant -1.000000e+30 : f32
    "tpu.trace_stop"() : () -> ()
    %143 = vector.shape_cast %48 : vector<1x1x24xi1> to vector<1x1x24xi1>
    %144 = vector.broadcast %143 : vector<1x1x24xi1> to vector<2x24x24xi1>
    %145 = vector.broadcast %cst_39 : f32 to vector<2x24x24xf32>
    %146 = arith.select %144, %142, %145 : vector<2x24x24xi1>, vector<2x24x24xf32>
    %cst_40 = arith.constant dense<0xFF800000> : vector<2x24xf32>
    %147 = vector.multi_reduction <maximumf>, %146, %cst_40 [2] : vector<2x24x24xf32> to vector<2x24xf32>
    %148 = vector.shape_cast %147 : vector<2x24xf32> to vector<2x24x1xf32>
    %149 = vector.broadcast %148 : vector<2x24x1xf32> to vector<2x24x24xf32>
    %150 = arith.subf %146, %149 : vector<2x24x24xf32>
    %151 = math.exp %150 : vector<2x24x24xf32>
    %cst_41 = arith.constant dense<0.000000e+00> : vector<2x24xf32>
    %152 = vector.multi_reduction <add>, %151, %cst_41 [2] : vector<2x24x24xf32> to vector<2x24xf32>
    %153 = vector.shape_cast %152 : vector<2x24xf32> to vector<2x24x1xf32>
    %154 = vector.broadcast %153 : vector<2x24x1xf32> to vector<2x24x24xf32>
    %155 = arith.divf %151, %154 : vector<2x24x24xf32>
    %156 = arith.truncf %155 : vector<2x24x24xf32> to vector<2x24x24xbf16>
    "tpu.trace_start"() <{level = 10 : i32, message = "bnm,bmd->bnd"}> : () -> ()
    %cst_42 = arith.constant dense<0.000000e+00> : vector<2x24x32xf32>
    %157 = tpu.matmul %156, %141, %cst_42 {dimension_numbers = #tpu.dot_dimension_numbers<[2], [1], [1], [2], [0, 0, 0, 1, 1, 2], [0], [0]>} : vector<2x24x24xbf16>, vector<2x24x32xbf16>, vector<2x24x32xf32> -> vector<2x24x32xf32>
    "tpu.trace_stop"() : () -> ()
    %158 = vector.shape_cast %157 : vector<2x24x32xf32> to vector<48x32xf32>
    %159 = arith.truncf %158 : vector<48x32xf32> to vector<48x32xbf16>
    %c0_43 = arith.constant 0 : index
    %c96 = arith.constant 96 : index
    %160 = vector.load %arg9[%c0_43, %c96] : memref<48x128xbf16, #tpu.memory_space<vmem>>, vector<48x32xbf16>
    tpu.vector_store %arg9[%c0_43, %c96], %159 {strides = array<i32>} : memref<48x128xbf16, #tpu.memory_space<vmem>>, vector<48x32xbf16>,
    %c0_44 = arith.constant 0 : index
    %c0_45 = arith.constant 0 : index
    %161 = vector.load %arg9[%c0_44, %c0_45] : memref<48x128xbf16, #tpu.memory_space<vmem>>, vector<48x128xbf16>
    %162 = vector.extract_strided_slice %0 {offsets = [0, 384], sizes = [128, 128], strides = [1, 1]} : vector<128x512xbf16> to vector<128x128xbf16>
    %cst_46 = arith.constant dense<0.000000e+00> : vector<48x128xf32>
    %163 = tpu.matmul %161, %162, %cst_46 {dimension_numbers = #tpu.dot_dimension_numbers<[1], [0], [0], [1], [0, 0, 1, 1], [], []>} : vector<48x128xbf16>, vector<128x128xbf16>, vector<48x128xf32> -> vector<48x128xf32>
    %164 = vector.broadcast %7 : vector<1x128xf32> to vector<48x128xf32>
    %165 = arith.addf %163, %164 : vector<48x128xf32>
    %166 = arith.addf %20, %165 : vector<48x128xf32>
    %167 = arith.truncf %166 : vector<48x128xf32> to vector<48x128xbf16>
    %168 = vector.extract_strided_slice %1 {offsets = [0, 0], sizes = [128, 512], strides = [1, 1]} : vector<256x512xbf16> to vector<128x512xbf16>
    %cst_47 = arith.constant dense<0.000000e+00> : vector<48x512xf32>
    %169 = tpu.matmul %167, %168, %cst_47 {dimension_numbers = #tpu.dot_dimension_numbers<[1], [0], [0], [1], [0, 0, 1, 1], [], []>} : vector<48x128xbf16>, vector<128x512xbf16>, vector<48x512xf32> -> vector<48x512xf32>
    %170 = vector.broadcast %10 : vector<1x512xf32> to vector<48x512xf32>
    %171 = arith.addf %169, %170 : vector<48x512xf32>
    %cst_48 = arith.constant 3.000000e+00 : f32
    %172 = vector.broadcast %cst_48 : f32 to vector<48x512xf32>
    %173 = arith.addf %171, %172 : vector<48x512xf32>
    %cst_49 = arith.constant 0.000000e+00 : f32
    %174 = vector.broadcast %cst_49 : f32 to vector<48x512xf32>
    %175 = arith.maximumf %173, %174 : vector<48x512xf32>
    %cst_50 = arith.constant 6.000000e+00 : f32
    %176 = vector.broadcast %cst_50 : f32 to vector<48x512xf32>
    %177 = arith.minimumf %175, %176 : vector<48x512xf32>
    %cst_51 = arith.constant 0.166666672 : f32
    %178 = vector.broadcast %cst_51 : f32 to vector<48x512xf32>
    %179 = arith.mulf %177, %178 : vector<48x512xf32>
    %180 = arith.mulf %171, %179 : vector<48x512xf32>
    %cst_52 = arith.constant 0.000000e+00 : f32
    %181 = vector.broadcast %cst_52 : f32 to vector<48x512xf32>
    %c5_i32 = arith.constant 5 : i32
    %182 = tpu.dynamic_rotate %180 by %c5_i32 dim 0 : vector<48x512xf32>, i32 -> vector<48x512xf32>
    %183 = vector.extract_strided_slice %17 {offsets = [0, 0], sizes = [48, 1], strides = [1, 1]} : vector<48x16xf32> to vector<48x1xf32>
    %184 = vector.extract_strided_slice %3 {offsets = [0, 0], sizes = [1, 512], strides = [1, 1]} : vector<12x512xf32> to vector<1x512xf32>
    %185 = vector.broadcast %183 : vector<48x1xf32> to vector<48x512xf32>
    %186 = vector.broadcast %184 : vector<1x512xf32> to vector<48x512xf32>
    %187 = arith.mulf %185, %186 : vector<48x512xf32>
    %188 = arith.mulf %182, %187 : vector<48x512xf32>
    %189 = arith.addf %181, %188 : vector<48x512xf32>
    %c4_i32 = arith.constant 4 : i32
    %190 = tpu.dynamic_rotate %180 by %c4_i32 dim 0 : vector<48x512xf32>, i32 -> vector<48x512xf32>
    %191 = vector.extract_strided_slice %17 {offsets = [0, 1], sizes = [48, 1], strides = [1, 1]} : vector<48x16xf32> to vector<48x1xf32>
    %192 = vector.extract_strided_slice %3 {offsets = [1, 0], sizes = [1, 512], strides = [1, 1]} : vector<12x512xf32> to vector<1x512xf32>
    %193 = vector.broadcast %191 : vector<48x1xf32> to vector<48x512xf32>
    %194 = vector.broadcast %192 : vector<1x512xf32> to vector<48x512xf32>
    %195 = arith.mulf %193, %194 : vector<48x512xf32>
    %196 = arith.mulf %190, %195 : vector<48x512xf32>
    %197 = arith.addf %189, %196 : vector<48x512xf32>
    %c3_i32 = arith.constant 3 : i32
    %198 = tpu.dynamic_rotate %180 by %c3_i32 dim 0 : vector<48x512xf32>, i32 -> vector<48x512xf32>
    %199 = vector.extract_strided_slice %17 {offsets = [0, 2], sizes = [48, 1], strides = [1, 1]} : vector<48x16xf32> to vector<48x1xf32>
    %200 = vector.extract_strided_slice %3 {offsets = [2, 0], sizes = [1, 512], strides = [1, 1]} : vector<12x512xf32> to vector<1x512xf32>
    %201 = vector.broadcast %199 : vector<48x1xf32> to vector<48x512xf32>
    %202 = vector.broadcast %200 : vector<1x512xf32> to vector<48x512xf32>
    %203 = arith.mulf %201, %202 : vector<48x512xf32>
    %204 = arith.mulf %198, %203 : vector<48x512xf32>
    %205 = arith.addf %197, %204 : vector<48x512xf32>
    %c1_i32 = arith.constant 1 : i32
    %206 = tpu.dynamic_rotate %180 by %c1_i32 dim 0 : vector<48x512xf32>, i32 -> vector<48x512xf32>
    %207 = vector.extract_strided_slice %17 {offsets = [0, 3], sizes = [48, 1], strides = [1, 1]} : vector<48x16xf32> to vector<48x1xf32>
    %208 = vector.extract_strided_slice %3 {offsets = [3, 0], sizes = [1, 512], strides = [1, 1]} : vector<12x512xf32> to vector<1x512xf32>
    %209 = vector.broadcast %207 : vector<48x1xf32> to vector<48x512xf32>
    %210 = vector.broadcast %208 : vector<1x512xf32> to vector<48x512xf32>
    %211 = arith.mulf %209, %210 : vector<48x512xf32>
    %212 = arith.mulf %206, %211 : vector<48x512xf32>
    %213 = arith.addf %205, %212 : vector<48x512xf32>
    %214 = vector.extract_strided_slice %17 {offsets = [0, 4], sizes = [48, 1], strides = [1, 1]} : vector<48x16xf32> to vector<48x1xf32>
    %215 = vector.extract_strided_slice %3 {offsets = [4, 0], sizes = [1, 512], strides = [1, 1]} : vector<12x512xf32> to vector<1x512xf32>
    %216 = vector.broadcast %214 : vector<48x1xf32> to vector<48x512xf32>
    %217 = vector.broadcast %215 : vector<1x512xf32> to vector<48x512xf32>
    %218 = arith.mulf %216, %217 : vector<48x512xf32>
    %219 = arith.mulf %180, %218 : vector<48x512xf32>
    %220 = arith.addf %213, %219 : vector<48x512xf32>
    %c47_i32 = arith.constant 47 : i32
    %221 = tpu.dynamic_rotate %180 by %c47_i32 dim 0 : vector<48x512xf32>, i32 -> vector<48x512xf32>
    %222 = vector.extract_strided_slice %17 {offsets = [0, 5], sizes = [48, 1], strides = [1, 1]} : vector<48x16xf32> to vector<48x1xf32>
    %223 = vector.extract_strided_slice %3 {offsets = [5, 0], sizes = [1, 512], strides = [1, 1]} : vector<12x512xf32> to vector<1x512xf32>
    %224 = vector.broadcast %222 : vector<48x1xf32> to vector<48x512xf32>
    %225 = vector.broadcast %223 : vector<1x512xf32> to vector<48x512xf32>
    %226 = arith.mulf %224, %225 : vector<48x512xf32>
    %227 = arith.mulf %221, %226 : vector<48x512xf32>
    %228 = arith.addf %220, %227 : vector<48x512xf32>
    %c45_i32 = arith.constant 45 : i32
    %229 = tpu.dynamic_rotate %180 by %c45_i32 dim 0 : vector<48x512xf32>, i32 -> vector<48x512xf32>
    %230 = vector.extract_strided_slice %17 {offsets = [0, 6], sizes = [48, 1], strides = [1, 1]} : vector<48x16xf32> to vector<48x1xf32>
    %231 = vector.extract_strided_slice %3 {offsets = [6, 0], sizes = [1, 512], strides = [1, 1]} : vector<12x512xf32> to vector<1x512xf32>
    %232 = vector.broadcast %230 : vector<48x1xf32> to vector<48x512xf32>
    %233 = vector.broadcast %231 : vector<1x512xf32> to vector<48x512xf32>
    %234 = arith.mulf %232, %233 : vector<48x512xf32>
    %235 = arith.mulf %229, %234 : vector<48x512xf32>
    %236 = arith.addf %228, %235 : vector<48x512xf32>
    %c44_i32 = arith.constant 44 : i32
    %237 = tpu.dynamic_rotate %180 by %c44_i32 dim 0 : vector<48x512xf32>, i32 -> vector<48x512xf32>
    %238 = vector.extract_strided_slice %17 {offsets = [0, 7], sizes = [48, 1], strides = [1, 1]} : vector<48x16xf32> to vector<48x1xf32>
    %239 = vector.extract_strided_slice %3 {offsets = [7, 0], sizes = [1, 512], strides = [1, 1]} : vector<12x512xf32> to vector<1x512xf32>
    %240 = vector.broadcast %238 : vector<48x1xf32> to vector<48x512xf32>
    %241 = vector.broadcast %239 : vector<1x512xf32> to vector<48x512xf32>
    %242 = arith.mulf %240, %241 : vector<48x512xf32>
    %243 = arith.mulf %237, %242 : vector<48x512xf32>
    %244 = arith.addf %236, %243 : vector<48x512xf32>
    %c43_i32 = arith.constant 43 : i32
    %245 = tpu.dynamic_rotate %180 by %c43_i32 dim 0 : vector<48x512xf32>, i32 -> vector<48x512xf32>
    %246 = vector.extract_strided_slice %17 {offsets = [0, 8], sizes = [48, 1], strides = [1, 1]} : vector<48x16xf32> to vector<48x1xf32>
    %247 = vector.extract_strided_slice %3 {offsets = [8, 0], sizes = [1, 512], strides = [1, 1]} : vector<12x512xf32> to vector<1x512xf32>
    %248 = vector.broadcast %246 : vector<48x1xf32> to vector<48x512xf32>
    %249 = vector.broadcast %247 : vector<1x512xf32> to vector<48x512xf32>
    %250 = arith.mulf %248, %249 : vector<48x512xf32>
    %251 = arith.mulf %245, %250 : vector<48x512xf32>
    %252 = arith.addf %244, %251 : vector<48x512xf32>
    %253 = vector.broadcast %11 : vector<1x512xf32> to vector<48x512xf32>
    %254 = arith.addf %252, %253 : vector<48x512xf32>
    %cst_53 = arith.constant 3.000000e+00 : f32
    %255 = vector.broadcast %cst_53 : f32 to vector<48x512xf32>
    %256 = arith.addf %254, %255 : vector<48x512xf32>
    %cst_54 = arith.constant 0.000000e+00 : f32
    %257 = vector.broadcast %cst_54 : f32 to vector<48x512xf32>
    %258 = arith.maximumf %256, %257 : vector<48x512xf32>
    %cst_55 = arith.constant 6.000000e+00 : f32
    %259 = vector.broadcast %cst_55 : f32 to vector<48x512xf32>
    %260 = arith.minimumf %258, %259 : vector<48x512xf32>
    %cst_56 = arith.constant 0.166666672 : f32
    %261 = vector.broadcast %cst_56 : f32 to vector<48x512xf32>
    %262 = arith.mulf %260, %261 : vector<48x512xf32>
    %263 = arith.mulf %254, %262 : vector<48x512xf32>
    %264 = vector.shape_cast %263 : vector<48x512xf32> to vector<2x24x512xf32>
    %265 = vector.shape_cast %18 : vector<48x1xf32> to vector<2x24x1xf32>
    %266 = vector.broadcast %265 : vector<2x24x1xf32> to vector<2x24x512xf32>
    %267 = arith.mulf %264, %266 : vector<2x24x512xf32>
    %cst_57 = arith.constant dense<0.000000e+00> : vector<2x512xf32>
    %268 = vector.multi_reduction <add>, %267, %cst_57 [1] : vector<2x24x512xf32> to vector<2x512xf32>
    %cst_58 = arith.constant 6.250000e-02 : f32
    %269 = vector.broadcast %cst_58 : f32 to vector<2x512xf32>
    %270 = arith.mulf %268, %269 : vector<2x512xf32>
    %271 = arith.truncf %270 : vector<2x512xf32> to vector<2x512xbf16>
    %272 = vector.extract_strided_slice %2 {offsets = [0, 128], sizes = [512, 128], strides = [1, 1]} : vector<512x256xbf16> to vector<512x128xbf16>
    %cst_59 = arith.constant dense<0.000000e+00> : vector<2x128xf32>
    %273 = tpu.matmul %271, %272, %cst_59 {dimension_numbers = #tpu.dot_dimension_numbers<[1], [0], [0], [1], [0, 0, 1, 1], [], []>} : vector<2x512xbf16>, vector<512x128xbf16>, vector<2x128xf32> -> vector<2x128xf32>
    %274 = vector.broadcast %9 : vector<1x128xf32> to vector<2x128xf32>
    %275 = arith.addf %273, %274 : vector<2x128xf32>
    %cst_60 = arith.constant 0.000000e+00 : f32
    %276 = vector.broadcast %cst_60 : f32 to vector<2x128xf32>
    %277 = arith.maximumf %275, %276 : vector<2x128xf32>
    %278 = arith.truncf %277 : vector<2x128xf32> to vector<2x128xbf16>
    %279 = vector.extract_strided_slice %1 {offsets = [128, 0], sizes = [128, 512], strides = [1, 1]} : vector<256x512xbf16> to vector<128x512xbf16>
    %cst_61 = arith.constant dense<0.000000e+00> : vector<2x512xf32>
    %280 = tpu.matmul %278, %279, %cst_61 {dimension_numbers = #tpu.dot_dimension_numbers<[1], [0], [0], [1], [0, 0, 1, 1], [], []>} : vector<2x128xbf16>, vector<128x512xbf16>, vector<2x512xf32> -> vector<2x512xf32>
    %281 = vector.broadcast %12 : vector<1x512xf32> to vector<2x512xf32>
    %282 = arith.addf %280, %281 : vector<2x512xf32>
    %cst_62 = arith.constant 3.000000e+00 : f32
    %283 = vector.broadcast %cst_62 : f32 to vector<2x512xf32>
    %284 = arith.addf %282, %283 : vector<2x512xf32>
    %cst_63 = arith.constant 0.000000e+00 : f32
    %285 = vector.broadcast %cst_63 : f32 to vector<2x512xf32>
    %286 = arith.maximumf %284, %285 : vector<2x512xf32>
    %cst_64 = arith.constant 6.000000e+00 : f32
    %287 = vector.broadcast %cst_64 : f32 to vector<2x512xf32>
    %288 = arith.minimumf %286, %287 : vector<2x512xf32>
    %cst_65 = arith.constant 0.166666672 : f32
    %289 = vector.broadcast %cst_65 : f32 to vector<2x512xf32>
    %290 = arith.mulf %288, %289 : vector<2x512xf32>
    %291 = vector.shape_cast %290 : vector<2x512xf32> to vector<2x1x512xf32>
    %292 = vector.broadcast %291 : vector<2x1x512xf32> to vector<2x24x512xf32>
    %293 = arith.mulf %264, %292 : vector<2x24x512xf32>
    %294 = vector.shape_cast %293 : vector<2x24x512xf32> to vector<48x512xf32>
    %295 = arith.truncf %294 : vector<48x512xf32> to vector<48x512xbf16>
    %296 = vector.extract_strided_slice %2 {offsets = [0, 0], sizes = [512, 128], strides = [1, 1]} : vector<512x256xbf16> to vector<512x128xbf16>
    %cst_66 = arith.constant dense<0.000000e+00> : vector<48x128xf32>
    %297 = tpu.matmul %295, %296, %cst_66 {dimension_numbers = #tpu.dot_dimension_numbers<[1], [0], [0], [1], [0, 0, 1, 1], [], []>} : vector<48x512xbf16>, vector<512x128xbf16>, vector<48x128xf32> -> vector<48x128xf32>
    %298 = vector.broadcast %8 : vector<1x128xf32> to vector<48x128xf32>
    %299 = arith.addf %297, %298 : vector<48x128xf32>
    %300 = vector.broadcast %18 : vector<48x1xf32> to vector<48x128xf32>
    %301 = arith.mulf %299, %300 : vector<48x128xf32>
    %302 = arith.addf %166, %301 : vector<48x128xf32>
    %303 = vector.shape_cast %302 : vector<48x128xf32> to vector<2x24x128xf32>
    %c0_67 = arith.constant 0 : index
    %c0_68 = arith.constant 0 : index
    %c0_69 = arith.constant 0 : index
    %304 = vector.load %arg8[%c0_67, %c0_68, %c0_69] : memref<2x24x128xf32, #tpu.memory_space<vmem>>, vector<2x24x128xf32>
    tpu.vector_store %arg8[%c0_67, %c0_68, %c0_69], %303 {strides = array<i32>} : memref<2x24x128xf32, #tpu.memory_space<vmem>>, vector<2x24x128xf32>,
    return
  }
  func.func @transform_0(%arg0: i32) -> (i32, i32, i32) {
    %c0_i32 = arith.constant 0 : i32
    %c0_i32_0 = arith.constant 0 : i32
    %c0_i32_1 = arith.constant 0 : i32
    return %arg0, %c0_i32, %c0_i32_0 : i32, i32, i32
  }
  func.func @transform_1(%arg0: i32) -> (i32, i32) {
    %c0_i32 = arith.constant 0 : i32
    %c0_i32_0 = arith.constant 0 : i32
    %c0_i32_1 = arith.constant 0 : i32
    return %c0_i32, %c0_i32_0 : i32, i32
  }
  func.func @transform_2(%arg0: i32) -> (i32, i32) {
    %c0_i32 = arith.constant 0 : i32
    %c0_i32_0 = arith.constant 0 : i32
    %c0_i32_1 = arith.constant 0 : i32
    return %c0_i32, %c0_i32_0 : i32, i32
  }
  func.func @transform_3(%arg0: i32) -> (i32, i32) {
    %c0_i32 = arith.constant 0 : i32
    %c0_i32_0 = arith.constant 0 : i32
    %c0_i32_1 = arith.constant 0 : i32
    return %c0_i32, %c0_i32_0 : i32, i32
  }
  func.func @transform_4(%arg0: i32) -> (i32, i32) {
    %c0_i32 = arith.constant 0 : i32
    %c0_i32_0 = arith.constant 0 : i32
    %c0_i32_1 = arith.constant 0 : i32
    return %c0_i32, %c0_i32_0 : i32, i32
  }
  func.func @transform_5(%arg0: i32) -> (i32, i32) {
    %c0_i32 = arith.constant 0 : i32
    %c0_i32_0 = arith.constant 0 : i32
    %c0_i32_1 = arith.constant 0 : i32
    return %c0_i32, %c0_i32_0 : i32, i32
  }
  func.func @transform_6(%arg0: i32) -> (i32, i32) {
    %c0_i32 = arith.constant 0 : i32
    %c0_i32_0 = arith.constant 0 : i32
    %c0_i32_1 = arith.constant 0 : i32
    return %c0_i32, %c0_i32_0 : i32, i32
  }
  func.func @transform_7(%arg0: i32) -> (i32, i32, i32) {
    %c0_i32 = arith.constant 0 : i32
    %c0_i32_0 = arith.constant 0 : i32
    %c0_i32_1 = arith.constant 0 : i32
    return %arg0, %c0_i32, %c0_i32_0 : i32, i32, i32
  }
}

</mosaic_0001>

<llo_original>
// kernel: tpu_custom_call.1
$region0: #{tpu_custom_call.1}
  #allocation0 [shape = 'u32[]', space=smem, size = 0x4, offset = 0x4, fixed_abs, tag = 'smem constant byte address 0x4 - core index']
  #allocation1 [shape = 'u32[72,128]{1,0:T(1,128)}', space=vmem, size = 0x9000, scoped, tag = 'internal scratch']
  #allocation2 [shape = 'bf16[48,128]{1,0:T(8,128)(2,1)}', space=vmem, size = 0x3000, scoped, tag = 'scratch operand']
  %s0 = inlined_call_operand.hbm [shape: f32[4,24,128], index: 0, kind: input, shape index: {}]
  %s1 = inlined_call_operand.hbm [shape: bf16[128,512], index: 1, kind: input, shape index: {}]
  %s2 = inlined_call_operand.hbm [shape: bf16[256,512], index: 2, kind: input, shape index: {}]
  %s3 = inlined_call_operand.hbm [shape: bf16[512,256], index: 3, kind: input, shape index: {}]
  %s4 = inlined_call_operand.hbm [shape: f32[12,512], index: 4, kind: input, shape index: {}]
  %s5 = inlined_call_operand.vmem [shape: f32[5,128], index: 5, kind: input, shape index: {}]
  %s6 = inlined_call_operand.vmem [shape: f32[24,16], index: 6, kind: input, shape index: {}]
  %s7 = inlined_call_operand.hbm [shape: f32[4,24,128], index: 7, kind: output, shape index: {}]
  %s8 = sld [smem:[#allocation0]]
  $region81: #{tpu_custom_call.1} parent=0
    _
  %s10 = ssub.s32 1, %s8
  %s11 = scalar_select 0, %s10, %s8
  $region1: #{tpu_custom_call.1} parent=0
    #allocation3 [shape = 'u8[49152]{0}', space=vmem, size = 0xc000, scoped, tag = 'input window, operand 0']
    #allocation4 [shape = 's32[2]{0}', space=sflag, size = 0x8, scoped, tag = 'scoped memory for tpu_custom_call.1']
    #allocation5 [shape = 's32[2]{0}', space=sflag, size = 0x8, scoped, tag = 'scoped memory for tpu_custom_call.1']
    #allocation6 [shape = 'u8[131072]{0}', space=vmem, size = 0x20000, scoped, tag = 'input window, operand 1, single buffered']
    #allocation7 [shape = 's32[1]{0}', space=sflag, size = 0x4, scoped, tag = 'scoped memory for tpu_custom_call.1']
    #allocation8 [shape = 'u8[262144]{0}', space=vmem, size = 0x40000, scoped, tag = 'input window, operand 2, single buffered']
    #allocation9 [shape = 'u8[262144]{0}', space=vmem, size = 0x40000, scoped, tag = 'input window, operand 3, single buffered']
    #allocation10 [shape = 's32[1]{0}', space=sflag, size = 0x4, scoped, tag = 'scoped memory for tpu_custom_call.1']
    #allocation11 [shape = 'u8[32768]{0}', space=vmem, size = 0x8000, scoped, tag = 'input window, operand 4, single buffered']
    #allocation12 [shape = 'u8[49152]{0}', space=vmem, size = 0xc000, scoped, tag = 'output window, operand 0']
    %12 = vsyncpa [#allocation4], 0
    %s13 = scalar_lea.sflag [#allocation4], 1
    %14 = vsyncpa %s13, 0
    %15 = vsyncpa [#allocation7], 0
    %16 = vsyncpa [#allocation10], 0
    %17 = vsyncpa [#allocation5], 0
    %s18 = scalar_lea.sflag [#allocation5], 1
    %19 = vsyncpa %s18, 0
    loop: start=0, step=1, limit=4
    $region2: #{tpu_custom_call.1} parent=1 // loop_pre_header
      _
    $region3: #{tpu_custom_call.1} parent=1 // loop_header
      %s21 = sphi 0, %s25
      %p22 = scmp.ge.s32.totalorder %s21, 4
      %s31 = sphi 0, %s33
      %s34 = sphi 0, %s31
      %s35 = sphi 0, %s34
      %s51 = sphi 0, %s35
      %s55 = sphi 0, %s55
      %s57 = sphi 0, %s55
      %s58 = sphi 0, %s57
      %s72 = sphi 0, %s58
      %s76 = sphi 0, %s76
      %s78 = sphi 0, %s76
      %s79 = sphi 0, %s78
      %s93 = sphi 0, %s79
      %s97 = sphi 0, %s97
      %s99 = sphi 0, %s97
      %s100 = sphi 0, %s99
      %s114 = sphi 0, %s100
      %s118 = sphi 0, %s118
      %s120 = sphi 0, %s118
      %s121 = sphi 0, %s120
      %s135 = sphi 0, %s121
      %s139 = sphi 0, %s139
      %s141 = sphi 0, %s139
      %s142 = sphi 0, %s141
      %s156 = sphi 0, %s142
      %s160 = sphi 0, %s160
      %s162 = sphi 0, %s160
      %s163 = sphi 0, %s162
      %s177 = sphi 0, %s163
      %s183 = sphi 0, %s185
      %s186 = sphi 0, %s183
      %s187 = sphi 0, %s186
      %s203 = sphi 0, %s187
    $region4: #{tpu_custom_call.1} parent=1 // loop_header_branch
      %24 = sbr.rel (%p22) target = $region8
    $region5: #{tpu_custom_call.1} parent=1 // loop_body
      %s26 = ssub.s32 %s21, 1
      %s27 = ssub.s32 %s21, 2
      %s28 = sadd.s32 %s21, 1
      %s29 = ssub.s32 %s21, %s28
      %p30 = scmp.eq.s32.totalorder %s29, 0
      %s32 = sadd.s32 %s31, 1
      %s33 = scalar_select %p30, %s31, %s32
      %p36 = pneg %p30
      %p37 = scmp.eq.s32.totalorder %s21, 1
      %p38 = por %p36, %p37
      %p39 = scmp.ne.s32.totalorder %s31, %s34
      %p40 = scmp.eq.s32.totalorder %s21, 0
      %p41 = por %p39, %p40
      %p42 = scmp.ne.s32.totalorder %s31, %s34
      %p43 = scmp.eq.s32.totalorder %s26, 1
      %p44 = por %p42, %p43
      %p45 = scmp.ne.s32.totalorder %s34, %s35
      %p46 = scmp.eq.s32.totalorder %s26, 0
      %p47 = por %p45, %p46
      %p48 = scmp.ne.s32.totalorder %s34, %s35
      %p49 = scmp.eq.s32.totalorder %s27, 1
      %p50 = por %p48, %p49
      %p52 = scmp.ne.s32.totalorder %s35, %s51
      %p53 = scmp.eq.s32.totalorder %s27, 0
      %p54 = por %p52, %p53
      %s56 = sadd.s32 %s55, 1
      %p59 = scmp.eq.s32.totalorder %s21, 1
      %p60 = scmp.ne.s32.totalorder %s55, %s57
      %p61 = scmp.eq.s32.totalorder %s21, 0
      %p62 = por %p60, %p61
      %p63 = scmp.ne.s32.totalorder %s55, %s57
      %p64 = scmp.eq.s32.totalorder %s26, 1
      %p65 = por %p63, %p64
      %p66 = scmp.ne.s32.totalorder %s57, %s58
      %p67 = scmp.eq.s32.totalorder %s26, 0
      %p68 = por %p66, %p67
      %p69 = scmp.ne.s32.totalorder %s57, %s58
      %p70 = scmp.eq.s32.totalorder %s27, 1
      %p71 = por %p69, %p70
      %p73 = scmp.ne.s32.totalorder %s58, %s72
      %p74 = scmp.eq.s32.totalorder %s27, 0
      %p75 = por %p73, %p74
      %s77 = sadd.s32 %s76, 1
      %p80 = scmp.eq.s32.totalorder %s21, 1
      %p81 = scmp.ne.s32.totalorder %s76, %s78
      %p82 = scmp.eq.s32.totalorder %s21, 0
      %p83 = por %p81, %p82
      %p84 = scmp.ne.s32.totalorder %s76, %s78
      %p85 = scmp.eq.s32.totalorder %s26, 1
      %p86 = por %p84, %p85
      %p87 = scmp.ne.s32.totalorder %s78, %s79
      %p88 = scmp.eq.s32.totalorder %s26, 0
      %p89 = por %p87, %p88
      %p90 = scmp.ne.s32.totalorder %s78, %s79
      %p91 = scmp.eq.s32.totalorder %s27, 1
      %p92 = por %p90, %p91
      %p94 = scmp.ne.s32.totalorder %s79, %s93
      %p95 = scmp.eq.s32.totalorder %s27, 0
      %p96 = por %p94, %p95
      %s98 = sadd.s32 %s97, 1
      %p101 = scmp.eq.s32.totalorder %s21, 1
      %p102 = scmp.ne.s32.totalorder %s97, %s99
      %p103 = scmp.eq.s32.totalorder %s21, 0
      %p104 = por %p102, %p103
      %p105 = scmp.ne.s32.totalorder %s97, %s99
      %p106 = scmp.eq.s32.totalorder %s26, 1
      %p107 = por %p105, %p106
      %p108 = scmp.ne.s32.totalorder %s99, %s100
      %p109 = scmp.eq.s32.totalorder %s26, 0
      %p110 = por %p108, %p109
      %p111 = scmp.ne.s32.totalorder %s99, %s100
      %p112 = scmp.eq.s32.totalorder %s27, 1
      %p113 = por %p111, %p112
      %p115 = scmp.ne.s32.totalorder %s100, %s114
      %p116 = scmp.eq.s32.totalorder %s27, 0
      %p117 = por %p115, %p116
      %s119 = sadd.s32 %s118, 1
      %p122 = scmp.eq.s32.totalorder %s21, 1
      %p123 = scmp.ne.s32.totalorder %s118, %s120
      %p124 = scmp.eq.s32.totalorder %s21, 0
      %p125 = por %p123, %p124
      %p126 = scmp.ne.s32.totalorder %s118, %s120
      %p127 = scmp.eq.s32.totalorder %s26, 1
      %p128 = por %p126, %p127
      %p129 = scmp.ne.s32.totalorder %s120, %s121
      %p130 = scmp.eq.s32.totalorder %s26, 0
      %p131 = por %p129, %p130
      %p132 = scmp.ne.s32.totalorder %s120, %s121
      %p133 = scmp.eq.s32.totalorder %s27, 1
      %p134 = por %p132, %p133
      %p136 = scmp.ne.s32.totalorder %s121, %s135
      %p137 = scmp.eq.s32.totalorder %s27, 0
      %p138 = por %p136, %p137
      %s140 = sadd.s32 %s139, 1
      %p143 = scmp.eq.s32.totalorder %s21, 1
      %p144 = scmp.ne.s32.totalorder %s139, %s141
      %p145 = scmp.eq.s32.totalorder %s21, 0
      %p146 = por %p144, %p145
      %p147 = scmp.ne.s32.totalorder %s139, %s141
      %p148 = scmp.eq.s32.totalorder %s26, 1
      %p149 = por %p147, %p148
      %p150 = scmp.ne.s32.totalorder %s141, %s142
      %p151 = scmp.eq.s32.totalorder %s26, 0
      %p152 = por %p150, %p151
      %p153 = scmp.ne.s32.totalorder %s141, %s142
      %p154 = scmp.eq.s32.totalorder %s27, 1
      %p155 = por %p153, %p154
      %p157 = scmp.ne.s32.totalorder %s142, %s156
      %p158 = scmp.eq.s32.totalorder %s27, 0
      %p159 = por %p157, %p158
      %s161 = sadd.s32 %s160, 1
      %p164 = scmp.eq.s32.totalorder %s21, 1
      %p165 = scmp.ne.s32.totalorder %s160, %s162
      %p166 = scmp.eq.s32.totalorder %s21, 0
      %p167 = por %p165, %p166
      %p168 = scmp.ne.s32.totalorder %s160, %s162
      %p169 = scmp.eq.s32.totalorder %s26, 1
      %p170 = por %p168, %p169
      %p171 = scmp.ne.s32.totalorder %s162, %s163
      %p172 = scmp.eq.s32.totalorder %s26, 0
      %p173 = por %p171, %p172
      %p174 = scmp.ne.s32.totalorder %s162, %s163
      %p175 = scmp.eq.s32.totalorder %s27, 1
      %p176 = por %p174, %p175
      %p178 = scmp.ne.s32.totalorder %s163, %s177
      %p179 = scmp.eq.s32.totalorder %s27, 0
      %p180 = por %p178, %p179
      %s181 = ssub.s32 %s21, %s28
      %p182 = scmp.eq.s32.totalorder %s181, 0
      %s184 = sadd.s32 %s183, 1
      %s185 = scalar_select %p182, %s183, %s184
      %p188 = pneg %p182
      %p189 = scmp.eq.s32.totalorder %s21, 1
      %p190 = por %p188, %p189
      %p191 = scmp.ne.s32.totalorder %s183, %s186
      %p192 = scmp.eq.s32.totalorder %s21, 0
      %p193 = por %p191, %p192
      %p194 = scmp.ne.s32.totalorder %s183, %s186
      %p195 = scmp.eq.s32.totalorder %s26, 1
      %p196 = por %p194, %p195
      %p197 = scmp.ne.s32.totalorder %s186, %s187
      %p198 = scmp.eq.s32.totalorder %s26, 0
      %p199 = por %p197, %p198
      %p200 = scmp.ne.s32.totalorder %s186, %s187
      %p201 = scmp.eq.s32.totalorder %s27, 1
      %p202 = por %p200, %p201
      %p204 = scmp.ne.s32.totalorder %s187, %s203
      %p205 = scmp.eq.s32.totalorder %s27, 0
      %p206 = por %p204, %p205
      %p207 = scmp.le.s32.totalorder 1, %s21
      %p208 = scmp.lt.s32.totalorder %s21, 3
      %p209 = pnand %p207, %p208
      %p210 = pneg %p209
      // Predicated region
      $region9: #{tpu_custom_call.1} parent=5 // pred_check
        _
      $region10: #{tpu_custom_call.1} parent=5 // pred_check_branch
        %212 = sbr.rel (%p209) target = $region12
      $region11: #{tpu_custom_call.1} parent=5 // pred_region
        %s213 = ssub.s32 %s21, 1
        // Predicated region
        $region13: #{tpu_custom_call.1} parent=11 // pred_check
          %p214 = pneg %p68
        $region14: #{tpu_custom_call.1} parent=11 // pred_check_branch
          %216 = sbr.rel (%p214) target = $region16
        $region15: #{tpu_custom_call.1} parent=11 // pred_region
          %218 = vsyncadd [#allocation7], 0
          %s219 = sshll.u32 %s1, 4
          %s220 = int_to_ptr.hbm [resolvable:$true] %s219
          %s221 = sshll.u32 [#allocation6], 4
          %s222 = int_to_ptr.vmem [resolvable:$true] %s221
          %227 = dma.hbm_to_vmem [thread:$0]  %s220, 4096, %s222, [#allocation7], 256, 256, 16
        $region16: #{tpu_custom_call.1} parent=11 // pred_fallthru
          _
        // Predicated region
        $region17: #{tpu_custom_call.1} parent=11 // pred_check
          %p228 = pneg %p89
        $region18: #{tpu_custom_call.1} parent=11 // pred_check_branch
          %230 = sbr.rel (%p228) target = $region20
        $region19: #{tpu_custom_call.1} parent=11 // pred_region
          %232 = vsyncadd [#allocation7], 0
          %s233 = sshll.u32 %s2, 4
          %s234 = int_to_ptr.hbm [resolvable:$true] %s233
          %s235 = sshll.u32 [#allocation8], 4
          %s236 = int_to_ptr.vmem [resolvable:$true] %s235
          %241 = dma.hbm_to_vmem [thread:$0]  %s234, 8192, %s236, [#allocation7], 256, 256, 16
        $region20: #{tpu_custom_call.1} parent=11 // pred_fallthru
          _
        // Predicated region
        $region21: #{tpu_custom_call.1} parent=11 // pred_check
          %p242 = pneg %p110
        $region22: #{tpu_custom_call.1} parent=11 // pred_check_branch
          %244 = sbr.rel (%p242) target = $region24
        $region23: #{tpu_custom_call.1} parent=11 // pred_region
          %246 = vsyncadd [#allocation10], 0
          %s247 = sshll.u32 %s3, 4
          %s248 = int_to_ptr.hbm [resolvable:$true] %s247
          %s249 = sshll.u32 [#allocation9], 4
          %s250 = int_to_ptr.vmem [resolvable:$true] %s249
          %255 = dma.hbm_to_vmem [thread:$0]  %s248, 8192, %s250, [#allocation10], 128, 128, 8
        $region24: #{tpu_custom_call.1} parent=11 // pred_fallthru
          _
        // Predicated region
        $region25: #{tpu_custom_call.1} parent=11 // pred_check
          %p256 = pneg %p131
        $region26: #{tpu_custom_call.1} parent=11 // pred_check_branch
          %258 = sbr.rel (%p256) target = $region28
        $region27: #{tpu_custom_call.1} parent=11 // pred_region
          %260 = vsyncadd [#allocation10], 0
          %s261 = sshll.u32 %s4, 4
          %s262 = int_to_ptr.hbm [resolvable:$true] %s261
          %s263 = sshll.u32 [#allocation11], 4
          %s264 = int_to_ptr.vmem [resolvable:$true] %s263
          %269 = dma.hbm_to_vmem [thread:$0]  %s262, 1024, %s264, [#allocation10], 512, 512, 32
        $region28: #{tpu_custom_call.1} parent=11 // pred_fallthru
          _
        // Predicated region
        $region29: #{tpu_custom_call.1} parent=11 // pred_check
          %p270 = pneg %p152
        $region30: #{tpu_custom_call.1} parent=11 // pred_check_branch
          %272 = sbr.rel (%p270) target = $region32
        $region31: #{tpu_custom_call.1} parent=11 // pred_region
          _
        $region32: #{tpu_custom_call.1} parent=11 // pred_fallthru
          _
        // Predicated region
        $region33: #{tpu_custom_call.1} parent=11 // pred_check
          %p273 = pneg %p173
        $region34: #{tpu_custom_call.1} parent=11 // pred_check_branch
          %275 = sbr.rel (%p273) target = $region36
        $region35: #{tpu_custom_call.1} parent=11 // pred_region
          _
        $region36: #{tpu_custom_call.1} parent=11 // pred_fallthru
          _
      $region12: #{tpu_custom_call.1} parent=5 // pred_fallthru
        _
      %p276 = scmp.lt.s32.totalorder %s21, 2
      // Predicated region
      $region37: #{tpu_custom_call.1} parent=5 // pred_check
        %p277 = pneg %p276
      $region38: #{tpu_custom_call.1} parent=5 // pred_check_branch
        %279 = sbr.rel (%p277) target = $region40
      $region39: #{tpu_custom_call.1} parent=5 // pred_region
        // Predicated region
        $region41: #{tpu_custom_call.1} parent=39 // pred_check
          %p280 = pneg %p41
        $region42: #{tpu_custom_call.1} parent=39 // pred_check_branch
          %282 = sbr.rel (%p280) target = $region44
        $region43: #{tpu_custom_call.1} parent=39 // pred_region
          %s283 = sand.u32 %s31, 1
          %s284 = scalar_lea.sflag [#allocation4], %s283
          %s285 = sand.u32 %s31, 1
          %s286 = smul.addr %s285, 48
          %s287 = scalar_lea.vmem [#allocation3], %s286
          %s288 = smul.u32 2, %s21
          %290 = vsyncadd %s284, 0
          %s291 = smul.addr %s288, 3
          %s292 = smul.addr %s291, 8
          %s293 = scalar_lea.hbm %s0, %s292
          %s294 = sshll.u32 %s293, 4
          %s295 = int_to_ptr.hbm [resolvable:$true] %s294
          %s296 = sshll.u32 %s287, 4
          %s297 = int_to_ptr.vmem [resolvable:$true] %s296
          %302 = dma.hbm_to_vmem [thread:$0]  %s295, 768, %s297, %s284, 128, 128, 8
        $region44: #{tpu_custom_call.1} parent=39 // pred_fallthru
          _
      $region40: #{tpu_custom_call.1} parent=5 // pred_fallthru
        _
      %p303 = scmp.le.s32.totalorder 1, %s21
      %p304 = scmp.lt.s32.totalorder %s21, 3
      %p305 = pnand %p303, %p304
      %p306 = pneg %p305
      // Predicated region
      $region45: #{tpu_custom_call.1} parent=5 // pred_check
        _
      $region46: #{tpu_custom_call.1} parent=5 // pred_check_branch
        %308 = sbr.rel (%p305) target = $region48
      $region47: #{tpu_custom_call.1} parent=5 // pred_region
        %s309 = ssub.s32 %s21, 1
        %s310 = sand.u32 %s34, 1
        %s311 = scalar_lea.sflag [#allocation4], %s310
        %s312 = sand.u32 %s34, 1
        %s313 = smul.addr %s312, 48
        %s314 = scalar_lea.vmem [#allocation3], %s313
        // Predicated region
        $region49: #{tpu_custom_call.1} parent=47 // pred_check
          %p315 = pneg %p47
        $region50: #{tpu_custom_call.1} parent=47 // pred_check_branch
          %317 = sbr.rel (%p315) target = $region52
        $region51: #{tpu_custom_call.1} parent=47 // pred_region
          %319 = dma.done %s311, 768
        $region52: #{tpu_custom_call.1} parent=47 // pred_fallthru
          _
        // Predicated region
        $region53: #{tpu_custom_call.1} parent=47 // pred_check
          %p320 = pneg %p68
        $region54: #{tpu_custom_call.1} parent=47 // pred_check_branch
          %322 = sbr.rel (%p320) target = $region56
        $region55: #{tpu_custom_call.1} parent=47 // pred_region
          %324 = dma.done [#allocation7], 4096
        $region56: #{tpu_custom_call.1} parent=47 // pred_fallthru
          _
        // Predicated region
        $region57: #{tpu_custom_call.1} parent=47 // pred_check
          %p325 = pneg %p89
        $region58: #{tpu_custom_call.1} parent=47 // pred_check_branch
          %327 = sbr.rel (%p325) target = $region60
        $region59: #{tpu_custom_call.1} parent=47 // pred_region
          %329 = dma.done [#allocation7], 8192
        $region60: #{tpu_custom_call.1} parent=47 // pred_fallthru
          _
        // Predicated region
        $region61: #{tpu_custom_call.1} parent=47 // pred_check
          %p330 = pneg %p110
        $region62: #{tpu_custom_call.1} parent=47 // pred_check_branch
          %332 = sbr.rel (%p330) target = $region64
        $region63: #{tpu_custom_call.1} parent=47 // pred_region
          %334 = dma.done [#allocation10], 8192
        $region64: #{tpu_custom_call.1} parent=47 // pred_fallthru
          _
        // Predicated region
        $region65: #{tpu_custom_call.1} parent=47 // pred_check
          %p335 = pneg %p131
        $region66: #{tpu_custom_call.1} parent=47 // pred_check_branch
          %337 = sbr.rel (%p335) target = $region68
        $region67: #{tpu_custom_call.1} parent=47 // pred_region
          %339 = dma.done [#allocation10], 1024
        $region68: #{tpu_custom_call.1} parent=47 // pred_fallthru
          _
        %s340 = sand.u32 %s34, 1
        %s341 = scalar_lea.sflag [#allocation4], %s340
        %s342 = sand.u32 %s34, 1
        %s343 = smul.addr %s342, 48
        %s344 = scalar_lea.vmem [#allocation3], %s343
        %p345 = pneg %p47
        %p346 = pneg %p44
        %p347 = pneg %p68
        %p348 = pneg %p65
        %p349 = pneg %p89
        %p350 = pneg %p86
        %p351 = pneg %p110
        %p352 = pneg %p107
        %p353 = pneg %p131
        %p354 = pneg %p128
        %p355 = pneg %p152
        %p356 = pneg %p149
        %p357 = pneg %p173
        %p358 = pneg %p170
        %p359 = pneg %p199
        %p360 = pneg %p196
        %s361 = sand.u32 %s186, 1
        %s362 = scalar_lea.sflag [#allocation5], %s361
        %s363 = sand.u32 %s186, 1
        %s364 = smul.addr %s363, 48
        %s365 = scalar_lea.vmem [#allocation12], %s364
        %s366 = smul.u32 2, %s26
        %s367 = smul.u32 2, %s26
        %v369 = vld [vmem:[#allocation6] sm:$0xff]
        %v370 = vld [vmem:[#allocation6 + $0x8] sm:$0xff]
        %v371 = vld [vmem:[#allocation6 + $0x10] sm:$0xff]
        %v372 = vld [vmem:[#allocation6 + $0x18] sm:$0xff]
        %v373 = vld [vmem:[#allocation6 + $0x20] sm:$0xff]
        %v374 = vld [vmem:[#allocation6 + $0x28] sm:$0xff]
        %v375 = vld [vmem:[#allocation6 + $0x30] sm:$0xff]
        %v376 = vld [vmem:[#allocation6 + $0x38] sm:$0xff]
        %v377 = vld [vmem:[#allocation6 + $0x40] sm:$0xff]
        %v378 = vld [vmem:[#allocation6 + $0x48] sm:$0xff]
        %v379 = vld [vmem:[#allocation6 + $0x50] sm:$0xff]
        %v380 = vld [vmem:[#allocation6 + $0x58] sm:$0xff]
        %v381 = vld [vmem:[#allocation6 + $0x60] sm:$0xff]
        %v382 = vld [vmem:[#allocation6 + $0x68] sm:$0xff]
        %v383 = vld [vmem:[#allocation6 + $0x70] sm:$0xff]
        %v384 = vld [vmem:[#allocation6 + $0x78] sm:$0xff]
        %v385 = vld [vmem:[#allocation6 + $0x80] sm:$0xff]
        %v386 = vld [vmem:[#allocation6 + $0x88] sm:$0xff]
        %v387 = vld [vmem:[#allocation6 + $0x90] sm:$0xff]
        %v388 = vld [vmem:[#allocation6 + $0x98] sm:$0xff]
        %v389 = vld [vmem:[#allocation6 + $0xa0] sm:$0xff]
        %v390 = vld [vmem:[#allocation6 + $0xa8] sm:$0xff]
        %v391 = vld [vmem:[#allocation6 + $0xb0] sm:$0xff]
        %v392 = vld [vmem:[#allocation6 + $0xb8] sm:$0xff]
        %v393 = vld [vmem:[#allocation6 + $0xc0] sm:$0xff]
        %v394 = vld [vmem:[#allocation6 + $0xc8] sm:$0xff]
        %v395 = vld [vmem:[#allocation6 + $0xd0] sm:$0xff]
        %v396 = vld [vmem:[#allocation6 + $0xd8] sm:$0xff]
        %v397 = vld [vmem:[#allocation6 + $0xe0] sm:$0xff]
        %v398 = vld [vmem:[#allocation6 + $0xe8] sm:$0xff]
        %v399 = vld [vmem:[#allocation6 + $0xf0] sm:$0xff]
        %v400 = vld [vmem:[#allocation6 + $0xf8] sm:$0xff]
        %v401 = vld [vmem:[#allocation8] sm:$0xff]
        %v402 = vld [vmem:[#allocation8 + $0x8] sm:$0xff]
        %v403 = vld [vmem:[#allocation8 + $0x10] sm:$0xff]
        %v404 = vld [vmem:[#allocation8 + $0x18] sm:$0xff]
        %v405 = vld [vmem:[#allocation8 + $0x20] sm:$0xff]
        %v406 = vld [vmem:[#allocation8 + $0x28] sm:$0xff]
        %v407 = vld [vmem:[#allocation8 + $0x30] sm:$0xff]
        %v408 = vld [vmem:[#allocation8 + $0x38] sm:$0xff]
        %v409 = vld [vmem:[#allocation8 + $0x40] sm:$0xff]
        %v410 = vld [vmem:[#allocation8 + $0x48] sm:$0xff]
        %v411 = vld [vmem:[#allocation8 + $0x50] sm:$0xff]
        %v412 = vld [vmem:[#allocation8 + $0x58] sm:$0xff]
        %v413 = vld [vmem:[#allocation8 + $0x60] sm:$0xff]
        %v414 = vld [vmem:[#allocation8 + $0x68] sm:$0xff]
        %v415 = vld [vmem:[#allocation8 + $0x70] sm:$0xff]
        %v416 = vld [vmem:[#allocation8 + $0x78] sm:$0xff]
        %v417 = vld [vmem:[#allocation8 + $0x80] sm:$0xff]
        %v418 = vld [vmem:[#allocation8 + $0x88] sm:$0xff]
        %v419 = vld [vmem:[#allocation8 + $0x90] sm:$0xff]
        %v420 = vld [vmem:[#allocation8 + $0x98] sm:$0xff]
        %v421 = vld [vmem:[#allocation8 + $0xa0] sm:$0xff]
        %v422 = vld [vmem:[#allocation8 + $0xa8] sm:$0xff]
        %v423 = vld [vmem:[#allocation8 + $0xb0] sm:$0xff]
        %v424 = vld [vmem:[#allocation8 + $0xb8] sm:$0xff]
        %v425 = vld [vmem:[#allocation8 + $0xc0] sm:$0xff]
        %v426 = vld [vmem:[#allocation8 + $0xc8] sm:$0xff]
        %v427 = vld [vmem:[#allocation8 + $0xd0] sm:$0xff]
        %v428 = vld [vmem:[#allocation8 + $0xd8] sm:$0xff]
        %v429 = vld [vmem:[#allocation8 + $0xe0] sm:$0xff]
        %v430 = vld [vmem:[#allocation8 + $0xe8] sm:$0xff]
        %v431 = vld [vmem:[#allocation8 + $0xf0] sm:$0xff]
        %v432 = vld [vmem:[#allocation8 + $0xf8] sm:$0xff]
        %v433 = vld [vmem:[#allocation8 + $0x100] sm:$0xff]
        %v434 = vld [vmem:[#allocation8 + $0x108] sm:$0xff]
        %v435 = vld [vmem:[#allocation8 + $0x110] sm:$0xff]
        %v436 = vld [vmem:[#allocation8 + $0x118] sm:$0xff]
        %v437 = vld [vmem:[#allocation8 + $0x120] sm:$0xff]
        %v438 = vld [vmem:[#allocation8 + $0x128] sm:$0xff]
        %v439 = vld [vmem:[#allocation8 + $0x130] sm:$0xff]
        %v440 = vld [vmem:[#allocation8 + $0x138] sm:$0xff]
        %v441 = vld [vmem:[#allocation8 + $0x140] sm:$0xff]
        %v442 = vld [vmem:[#allocation8 + $0x148] sm:$0xff]
        %v443 = vld [vmem:[#allocation8 + $0x150] sm:$0xff]
        %v444 = vld [vmem:[#allocation8 + $0x158] sm:$0xff]
        %v445 = vld [vmem:[#allocation8 + $0x160] sm:$0xff]
        %v446 = vld [vmem:[#allocation8 + $0x168] sm:$0xff]
        %v447 = vld [vmem:[#allocation8 + $0x170] sm:$0xff]
        %v448 = vld [vmem:[#allocation8 + $0x178] sm:$0xff]
        %v449 = vld [vmem:[#allocation8 + $0x180] sm:$0xff]
        %v450 = vld [vmem:[#allocation8 + $0x188] sm:$0xff]
        %v451 = vld [vmem:[#allocation8 + $0x190] sm:$0xff]
        %v452 = vld [vmem:[#allocation8 + $0x198] sm:$0xff]
        %v453 = vld [vmem:[#allocation8 + $0x1a0] sm:$0xff]
        %v454 = vld [vmem:[#allocation8 + $0x1a8] sm:$0xff]
        %v455 = vld [vmem:[#allocation8 + $0x1b0] sm:$0xff]
        %v456 = vld [vmem:[#allocation8 + $0x1b8] sm:$0xff]
        %v457 = vld [vmem:[#allocation8 + $0x1c0] sm:$0xff]
        %v458 = vld [vmem:[#allocation8 + $0x1c8] sm:$0xff]
        %v459 = vld [vmem:[#allocation8 + $0x1d0] sm:$0xff]
        %v460 = vld [vmem:[#allocation8 + $0x1d8] sm:$0xff]
        %v461 = vld [vmem:[#allocation8 + $0x1e0] sm:$0xff]
        %v462 = vld [vmem:[#allocation8 + $0x1e8] sm:$0xff]
        %v463 = vld [vmem:[#allocation8 + $0x1f0] sm:$0xff]
        %v464 = vld [vmem:[#allocation8 + $0x1f8] sm:$0xff]
        %v465 = vld [vmem:[#allocation9] sm:$0xff]
        %v466 = vld [vmem:[#allocation9 + $0x8] sm:$0xff]
        %v467 = vld [vmem:[#allocation9 + $0x10] sm:$0xff]
        %v468 = vld [vmem:[#allocation9 + $0x18] sm:$0xff]
        %v469 = vld [vmem:[#allocation9 + $0x20] sm:$0xff]
        %v470 = vld [vmem:[#allocation9 + $0x28] sm:$0xff]
        %v471 = vld [vmem:[#allocation9 + $0x30] sm:$0xff]
        %v472 = vld [vmem:[#allocation9 + $0x38] sm:$0xff]
        %v473 = vld [vmem:[#allocation9 + $0x40] sm:$0xff]
        %v474 = vld [vmem:[#allocation9 + $0x48] sm:$0xff]
        %v475 = vld [vmem:[#allocation9 + $0x50] sm:$0xff]
        %v476 = vld [vmem:[#allocation9 + $0x58] sm:$0xff]
        %v477 = vld [vmem:[#allocation9 + $0x60] sm:$0xff]
        %v478 = vld [vmem:[#allocation9 + $0x68] sm:$0xff]
        %v479 = vld [vmem:[#allocation9 + $0x70] sm:$0xff]
        %v480 = vld [vmem:[#allocation9 + $0x78] sm:$0xff]
        %v481 = vld [vmem:[#allocation9 + $0x80] sm:$0xff]
        %v482 = vld [vmem:[#allocation9 + $0x88] sm:$0xff]
        %v483 = vld [vmem:[#allocation9 + $0x90] sm:$0xff]
        %v484 = vld [vmem:[#allocation9 + $0x98] sm:$0xff]
        %v485 = vld [vmem:[#allocation9 + $0xa0] sm:$0xff]
        %v486 = vld [vmem:[#allocation9 + $0xa8] sm:$0xff]
        %v487 = vld [vmem:[#allocation9 + $0xb0] sm:$0xff]
        %v488 = vld [vmem:[#allocation9 + $0xb8] sm:$0xff]
        %v489 = vld [vmem:[#allocation9 + $0xc0] sm:$0xff]
        %v490 = vld [vmem:[#allocation9 + $0xc8] sm:$0xff]
        %v491 = vld [vmem:[#allocation9 + $0xd0] sm:$0xff]
        %v492 = vld [vmem:[#allocation9 + $0xd8] sm:$0xff]
        %v493 = vld [vmem:[#allocation9 + $0xe0] sm:$0xff]
        %v494 = vld [vmem:[#allocation9 + $0xe8] sm:$0xff]
        %v495 = vld [vmem:[#allocation9 + $0xf0] sm:$0xff]
        %v496 = vld [vmem:[#allocation9 + $0xf8] sm:$0xff]
        %v497 = vld [vmem:[#allocation9 + $0x100] sm:$0xff]
        %v498 = vld [vmem:[#allocation9 + $0x108] sm:$0xff]
        %v499 = vld [vmem:[#allocation9 + $0x110] sm:$0xff]
        %v500 = vld [vmem:[#allocation9 + $0x118] sm:$0xff]
        %v501 = vld [vmem:[#allocation9 + $0x120] sm:$0xff]
        %v502 = vld [vmem:[#allocation9 + $0x128] sm:$0xff]
        %v503 = vld [vmem:[#allocation9 + $0x130] sm:$0xff]
        %v504 = vld [vmem:[#allocation9 + $0x138] sm:$0xff]
        %v505 = vld [vmem:[#allocation9 + $0x140] sm:$0xff]
        %v506 = vld [vmem:[#allocation9 + $0x148] sm:$0xff]
        %v507 = vld [vmem:[#allocation9 + $0x150] sm:$0xff]
        %v508 = vld [vmem:[#allocation9 + $0x158] sm:$0xff]
        %v509 = vld [vmem:[#allocation9 + $0x160] sm:$0xff]
        %v510 = vld [vmem:[#allocation9 + $0x168] sm:$0xff]
        %v511 = vld [vmem:[#allocation9 + $0x170] sm:$0xff]
        %v512 = vld [vmem:[#allocation9 + $0x178] sm:$0xff]
        %v513 = vld [vmem:[#allocation9 + $0x180] sm:$0xff]
        %v514 = vld [vmem:[#allocation9 + $0x188] sm:$0xff]
        %v515 = vld [vmem:[#allocation9 + $0x190] sm:$0xff]
        %v516 = vld [vmem:[#allocation9 + $0x198] sm:$0xff]
        %v517 = vld [vmem:[#allocation9 + $0x1a0] sm:$0xff]
        %v518 = vld [vmem:[#allocation9 + $0x1a8] sm:$0xff]
        %v519 = vld [vmem:[#allocation9 + $0x1b0] sm:$0xff]
        %v520 = vld [vmem:[#allocation9 + $0x1b8] sm:$0xff]
        %v521 = vld [vmem:[#allocation9 + $0x1c0] sm:$0xff]
        %v522 = vld [vmem:[#allocation9 + $0x1c8] sm:$0xff]
        %v523 = vld [vmem:[#allocation9 + $0x1d0] sm:$0xff]
        %v524 = vld [vmem:[#allocation9 + $0x1d8] sm:$0xff]
        %v525 = vld [vmem:[#allocation9 + $0x1e0] sm:$0xff]
        %v526 = vld [vmem:[#allocation9 + $0x1e8] sm:$0xff]
        %v527 = vld [vmem:[#allocation9 + $0x1f0] sm:$0xff]
        %v528 = vld [vmem:[#allocation9 + $0x1f8] sm:$0xff]
        %v529 = vld [vmem:[#allocation11] sm:$0xff]
        %v530 = vld [vmem:[#allocation11 + $0x8] sm:$0xff]
        %v531 = vld [vmem:[#allocation11 + $0x10] sm:$0xff]
        %v532 = vld [vmem:[#allocation11 + $0x18] sm:$0xff]
        %v533 = vld [vmem:[#allocation11 + $0x20] sm:$0xf]
        %v534 = vld [vmem:[#allocation11 + $0x28] sm:$0xf]
        %v535 = vld [vmem:[#allocation11 + $0x30] sm:$0xf]
        %v536 = vld [vmem:[#allocation11 + $0x38] sm:$0xf]
        %v537 = vld [vmem:[%s5] sm:$0x1f]
        %v538 = vld [vmem:[%s6] sm:$0xff]
        %v539 = vld [vmem:[%s6 + $0x8] sm:$0xff]
        %v540 = vld [vmem:[%s6 + $0x10] sm:$0xff]
        %v541 = vld [vmem:[%s314] sm:$0xff]
        %v542 = vld [vmem:[%s314 + $0x8] sm:$0xff]
        %v543 = vld [vmem:[%s314 + $0x10] sm:$0xff]
        %v544 = vld [vmem:[%s314 + $0x18] sm:$0xff]
        %v545 = vld [vmem:[%s314 + $0x20] sm:$0xff]
        %v546 = vld [vmem:[%s314 + $0x28] sm:$0xff]
        %547 = vadd.xlane.f32.xlu0 %v541
        %v548 = vpop.xlane.xlu0 %547
        %549 = vadd.xlane.f32.xlu0 %v542
        %v550 = vpop.xlane.xlu0 %549
        %551 = vadd.xlane.f32.xlu0 %v543
        %v552 = vpop.xlane.xlu0 %551
        %553 = vadd.xlane.f32.xlu0 %v544
        %v554 = vpop.xlane.xlu0 %553
        %555 = vadd.xlane.f32.xlu0 %v545
        %v556 = vpop.xlane.xlu0 %555
        %557 = vadd.xlane.f32.xlu0 %v546
        %v558 = vpop.xlane.xlu0 %557
        %v559 = vrcp.pop 128.0
        %v560 = vmul.f32 128.0, %v559
        %v561 = vsub.f32 1.0, %v560
        %v562 = vmul.f32 %v559, %v561
        %v563 = vadd.f32 %v559, %v562
        %vm564 = vweird.f32 %v559
        %v565 = vsel %vm564, %v559, %v563
        %v566 = vmul.f32 %v548, %v565
        %v567 = vmul.f32 %v550, %v565
        %v568 = vmul.f32 %v552, %v565
        %v569 = vmul.f32 %v554, %v565
        %v570 = vmul.f32 %v556, %v565
        %v571 = vmul.f32 %v558, %v565
        %v572 = vsub.f32 %v541, %v566
        %v573 = vsub.f32 %v542, %v567
        %v574 = vsub.f32 %v543, %v568
        %v575 = vsub.f32 %v544, %v569
        %v576 = vsub.f32 %v545, %v570
        %v577 = vsub.f32 %v546, %v571
        %v578 = vmul.f32 %v572, %v572
        %v579 = vmul.f32 %v573, %v573
        %v580 = vmul.f32 %v574, %v574
        %v581 = vmul.f32 %v575, %v575
        %v582 = vmul.f32 %v576, %v576
        %v583 = vmul.f32 %v577, %v577
        %584 = vadd.xlane.f32.xlu0 %v578
        %v585 = vpop.xlane.xlu0 %584
        %586 = vadd.xlane.f32.xlu0 %v579
        %v587 = vpop.xlane.xlu0 %586
        %588 = vadd.xlane.f32.xlu0 %v580
        %v589 = vpop.xlane.xlu0 %588
        %590 = vadd.xlane.f32.xlu0 %v581
        %v591 = vpop.xlane.xlu0 %590
        %592 = vadd.xlane.f32.xlu0 %v582
        %v593 = vpop.xlane.xlu0 %592
        %594 = vadd.xlane.f32.xlu0 %v583
        %v595 = vpop.xlane.xlu0 %594
        %v596 = vmul.f32 %v585, %v565
        %v597 = vmul.f32 %v587, %v565
        %v598 = vmul.f32 %v589, %v565
        %v599 = vmul.f32 %v591, %v565
        %v600 = vmul.f32 %v593, %v565
        %v601 = vmul.f32 %v595, %v565
        %v602 = vadd.f32 %v596, 1e-05
        %v603 = vadd.f32 %v597, 1e-05
        %v604 = vadd.f32 %v598, 1e-05
        %v605 = vadd.f32 %v599, 1e-05
        %v606 = vadd.f32 %v600, 1e-05
        %v607 = vadd.f32 %v601, 1e-05
        %v608 = vrsqrt.pop %v602
        %v609 = vmul.f32 %v608, %v602
        %v610 = vmul.f32 %v609, %v608
        %v611 = vmul.f32 0.5, %v610
        %v612 = vsub.f32 1.5, %v611
        %v613 = vmul.f32 %v608, %v612
        %vm614 = vweird.f32 %v602
        %vm615 = vweird.f32 %v608
        %vm616 = vmor %vm614, %vm615
        %v617 = vsel %vm616, %v608, %v613
        %v618 = vrsqrt.pop %v603
        %v619 = vmul.f32 %v618, %v603
        %v620 = vmul.f32 %v619, %v618
        %v621 = vmul.f32 0.5, %v620
        %v622 = vsub.f32 1.5, %v621
        %v623 = vmul.f32 %v618, %v622
        %vm624 = vweird.f32 %v603
        %vm625 = vweird.f32 %v618
        %vm626 = vmor %vm624, %vm625
        %v627 = vsel %vm626, %v618, %v623
        %v628 = vrsqrt.pop %v604
        %v629 = vmul.f32 %v628, %v604
        %v630 = vmul.f32 %v629, %v628
        %v631 = vmul.f32 0.5, %v630
        %v632 = vsub.f32 1.5, %v631
        %v633 = vmul.f32 %v628, %v632
        %vm634 = vweird.f32 %v604
        %vm635 = vweird.f32 %v628
        %vm636 = vmor %vm634, %vm635
        %v637 = vsel %vm636, %v628, %v633
        %v638 = vrsqrt.pop %v605
        %v639 = vmul.f32 %v638, %v605
        %v640 = vmul.f32 %v639, %v638
        %v641 = vmul.f32 0.5, %v640
        %v642 = vsub.f32 1.5, %v641
        %v643 = vmul.f32 %v638, %v642
        %vm644 = vweird.f32 %v605
        %vm645 = vweird.f32 %v638
        %vm646 = vmor %vm644, %vm645
        %v647 = vsel %vm646, %v638, %v643
        %v648 = vrsqrt.pop %v606
        %v649 = vmul.f32 %v648, %v606
        %v650 = vmul.f32 %v649, %v648
        %v651 = vmul.f32 0.5, %v650
        %v652 = vsub.f32 1.5, %v651
        %v653 = vmul.f32 %v648, %v652
        %vm654 = vweird.f32 %v606
        %vm655 = vweird.f32 %v648
        %vm656 = vmor %vm654, %vm655
        %v657 = vsel %vm656, %v648, %v653
        %v658 = vrsqrt.pop %v607
        %v659 = vmul.f32 %v658, %v607
        %v660 = vmul.f32 %v659, %v658
        %v661 = vmul.f32 0.5, %v660
        %v662 = vsub.f32 1.5, %v661
        %v663 = vmul.f32 %v658, %v662
        %vm664 = vweird.f32 %v607
        %vm665 = vweird.f32 %v658
        %vm666 = vmor %vm664, %vm665
        %v667 = vsel %vm666, %v658, %v663
        %v668 = vmul.f32 %v572, %v617
        %v669 = vmul.f32 %v573, %v627
        %v670 = vmul.f32 %v574, %v637
        %v671 = vmul.f32 %v575, %v647
        %v672 = vmul.f32 %v576, %v657
        %v673 = vmul.f32 %v577, %v667
        %v674 = vperm.slane %v537, 0
        %v675 = vmul.f32 %v668, %v674
        %v676 = vmul.f32 %v669, %v674
        %v677 = vmul.f32 %v670, %v674
        %v678 = vmul.f32 %v671, %v674
        %v679 = vmul.f32 %v672, %v674
        %v680 = vmul.f32 %v673, %v674
        %v681 = vperm.slane %v537, 1
        %v682 = vadd.f32 %v675, %v681
        %v683 = vadd.f32 %v676, %v681
        %v684 = vadd.f32 %v677, %v681
        %v685 = vadd.f32 %v678, %v681
        %v686 = vadd.f32 %v679, %v681
        %v687 = vadd.f32 %v680, %v681
        %v688 = vpack.c.bf16 %v683, %v682
        %v689 = vpack.c.bf16 %v685, %v684
        %v690 = vpack.c.bf16 %v687, %v686
        %v723 = vunpack.c.l.b16 %v369
        %v724 = vunpack.c.h.b16 %v369
        %v725 = vunpack.c.l.b16 %v370
        %v726 = vunpack.c.l.b16 %v371
        %v727 = vunpack.c.h.b16 %v371
        %v728 = vunpack.c.l.b16 %v372
        %v729 = vunpack.c.l.b16 %v373
        %v730 = vunpack.c.h.b16 %v373
        %v731 = vunpack.c.l.b16 %v374
        %v732 = vunpack.c.l.b16 %v375
        %v733 = vunpack.c.h.b16 %v375
        %v734 = vunpack.c.l.b16 %v376
        %v735 = vunpack.c.l.b16 %v377
        %v736 = vunpack.c.h.b16 %v377
        %v737 = vunpack.c.l.b16 %v378
        %v738 = vunpack.c.l.b16 %v379
        %v739 = vunpack.c.h.b16 %v379
        %v740 = vunpack.c.l.b16 %v380
        %v741 = vunpack.c.l.b16 %v381
        %v742 = vunpack.c.h.b16 %v381
        %v743 = vunpack.c.l.b16 %v382
        %v744 = vunpack.c.l.b16 %v383
        %v745 = vunpack.c.h.b16 %v383
        %v746 = vunpack.c.l.b16 %v384
        %v747 = vunpack.c.l.b16 %v385
        %v748 = vunpack.c.h.b16 %v385
        %v749 = vunpack.c.l.b16 %v386
        %v750 = vunpack.c.l.b16 %v387
        %v751 = vunpack.c.h.b16 %v387
        %v752 = vunpack.c.l.b16 %v388
        %v753 = vunpack.c.l.b16 %v389
        %v754 = vunpack.c.h.b16 %v389
        %v755 = vunpack.c.l.b16 %v390
        %v756 = vunpack.c.l.b16 %v391
        %v757 = vunpack.c.h.b16 %v391
        %v758 = vunpack.c.l.b16 %v392
        %v759 = vunpack.c.l.b16 %v393
        %v760 = vunpack.c.h.b16 %v393
        %v761 = vunpack.c.l.b16 %v394
        %v762 = vunpack.c.l.b16 %v395
        %v763 = vunpack.c.h.b16 %v395
        %v764 = vunpack.c.l.b16 %v396
        %v765 = vunpack.c.l.b16 %v397
        %v766 = vunpack.c.h.b16 %v397
        %v767 = vunpack.c.l.b16 %v398
        %v768 = vunpack.c.l.b16 %v399
        %v769 = vunpack.c.h.b16 %v399
        %v770 = vunpack.c.l.b16 %v400
        %v771 = vpack.c.b16 %v726, %v723
        %v772 = vpack.c.b16 %v727, %v724
        %v773 = vpack.c.b16 %v728, %v725
        %v774 = vpack.c.b16 %v732, %v729
        %v775 = vpack.c.b16 %v733, %v730
        %v776 = vpack.c.b16 %v734, %v731
        %v777 = vpack.c.b16 %v738, %v735
        %v778 = vpack.c.b16 %v739, %v736
        %v779 = vpack.c.b16 %v740, %v737
        %v780 = vpack.c.b16 %v744, %v741
        %v781 = vpack.c.b16 %v745, %v742
        %v782 = vpack.c.b16 %v746, %v743
        %v783 = vpack.c.b16 %v750, %v747
        %v784 = vpack.c.b16 %v751, %v748
        %v785 = vpack.c.b16 %v752, %v749
        %v786 = vpack.c.b16 %v756, %v753
        %v787 = vpack.c.b16 %v757, %v754
        %v788 = vpack.c.b16 %v758, %v755
        %v789 = vpack.c.b16 %v762, %v759
        %v790 = vpack.c.b16 %v763, %v760
        %v791 = vpack.c.b16 %v764, %v761
        %v792 = vpack.c.b16 %v768, %v765
        %v793 = vpack.c.b16 %v769, %v766
        %v794 = vpack.c.b16 %v770, %v767
        %819 = vmatpush.bf16.msra.mxu0 %v792
        %820 = vmatpush.bf16.msra.mxu0 %v789
        %821 = vmatpush.bf16.msra.mxu0 %v786
        %822 = vmatpush.bf16.msra.mxu0 %v783
        %823 = vmatpush.bf16.msra.mxu0 %v780
        %824 = vmatpush.bf16.msra.mxu0 %v777
        %825 = vmatpush.bf16.msra.mxu0 %v774
        %826 = vmatpush.bf16.msra.mxu0 %v771
        %827 = vmatmul.bf16.gmra.mxu0 %v688
        %v828 = vpop.f32.mrf.mxu0
        %v829 = vadd.f32 0.0, %v828
        %v830 = vpop.f32.mrf.mxu0
        %v831 = vadd.f32 0.0, %v830
        %832 = vmatmul.bf16.gmra.mxu0 %v689
        %v833 = vpop.f32.mrf.mxu0
        %v834 = vadd.f32 0.0, %v833
        %v835 = vpop.f32.mrf.mxu0
        %v836 = vadd.f32 0.0, %v835
        %837 = vmatmul.bf16.gmra.mxu0 %v690
        %v838 = vpop.f32.mrf.mxu0
        %v839 = vadd.f32 0.0, %v838
        %v840 = vpop.f32.mrf.mxu0
        %v841 = vadd.f32 0.0, %v840
        %842 = vdwg.mxu0
        %843 = vmatpush.bf16.msra.mxu0 %v793
        %844 = vmatpush.bf16.msra.mxu0 %v790
        %845 = vmatpush.bf16.msra.mxu0 %v787
        %846 = vmatpush.bf16.msra.mxu0 %v784
        %847 = vmatpush.bf16.msra.mxu0 %v781
        %848 = vmatpush.bf16.msra.mxu0 %v778
        %849 = vmatpush.bf16.msra.mxu0 %v775
        %850 = vmatpush.bf16.msra.mxu0 %v772
        %851 = vmatmul.bf16.gmra.mxu0 %v688
        %v852 = vpop.f32.mrf.mxu0
        %v853 = vadd.f32 0.0, %v852
        %v854 = vpop.f32.mrf.mxu0
        %v855 = vadd.f32 0.0, %v854
        %856 = vmatmul.bf16.gmra.mxu0 %v689
        %v857 = vpop.f32.mrf.mxu0
        %v858 = vadd.f32 0.0, %v857
        %v859 = vpop.f32.mrf.mxu0
        %v860 = vadd.f32 0.0, %v859
        %861 = vmatmul.bf16.gmra.mxu0 %v690
        %v862 = vpop.f32.mrf.mxu0
        %v863 = vadd.f32 0.0, %v862
        %v864 = vpop.f32.mrf.mxu0
        %v865 = vadd.f32 0.0, %v864
        %866 = vdwg.mxu0
        %867 = vmatpush.bf16.msra.mxu0 %v794
        %868 = vmatpush.bf16.msra.mxu0 %v791
        %869 = vmatpush.bf16.msra.mxu0 %v788
        %870 = vmatpush.bf16.msra.mxu0 %v785
        %871 = vmatpush.bf16.msra.mxu0 %v782
        %872 = vmatpush.bf16.msra.mxu0 %v779
        %873 = vmatpush.bf16.msra.mxu0 %v776
        %874 = vmatpush.bf16.msra.mxu0 %v773
        %875 = vmatmul.bf16.gmra.mxu0 %v688
        %v876 = vpop.f32.mrf.mxu0
        %v877 = vadd.f32 0.0, %v876
        %v878 = vpop.f32.mrf.mxu0
        %v879 = vadd.f32 0.0, %v878
        %880 = vmatmul.bf16.gmra.mxu0 %v689
        %v881 = vpop.f32.mrf.mxu0
        %v882 = vadd.f32 0.0, %v881
        %v883 = vpop.f32.mrf.mxu0
        %v884 = vadd.f32 0.0, %v883
        %885 = vmatmul.bf16.gmra.mxu0 %v690
        %v886 = vpop.f32.mrf.mxu0
        %v887 = vadd.f32 0.0, %v886
        %v888 = vpop.f32.mrf.mxu0
        %v889 = vadd.f32 0.0, %v888
        %890 = vdwg.mxu0
        %v891 = vlaneseq
        %v892 = vand.u32 %v891, 127
        %vm893 = vcmp.lt.s32.totalorder %v892, 17
        %v894 = vpack.c.bf16 %v829, %v829
        %v895 = vpack.c.bf16 %v831, %v831
        %v896 = vpack.c.bf16 %v834, %v834
        %v897 = vpack.c.bf16 %v836, %v836
        %v898 = vpack.c.bf16 %v839, %v839
        %v899 = vpack.c.bf16 %v841, %v841
        %v900 = vpack.c.bf16 %v853, %v853
        %v901 = vpack.c.bf16 %v855, %v855
        %v902 = vpack.c.bf16 %v858, %v858
        %v903 = vpack.c.bf16 %v860, %v860
        %v904 = vpack.c.bf16 %v863, %v863
        %v905 = vpack.c.bf16 %v865, %v865
        %v906 = vpack.c.bf16 %v877, %v877
        %v907 = vpack.c.bf16 %v879, %v879
        %v908 = vpack.c.bf16 %v882, %v882
        %v909 = vpack.c.bf16 %v884, %v884
        %v910 = vpack.c.bf16 %v887, %v887
        %v911 = vpack.c.bf16 %v889, %v889
        %v915 = vunpack.c.l.b16 %v894
        %v916 = vunpack.c.l.b16 %v895
        %v917 = vunpack.c.l.b16 %v896
        %v918 = vpack.c.b16 %v916, %v915
        %v919 = vpack.c.b16 %v917, %v917
        %v923 = vunpack.c.l.b16 %v900
        %v924 = vunpack.c.l.b16 %v901
        %v925 = vunpack.c.l.b16 %v902
        %v926 = vpack.c.b16 %v924, %v923
        %v927 = vpack.c.b16 %v925, %v925
        %vm928 = vcmask 261120
        %v930 = vsel %vm928, %v918, 0
        %v933 = vsel %vm928, %v919, 0
        %v936 = vsel %vm928, %v926, 0
        %v939 = vsel %vm928, %v927, 0
        %941 = vmatpush.bf16.xpose.msra.mxu0 0
        %942 = vmatpush.bf16.xpose.msra.mxu0 0
        %943 = vmatpush.bf16.xpose.msra.mxu0 0
        %944 = vmatpush.bf16.xpose.msra.mxu0 0
        %945 = vmatpush.bf16.xpose.msra.mxu0 0
        %946 = vmatpush.bf16.xpose.msra.mxu0 0
        %947 = vmatpush.bf16.xpose.msra.mxu0 %v939
        %948 = vmatpush.bf16.xpose.msra.mxu0 %v936
        %949 = vmatmul.bf16.gmra.mxu0 %v930
        %v950 = vpop.f32.mrf.mxu0
        %v951 = vadd.f32 0.0, %v950
        %v952 = vpop.f32.mrf.mxu0
        %v953 = vadd.f32 0.0, %v952
        %954 = vmatmul.bf16.gmra.mxu0 %v933
        %v955 = vpop.f32.mrf.mxu0
        %v956 = vadd.f32 0.0, %v955
        %v957 = vpop.f32.mrf.mxu0
        %958 = vdwg.mxu0
        %v962 = vunpack.c.l.b16 %v897
        %v963 = vunpack.c.l.b16 %v898
        %v964 = vunpack.c.l.b16 %v899
        %v965 = vpack.c.b16 %v963, %v962
        %v966 = vpack.c.b16 %v964, %v964
        %v970 = vunpack.c.l.b16 %v903
        %v971 = vunpack.c.l.b16 %v904
        %v972 = vunpack.c.l.b16 %v905
        %v973 = vpack.c.b16 %v971, %v970
        %v974 = vpack.c.b16 %v972, %v972
        %v976 = vsel %vm928, %v965, 0
        %v979 = vsel %vm928, %v966, 0
        %v982 = vsel %vm928, %v973, 0
        %v985 = vsel %vm928, %v974, 0
        %987 = vmatpush.bf16.xpose.msra.mxu0 0
        %988 = vmatpush.bf16.xpose.msra.mxu0 0
        %989 = vmatpush.bf16.xpose.msra.mxu0 0
        %990 = vmatpush.bf16.xpose.msra.mxu0 0
        %991 = vmatpush.bf16.xpose.msra.mxu0 0
        %992 = vmatpush.bf16.xpose.msra.mxu0 0
        %993 = vmatpush.bf16.xpose.msra.mxu0 %v985
        %994 = vmatpush.bf16.xpose.msra.mxu0 %v982
        %995 = vmatmul.bf16.gmra.mxu0 %v976
        %v996 = vpop.f32.mrf.mxu0
        %v997 = vadd.f32 0.0, %v996
        %v998 = vpop.f32.mrf.mxu0
        %v999 = vadd.f32 0.0, %v998
        %1000 = vmatmul.bf16.gmra.mxu0 %v979
        %v1001 = vpop.f32.mrf.mxu0
        %v1002 = vadd.f32 0.0, %v1001
        %v1003 = vpop.f32.mrf.mxu0
        %1004 = vdwg.mxu0
        %v1005 = vsel %vm893, 1, 0
        %vm1006 = vcmp.eq.s32.totalorder %v1005, 1
        %v1007 = vsel %vm1006, %v951, -1e+30
        %v1008 = vsel %vm1006, %v953, -1e+30
        %v1009 = vsel %vm1006, %v956, -1e+30
        %v1010 = vsel %vm1006, %v997, -1e+30
        %v1011 = vsel %vm1006, %v999, -1e+30
        %v1012 = vsel %vm1006, %v1002, -1e+30
        %vm1013 = vcmask 195584
        %v1014 = vsel %vm1013, %v1007, -inf
        %1015 = vmax.xlane.f32.xlu0 %v1014
        %v1016 = vpop.xlane.xlu0 %1015
        %v1017 = vsel %vm1013, %v1008, -inf
        %1018 = vmax.xlane.f32.xlu0 %v1017
        %v1019 = vpop.xlane.xlu0 %1018
        %v1020 = vsel %vm1013, %v1009, -inf
        %1021 = vmax.xlane.f32.xlu0 %v1020
        %v1022 = vpop.xlane.xlu0 %1021
        %v1023 = vsel %vm1013, %v1010, -inf
        %1024 = vmax.xlane.f32.xlu0 %v1023
        %v1025 = vpop.xlane.xlu0 %1024
        %v1026 = vsel %vm1013, %v1011, -inf
        %1027 = vmax.xlane.f32.xlu0 %v1026
        %v1028 = vpop.xlane.xlu0 %1027
        %v1029 = vsel %vm1013, %v1012, -inf
        %1030 = vmax.xlane.f32.xlu0 %v1029
        %v1031 = vpop.xlane.xlu0 %1030
        %v1032 = vsub.f32 %v1007, %v1016
        %v1033 = vsub.f32 %v1008, %v1019
        %v1034 = vsub.f32 %v1009, %v1022
        %v1035 = vsub.f32 %v1010, %v1025
        %v1036 = vsub.f32 %v1011, %v1028
        %v1037 = vsub.f32 %v1012, %v1031
        %v1038 = vmul.f32 %v1032, 1.442695
        %v1039 = vpow.pop %v1038
        %v1040 = vmul.f32 %v1033, 1.442695
        %v1041 = vpow.pop %v1040
        %v1042 = vmul.f32 %v1034, 1.442695
        %v1043 = vpow.pop %v1042
        %v1044 = vmul.f32 %v1035, 1.442695
        %v1045 = vpow.pop %v1044
        %v1046 = vmul.f32 %v1036, 1.442695
        %v1047 = vpow.pop %v1046
        %v1048 = vmul.f32 %v1037, 1.442695
        %v1049 = vpow.pop %v1048
        %v1050 = vsel %vm1013, %v1039, 0.0
        %1051 = vadd.xlane.f32.xlu0 %v1050
        %v1052 = vpop.xlane.xlu0 %1051
        %v1053 = vsel %vm1013, %v1041, 0.0
        %1054 = vadd.xlane.f32.xlu0 %v1053
        %v1055 = vpop.xlane.xlu0 %1054
        %v1056 = vsel %vm1013, %v1043, 0.0
        %1057 = vadd.xlane.f32.xlu0 %v1056
        %v1058 = vpop.xlane.xlu0 %1057
        %v1059 = vsel %vm1013, %v1045, 0.0
        %1060 = vadd.xlane.f32.xlu0 %v1059
        %v1061 = vpop.xlane.xlu0 %1060
        %v1062 = vsel %vm1013, %v1047, 0.0
        %1063 = vadd.xlane.f32.xlu0 %v1062
        %v1064 = vpop.xlane.xlu0 %1063
        %v1065 = vsel %vm1013, %v1049, 0.0
        %1066 = vadd.xlane.f32.xlu0 %v1065
        %v1067 = vpop.xlane.xlu0 %1066
        %v1068 = vrcp.pop %v1052
        %v1069 = vmul.f32 %v1052, %v1068
        %v1070 = vsub.f32 1.0, %v1069
        %v1071 = vmul.f32 %v1068, %v1070
        %v1072 = vadd.f32 %v1068, %v1071
        %vm1073 = vweird.f32 %v1052
        %vm1074 = vweird.f32 %v1068
        %vm1075 = vmor %vm1073, %vm1074
        %v1076 = vsel %vm1075, %v1068, %v1072
        %v1077 = vand.u32 2147483647, %v1052
        %vm1078 = vcmp.eq.f32.partialorder %v1077, 8.507059e+37
        %v1079 = vand.u32 %v1052, 2147483648
        %v1080 = vor.u32 1.1754944e-38, %v1079
        %v1081 = vsel %vm1078, %v1080, %v1076
        %v1082 = vmul.f32 %v1039, %v1081
        %v1083 = vrcp.pop %v1055
        %v1084 = vmul.f32 %v1055, %v1083
        %v1085 = vsub.f32 1.0, %v1084
        %v1086 = vmul.f32 %v1083, %v1085
        %v1087 = vadd.f32 %v1083, %v1086
        %vm1088 = vweird.f32 %v1055
        %vm1089 = vweird.f32 %v1083
        %vm1090 = vmor %vm1088, %vm1089
        %v1091 = vsel %vm1090, %v1083, %v1087
        %v1092 = vand.u32 2147483647, %v1055
        %vm1093 = vcmp.eq.f32.partialorder %v1092, 8.507059e+37
        %v1094 = vand.u32 %v1055, 2147483648
        %v1095 = vor.u32 1.1754944e-38, %v1094
        %v1096 = vsel %vm1093, %v1095, %v1091
        %v1097 = vmul.f32 %v1041, %v1096
        %v1098 = vrcp.pop %v1058
        %v1099 = vmul.f32 %v1058, %v1098
        %v1100 = vsub.f32 1.0, %v1099
        %v1101 = vmul.f32 %v1098, %v1100
        %v1102 = vadd.f32 %v1098, %v1101
        %vm1103 = vweird.f32 %v1058
        %vm1104 = vweird.f32 %v1098
        %vm1105 = vmor %vm1103, %vm1104
        %v1106 = vsel %vm1105, %v1098, %v1102
        %v1107 = vand.u32 2147483647, %v1058
        %vm1108 = vcmp.eq.f32.partialorder %v1107, 8.507059e+37
        %v1109 = vand.u32 %v1058, 2147483648
        %v1110 = vor.u32 1.1754944e-38, %v1109
        %v1111 = vsel %vm1108, %v1110, %v1106
        %v1112 = vmul.f32 %v1043, %v1111
        %v1113 = vrcp.pop %v1061
        %v1114 = vmul.f32 %v1061, %v1113
        %v1115 = vsub.f32 1.0, %v1114
        %v1116 = vmul.f32 %v1113, %v1115
        %v1117 = vadd.f32 %v1113, %v1116
        %vm1118 = vweird.f32 %v1061
        %vm1119 = vweird.f32 %v1113
        %vm1120 = vmor %vm1118, %vm1119
        %v1121 = vsel %vm1120, %v1113, %v1117
        %v1122 = vand.u32 2147483647, %v1061
        %vm1123 = vcmp.eq.f32.partialorder %v1122, 8.507059e+37
        %v1124 = vand.u32 %v1061, 2147483648
        %v1125 = vor.u32 1.1754944e-38, %v1124
        %v1126 = vsel %vm1123, %v1125, %v1121
        %v1127 = vmul.f32 %v1045, %v1126
        %v1128 = vrcp.pop %v1064
        %v1129 = vmul.f32 %v1064, %v1128
        %v1130 = vsub.f32 1.0, %v1129
        %v1131 = vmul.f32 %v1128, %v1130
        %v1132 = vadd.f32 %v1128, %v1131
        %vm1133 = vweird.f32 %v1064
        %vm1134 = vweird.f32 %v1128
        %vm1135 = vmor %vm1133, %vm1134
        %v1136 = vsel %vm1135, %v1128, %v1132
        %v1137 = vand.u32 2147483647, %v1064
        %vm1138 = vcmp.eq.f32.partialorder %v1137, 8.507059e+37
        %v1139 = vand.u32 %v1064, 2147483648
        %v1140 = vor.u32 1.1754944e-38, %v1139
        %v1141 = vsel %vm1138, %v1140, %v1136
        %v1142 = vmul.f32 %v1047, %v1141
        %v1143 = vrcp.pop %v1067
        %v1144 = vmul.f32 %v1067, %v1143
        %v1145 = vsub.f32 1.0, %v1144
        %v1146 = vmul.f32 %v1143, %v1145
        %v1147 = vadd.f32 %v1143, %v1146
        %vm1148 = vweird.f32 %v1067
        %vm1149 = vweird.f32 %v1143
        %vm1150 = vmor %vm1148, %vm1149
        %v1151 = vsel %vm1150, %v1143, %v1147
        %v1152 = vand.u32 2147483647, %v1067
        %vm1153 = vcmp.eq.f32.partialorder %v1152, 8.507059e+37
        %v1154 = vand.u32 %v1067, 2147483648
        %v1155 = vor.u32 1.1754944e-38, %v1154
        %v1156 = vsel %vm1153, %v1155, %v1151
        %v1157 = vmul.f32 %v1049, %v1156
        %v1158 = vpack.c.bf16 %v1082, %v1082
        %v1159 = vpack.c.bf16 %v1097, %v1097
        %v1160 = vpack.c.bf16 %v1112, %v1112
        %v1161 = vpack.c.bf16 %v1127, %v1127
        %v1162 = vpack.c.bf16 %v1142, %v1142
        %v1163 = vpack.c.bf16 %v1157, %v1157
        %v1167 = vunpack.c.l.b16 %v1158
        %v1168 = vunpack.c.l.b16 %v1159
        %v1169 = vunpack.c.l.b16 %v1160
        %v1170 = vpack.c.b16 %v1168, %v1167
        %v1171 = vpack.c.b16 %v1169, %v1169
        %v1175 = vunpack.c.l.b16 %v906
        %v1176 = vunpack.c.l.b16 %v907
        %v1177 = vunpack.c.l.b16 %v908
        %v1178 = vpack.c.b16 %v1176, %v1175
        %v1179 = vpack.c.b16 %v1177, %v1177
        %v1182 = vsel %vm1013, %v1170, 0
        %v1185 = vsel %vm1013, %v1171, 0
        %vm1187 = vcmask 1043456
        %v1189 = vsel %vm1187, %v1179, 0
        %1191 = vmatpush.bf16.msra.mxu0 0
        %1192 = vmatpush.bf16.msra.mxu0 0
        %1193 = vmatpush.bf16.msra.mxu0 0
        %1194 = vmatpush.bf16.msra.mxu0 0
        %1195 = vmatpush.bf16.msra.mxu0 0
        %1196 = vmatpush.bf16.msra.mxu0 0
        %1197 = vmatpush.bf16.msra.mxu0 %v1189
        %1198 = vmatpush.bf16.msra.mxu0 %v1178
        %1199 = vmatmul.bf16.gmra.mxu0 %v1182
        %v1200 = vpop.f32.mrf.mxu0
        %v1201 = vadd.f32 0.0, %v1200
        %v1202 = vpop.f32.mrf.mxu0
        %v1203 = vadd.f32 0.0, %v1202
        %1204 = vmatmul.bf16.gmra.mxu0 %v1185
        %v1205 = vpop.f32.mrf.mxu0
        %v1206 = vadd.f32 0.0, %v1205
        %v1207 = vpop.f32.mrf.mxu0
        %1208 = vdwg.mxu0
        %v1212 = vunpack.c.l.b16 %v1161
        %v1213 = vunpack.c.l.b16 %v1162
        %v1214 = vunpack.c.l.b16 %v1163
        %v1215 = vpack.c.b16 %v1213, %v1212
        %v1216 = vpack.c.b16 %v1214, %v1214
        %v1220 = vunpack.c.l.b16 %v909
        %v1221 = vunpack.c.l.b16 %v910
        %v1222 = vunpack.c.l.b16 %v911
        %v1223 = vpack.c.b16 %v1221, %v1220
        %v1224 = vpack.c.b16 %v1222, %v1222
        %v1227 = vsel %vm1013, %v1215, 0
        %v1230 = vsel %vm1013, %v1216, 0
        %v1233 = vsel %vm1187, %v1224, 0
        %1235 = vmatpush.bf16.msra.mxu0 0
        %1236 = vmatpush.bf16.msra.mxu0 0
        %1237 = vmatpush.bf16.msra.mxu0 0
        %1238 = vmatpush.bf16.msra.mxu0 0
        %1239 = vmatpush.bf16.msra.mxu0 0
        %1240 = vmatpush.bf16.msra.mxu0 0
        %1241 = vmatpush.bf16.msra.mxu0 %v1233
        %1242 = vmatpush.bf16.msra.mxu0 %v1223
        %1243 = vmatmul.bf16.gmra.mxu0 %v1227
        %v1244 = vpop.f32.mrf.mxu0
        %v1245 = vadd.f32 0.0, %v1244
        %v1246 = vpop.f32.mrf.mxu0
        %v1247 = vadd.f32 0.0, %v1246
        %1248 = vmatmul.bf16.gmra.mxu0 %v1230
        %v1249 = vpop.f32.mrf.mxu0
        %v1250 = vadd.f32 0.0, %v1249
        %v1251 = vpop.f32.mrf.mxu0
        %1252 = vdwg.mxu0
        %v1253 = vpack.c.bf16 %v1201, %v1201
        %v1254 = vpack.c.bf16 %v1203, %v1203
        %v1255 = vpack.c.bf16 %v1206, %v1206
        %v1256 = vpack.c.bf16 %v1245, %v1245
        %v1257 = vpack.c.bf16 %v1247, %v1247
        %v1258 = vpack.c.bf16 %v1250, %v1250
        %vm1259 = vcmask 257024
        %1260 = vst.msk [vmem:[#allocation2] sm:$0xf] %vm1259, %v1253
        %1261 = vst.msk [vmem:[#allocation2 + $0x4] sm:$0xf] %vm1259, %v1254
        %1262 = vst.msk [vmem:[#allocation2 + $0x8] sm:$0xf] %vm1259, %v1255
        %1263 = vst.msk [vmem:[#allocation2 + $0xc] sm:$0xf] %vm1259, %v1256
        %1264 = vst.msk [vmem:[#allocation2 + $0x10] sm:$0xf] %vm1259, %v1257
        %1265 = vst.msk [vmem:[#allocation2 + $0x14] sm:$0xf] %vm1259, %v1258
        %1266 = vrot.lane.b32.xlu0 %v918, 96
        %v1267 = vpop.permute.xlu0 %1266
        %1268 = vrot.lane.b32.xlu0 %v919, 96
        %v1269 = vpop.permute.xlu0 %1268
        %1270 = vrot.lane.b32.xlu0 %v926, 96
        %v1271 = vpop.permute.xlu0 %1270
        %1272 = vrot.lane.b32.xlu0 %v927, 96
        %v1273 = vpop.permute.xlu0 %1272
        %v1275 = vsel %vm928, %v1267, 0
        %v1278 = vsel %vm928, %v1269, 0
        %v1281 = vsel %vm928, %v1271, 0
        %v1284 = vsel %vm928, %v1273, 0
        %1286 = vmatpush.bf16.xpose.msra.mxu0 0
        %1287 = vmatpush.bf16.xpose.msra.mxu0 0
        %1288 = vmatpush.bf16.xpose.msra.mxu0 0
        %1289 = vmatpush.bf16.xpose.msra.mxu0 0
        %1290 = vmatpush.bf16.xpose.msra.mxu0 0
        %1291 = vmatpush.bf16.xpose.msra.mxu0 0
        %1292 = vmatpush.bf16.xpose.msra.mxu0 %v1284
        %1293 = vmatpush.bf16.xpose.msra.mxu0 %v1281
        %1294 = vmatmul.bf16.gmra.mxu0 %v1275
        %v1295 = vpop.f32.mrf.mxu0
        %v1296 = vadd.f32 0.0, %v1295
        %v1297 = vpop.f32.mrf.mxu0
        %v1298 = vadd.f32 0.0, %v1297
        %1299 = vmatmul.bf16.gmra.mxu0 %v1278
        %v1300 = vpop.f32.mrf.mxu0
        %v1301 = vadd.f32 0.0, %v1300
        %v1302 = vpop.f32.mrf.mxu0
        %1303 = vdwg.mxu0
        %1304 = vrot.lane.b32.xlu0 %v965, 96
        %v1305 = vpop.permute.xlu0 %1304
        %1306 = vrot.lane.b32.xlu0 %v966, 96
        %v1307 = vpop.permute.xlu0 %1306
        %1308 = vrot.lane.b32.xlu0 %v973, 96
        %v1309 = vpop.permute.xlu0 %1308
        %1310 = vrot.lane.b32.xlu0 %v974, 96
        %v1311 = vpop.permute.xlu0 %1310
        %v1313 = vsel %vm928, %v1305, 0
        %v1316 = vsel %vm928, %v1307, 0
        %v1319 = vsel %vm928, %v1309, 0
        %v1322 = vsel %vm928, %v1311, 0
        %1324 = vmatpush.bf16.xpose.msra.mxu0 0
        %1325 = vmatpush.bf16.xpose.msra.mxu0 0
        %1326 = vmatpush.bf16.xpose.msra.mxu0 0
        %1327 = vmatpush.bf16.xpose.msra.mxu0 0
        %1328 = vmatpush.bf16.xpose.msra.mxu0 0
        %1329 = vmatpush.bf16.xpose.msra.mxu0 0
        %1330 = vmatpush.bf16.xpose.msra.mxu0 %v1322
        %1331 = vmatpush.bf16.xpose.msra.mxu0 %v1319
        %1332 = vmatmul.bf16.gmra.mxu0 %v1313
        %v1333 = vpop.f32.mrf.mxu0
        %v1334 = vadd.f32 0.0, %v1333
        %v1335 = vpop.f32.mrf.mxu0
        %v1336 = vadd.f32 0.0, %v1335
        %1337 = vmatmul.bf16.gmra.mxu0 %v1316
        %v1338 = vpop.f32.mrf.mxu0
        %v1339 = vadd.f32 0.0, %v1338
        %v1340 = vpop.f32.mrf.mxu0
        %1341 = vdwg.mxu0
        %v1342 = vsel %vm1006, %v1296, -1e+30
        %v1343 = vsel %vm1006, %v1298, -1e+30
        %v1344 = vsel %vm1006, %v1301, -1e+30
        %v1345 = vsel %vm1006, %v1334, -1e+30
        %v1346 = vsel %vm1006, %v1336, -1e+30
        %v1347 = vsel %vm1006, %v1339, -1e+30
        %v1348 = vsel %vm1013, %v1342, -inf
        %1349 = vmax.xlane.f32.xlu0 %v1348
        %v1350 = vpop.xlane.xlu0 %1349
        %v1351 = vsel %vm1013, %v1343, -inf
        %1352 = vmax.xlane.f32.xlu0 %v1351
        %v1353 = vpop.xlane.xlu0 %1352
        %v1354 = vsel %vm1013, %v1344, -inf
        %1355 = vmax.xlane.f32.xlu0 %v1354
        %v1356 = vpop.xlane.xlu0 %1355
        %v1357 = vsel %vm1013, %v1345, -inf
        %1358 = vmax.xlane.f32.xlu0 %v1357
        %v1359 = vpop.xlane.xlu0 %1358
        %v1360 = vsel %vm1013, %v1346, -inf
        %1361 = vmax.xlane.f32.xlu0 %v1360
        %v1362 = vpop.xlane.xlu0 %1361
        %v1363 = vsel %vm1013, %v1347, -inf
        %1364 = vmax.xlane.f32.xlu0 %v1363
        %v1365 = vpop.xlane.xlu0 %1364
        %v1366 = vsub.f32 %v1342, %v1350
        %v1367 = vsub.f32 %v1343, %v1353
        %v1368 = vsub.f32 %v1344, %v1356
        %v1369 = vsub.f32 %v1345, %v1359
        %v1370 = vsub.f32 %v1346, %v1362
        %v1371 = vsub.f32 %v1347, %v1365
        %v1372 = vmul.f32 %v1366, 1.442695
        %v1373 = vpow.pop %v1372
        %v1374 = vmul.f32 %v1367, 1.442695
        %v1375 = vpow.pop %v1374
        %v1376 = vmul.f32 %v1368, 1.442695
        %v1377 = vpow.pop %v1376
        %v1378 = vmul.f32 %v1369, 1.442695
        %v1379 = vpow.pop %v1378
        %v1380 = vmul.f32 %v1370, 1.442695
        %v1381 = vpow.pop %v1380
        %v1382 = vmul.f32 %v1371, 1.442695
        %v1383 = vpow.pop %v1382
        %v1384 = vsel %vm1013, %v1373, 0.0
        %1385 = vadd.xlane.f32.xlu0 %v1384
        %v1386 = vpop.xlane.xlu0 %1385
        %v1387 = vsel %vm1013, %v1375, 0.0
        %1388 = vadd.xlane.f32.xlu0 %v1387
        %v1389 = vpop.xlane.xlu0 %1388
        %v1390 = vsel %vm1013, %v1377, 0.0
        %1391 = vadd.xlane.f32.xlu0 %v1390
        %v1392 = vpop.xlane.xlu0 %1391
        %v1393 = vsel %vm1013, %v1379, 0.0
        %1394 = vadd.xlane.f32.xlu0 %v1393
        %v1395 = vpop.xlane.xlu0 %1394
        %v1396 = vsel %vm1013, %v1381, 0.0
        %1397 = vadd.xlane.f32.xlu0 %v1396
        %v1398 = vpop.xlane.xlu0 %1397
        %v1399 = vsel %vm1013, %v1383, 0.0
        %1400 = vadd.xlane.f32.xlu0 %v1399
        %v1401 = vpop.xlane.xlu0 %1400
        %v1402 = vrcp.pop %v1386
        %v1403 = vmul.f32 %v1386, %v1402
        %v1404 = vsub.f32 1.0, %v1403
        %v1405 = vmul.f32 %v1402, %v1404
        %v1406 = vadd.f32 %v1402, %v1405
        %vm1407 = vweird.f32 %v1386
        %vm1408 = vweird.f32 %v1402
        %vm1409 = vmor %vm1407, %vm1408
        %v1410 = vsel %vm1409, %v1402, %v1406
        %v1411 = vand.u32 2147483647, %v1386
        %vm1412 = vcmp.eq.f32.partialorder %v1411, 8.507059e+37
        %v1413 = vand.u32 %v1386, 2147483648
        %v1414 = vor.u32 1.1754944e-38, %v1413
        %v1415 = vsel %vm1412, %v1414, %v1410
        %v1416 = vmul.f32 %v1373, %v1415
        %v1417 = vrcp.pop %v1389
        %v1418 = vmul.f32 %v1389, %v1417
        %v1419 = vsub.f32 1.0, %v1418
        %v1420 = vmul.f32 %v1417, %v1419
        %v1421 = vadd.f32 %v1417, %v1420
        %vm1422 = vweird.f32 %v1389
        %vm1423 = vweird.f32 %v1417
        %vm1424 = vmor %vm1422, %vm1423
        %v1425 = vsel %vm1424, %v1417, %v1421
        %v1426 = vand.u32 2147483647, %v1389
        %vm1427 = vcmp.eq.f32.partialorder %v1426, 8.507059e+37
        %v1428 = vand.u32 %v1389, 2147483648
        %v1429 = vor.u32 1.1754944e-38, %v1428
        %v1430 = vsel %vm1427, %v1429, %v1425
        %v1431 = vmul.f32 %v1375, %v1430
        %v1432 = vrcp.pop %v1392
        %v1433 = vmul.f32 %v1392, %v1432
        %v1434 = vsub.f32 1.0, %v1433
        %v1435 = vmul.f32 %v1432, %v1434
        %v1436 = vadd.f32 %v1432, %v1435
        %vm1437 = vweird.f32 %v1392
        %vm1438 = vweird.f32 %v1432
        %vm1439 = vmor %vm1437, %vm1438
        %v1440 = vsel %vm1439, %v1432, %v1436
        %v1441 = vand.u32 2147483647, %v1392
        %vm1442 = vcmp.eq.f32.partialorder %v1441, 8.507059e+37
        %v1443 = vand.u32 %v1392, 2147483648
        %v1444 = vor.u32 1.1754944e-38, %v1443
        %v1445 = vsel %vm1442, %v1444, %v1440
        %v1446 = vmul.f32 %v1377, %v1445
        %v1447 = vrcp.pop %v1395
        %v1448 = vmul.f32 %v1395, %v1447
        %v1449 = vsub.f32 1.0, %v1448
        %v1450 = vmul.f32 %v1447, %v1449
        %v1451 = vadd.f32 %v1447, %v1450
        %vm1452 = vweird.f32 %v1395
        %vm1453 = vweird.f32 %v1447
        %vm1454 = vmor %vm1452, %vm1453
        %v1455 = vsel %vm1454, %v1447, %v1451
        %v1456 = vand.u32 2147483647, %v1395
        %vm1457 = vcmp.eq.f32.partialorder %v1456, 8.507059e+37
        %v1458 = vand.u32 %v1395, 2147483648
        %v1459 = vor.u32 1.1754944e-38, %v1458
        %v1460 = vsel %vm1457, %v1459, %v1455
        %v1461 = vmul.f32 %v1379, %v1460
        %v1462 = vrcp.pop %v1398
        %v1463 = vmul.f32 %v1398, %v1462
        %v1464 = vsub.f32 1.0, %v1463
        %v1465 = vmul.f32 %v1462, %v1464
        %v1466 = vadd.f32 %v1462, %v1465
        %vm1467 = vweird.f32 %v1398
        %vm1468 = vweird.f32 %v1462
        %vm1469 = vmor %vm1467, %vm1468
        %v1470 = vsel %vm1469, %v1462, %v1466
        %v1471 = vand.u32 2147483647, %v1398
        %vm1472 = vcmp.eq.f32.partialorder %v1471, 8.507059e+37
        %v1473 = vand.u32 %v1398, 2147483648
        %v1474 = vor.u32 1.1754944e-38, %v1473
        %v1475 = vsel %vm1472, %v1474, %v1470
        %v1476 = vmul.f32 %v1381, %v1475
        %v1477 = vrcp.pop %v1401
        %v1478 = vmul.f32 %v1401, %v1477
        %v1479 = vsub.f32 1.0, %v1478
        %v1480 = vmul.f32 %v1477, %v1479
        %v1481 = vadd.f32 %v1477, %v1480
        %vm1482 = vweird.f32 %v1401
        %vm1483 = vweird.f32 %v1477
        %vm1484 = vmor %vm1482, %vm1483
        %v1485 = vsel %vm1484, %v1477, %v1481
        %v1486 = vand.u32 2147483647, %v1401
        %vm1487 = vcmp.eq.f32.partialorder %v1486, 8.507059e+37
        %v1488 = vand.u32 %v1401, 2147483648
        %v1489 = vor.u32 1.1754944e-38, %v1488
        %v1490 = vsel %vm1487, %v1489, %v1485
        %v1491 = vmul.f32 %v1383, %v1490
        %v1492 = vpack.c.bf16 %v1416, %v1416
        %v1493 = vpack.c.bf16 %v1431, %v1431
        %v1494 = vpack.c.bf16 %v1446, %v1446
        %v1495 = vpack.c.bf16 %v1461, %v1461
        %v1496 = vpack.c.bf16 %v1476, %v1476
        %v1497 = vpack.c.bf16 %v1491, %v1491
        %v1501 = vunpack.c.l.b16 %v1492
        %v1502 = vunpack.c.l.b16 %v1493
        %v1503 = vunpack.c.l.b16 %v1494
        %v1504 = vpack.c.b16 %v1502, %v1501
        %v1505 = vpack.c.b16 %v1503, %v1503
        %1506 = vrot.lane.b32.xlu0 %v1178, 96
        %v1507 = vpop.permute.xlu0 %1506
        %1508 = vrot.lane.b32.xlu0 %v1179, 96
        %v1509 = vpop.permute.xlu0 %1508
        %v1512 = vsel %vm1013, %v1504, 0
        %v1515 = vsel %vm1013, %v1505, 0
        %v1518 = vsel %vm1187, %v1509, 0
        %1520 = vmatpush.bf16.msra.mxu0 0
        %1521 = vmatpush.bf16.msra.mxu0 0
        %1522 = vmatpush.bf16.msra.mxu0 0
        %1523 = vmatpush.bf16.msra.mxu0 0
        %1524 = vmatpush.bf16.msra.mxu0 0
        %1525 = vmatpush.bf16.msra.mxu0 0
        %1526 = vmatpush.bf16.msra.mxu0 %v1518
        %1527 = vmatpush.bf16.msra.mxu0 %v1507
        %1528 = vmatmul.bf16.gmra.mxu0 %v1512
        %v1529 = vpop.f32.mrf.mxu0
        %v1530 = vadd.f32 0.0, %v1529
        %v1531 = vpop.f32.mrf.mxu0
        %v1532 = vadd.f32 0.0, %v1531
        %1533 = vmatmul.bf16.gmra.mxu0 %v1515
        %v1534 = vpop.f32.mrf.mxu0
        %v1535 = vadd.f32 0.0, %v1534
        %v1536 = vpop.f32.mrf.mxu0
        %1537 = vdwg.mxu0
        %v1541 = vunpack.c.l.b16 %v1495
        %v1542 = vunpack.c.l.b16 %v1496
        %v1543 = vunpack.c.l.b16 %v1497
        %v1544 = vpack.c.b16 %v1542, %v1541
        %v1545 = vpack.c.b16 %v1543, %v1543
        %1546 = vrot.lane.b32.xlu0 %v1223, 96
        %v1547 = vpop.permute.xlu0 %1546
        %1548 = vrot.lane.b32.xlu0 %v1224, 96
        %v1549 = vpop.permute.xlu0 %1548
        %v1552 = vsel %vm1013, %v1544, 0
        %v1555 = vsel %vm1013, %v1545, 0
        %v1558 = vsel %vm1187, %v1549, 0
        %1560 = vmatpush.bf16.msra.mxu0 0
        %1561 = vmatpush.bf16.msra.mxu0 0
        %1562 = vmatpush.bf16.msra.mxu0 0
        %1563 = vmatpush.bf16.msra.mxu0 0
        %1564 = vmatpush.bf16.msra.mxu0 0
        %1565 = vmatpush.bf16.msra.mxu0 0
        %1566 = vmatpush.bf16.msra.mxu0 %v1558
        %1567 = vmatpush.bf16.msra.mxu0 %v1547
        %1568 = vmatmul.bf16.gmra.mxu0 %v1552
        %v1569 = vpop.f32.mrf.mxu0
        %v1570 = vadd.f32 0.0, %v1569
        %v1571 = vpop.f32.mrf.mxu0
        %v1572 = vadd.f32 0.0, %v1571
        %1573 = vmatmul.bf16.gmra.mxu0 %v1555
        %v1574 = vpop.f32.mrf.mxu0
        %v1575 = vadd.f32 0.0, %v1574
        %v1576 = vpop.f32.mrf.mxu0
        %1577 = vdwg.mxu0
        %v1578 = vpack.c.bf16 %v1530, %v1530
        %v1579 = vpack.c.bf16 %v1532, %v1532
        %v1580 = vpack.c.bf16 %v1535, %v1535
        %v1581 = vpack.c.bf16 %v1570, %v1570
        %v1582 = vpack.c.bf16 %v1572, %v1572
        %v1583 = vpack.c.bf16 %v1575, %v1575
        %1590 = vrot.lane.b32.xlu0 %v1578, 32
        %v1591 = vpop.permute.xlu0 %1590
        %1592 = vrot.lane.b32.xlu0 %v1579, 32
        %v1593 = vpop.permute.xlu0 %1592
        %1594 = vrot.lane.b32.xlu0 %v1580, 32
        %v1595 = vpop.permute.xlu0 %1594
        %1596 = vrot.lane.b32.xlu0 %v1581, 32
        %v1597 = vpop.permute.xlu0 %1596
        %1598 = vrot.lane.b32.xlu0 %v1582, 32
        %v1599 = vpop.permute.xlu0 %1598
        %1600 = vrot.lane.b32.xlu0 %v1583, 32
        %v1601 = vpop.permute.xlu0 %1600
        %vm1608 = vcmask 519424
        %1609 = vst.msk [vmem:[#allocation2] sm:$0xf] %vm1608, %v1591
        %1610 = vst.msk [vmem:[#allocation2 + $0x4] sm:$0xf] %vm1608, %v1593
        %1611 = vst.msk [vmem:[#allocation2 + $0x8] sm:$0xf] %vm1608, %v1595
        %1612 = vst.msk [vmem:[#allocation2 + $0xc] sm:$0xf] %vm1608, %v1597
        %1613 = vst.msk [vmem:[#allocation2 + $0x10] sm:$0xf] %vm1608, %v1599
        %1614 = vst.msk [vmem:[#allocation2 + $0x14] sm:$0xf] %vm1608, %v1601
        %1615 = vrot.lane.b32.xlu0 %v918, 64
        %v1616 = vpop.permute.xlu0 %1615
        %1617 = vrot.lane.b32.xlu0 %v919, 64
        %v1618 = vpop.permute.xlu0 %1617
        %1619 = vrot.lane.b32.xlu0 %v926, 64
        %v1620 = vpop.permute.xlu0 %1619
        %1621 = vrot.lane.b32.xlu0 %v927, 64
        %v1622 = vpop.permute.xlu0 %1621
        %v1624 = vsel %vm928, %v1616, 0
        %v1627 = vsel %vm928, %v1618, 0
        %v1630 = vsel %vm928, %v1620, 0
        %v1633 = vsel %vm928, %v1622, 0
        %1635 = vmatpush.bf16.xpose.msra.mxu0 0
        %1636 = vmatpush.bf16.xpose.msra.mxu0 0
        %1637 = vmatpush.bf16.xpose.msra.mxu0 0
        %1638 = vmatpush.bf16.xpose.msra.mxu0 0
        %1639 = vmatpush.bf16.xpose.msra.mxu0 0
        %1640 = vmatpush.bf16.xpose.msra.mxu0 0
        %1641 = vmatpush.bf16.xpose.msra.mxu0 %v1633
        %1642 = vmatpush.bf16.xpose.msra.mxu0 %v1630
        %1643 = vmatmul.bf16.gmra.mxu0 %v1624
        %v1644 = vpop.f32.mrf.mxu0
        %v1645 = vadd.f32 0.0, %v1644
        %v1646 = vpop.f32.mrf.mxu0
        %v1647 = vadd.f32 0.0, %v1646
        %1648 = vmatmul.bf16.gmra.mxu0 %v1627
        %v1649 = vpop.f32.mrf.mxu0
        %v1650 = vadd.f32 0.0, %v1649
        %v1651 = vpop.f32.mrf.mxu0
        %1652 = vdwg.mxu0
        %1653 = vrot.lane.b32.xlu0 %v965, 64
        %v1654 = vpop.permute.xlu0 %1653
        %1655 = vrot.lane.b32.xlu0 %v966, 64
        %v1656 = vpop.permute.xlu0 %1655
        %1657 = vrot.lane.b32.xlu0 %v973, 64
        %v1658 = vpop.permute.xlu0 %1657
        %1659 = vrot.lane.b32.xlu0 %v974, 64
        %v1660 = vpop.permute.xlu0 %1659
        %v1662 = vsel %vm928, %v1654, 0
        %v1665 = vsel %vm928, %v1656, 0
        %v1668 = vsel %vm928, %v1658, 0
        %v1671 = vsel %vm928, %v1660, 0
        %1673 = vmatpush.bf16.xpose.msra.mxu0 0
        %1674 = vmatpush.bf16.xpose.msra.mxu0 0
        %1675 = vmatpush.bf16.xpose.msra.mxu0 0
        %1676 = vmatpush.bf16.xpose.msra.mxu0 0
        %1677 = vmatpush.bf16.xpose.msra.mxu0 0
        %1678 = vmatpush.bf16.xpose.msra.mxu0 0
        %1679 = vmatpush.bf16.xpose.msra.mxu0 %v1671
        %1680 = vmatpush.bf16.xpose.msra.mxu0 %v1668
        %1681 = vmatmul.bf16.gmra.mxu0 %v1662
        %v1682 = vpop.f32.mrf.mxu0
        %v1683 = vadd.f32 0.0, %v1682
        %v1684 = vpop.f32.mrf.mxu0
        %v1685 = vadd.f32 0.0, %v1684
        %1686 = vmatmul.bf16.gmra.mxu0 %v1665
        %v1687 = vpop.f32.mrf.mxu0
        %v1688 = vadd.f32 0.0, %v1687
        %v1689 = vpop.f32.mrf.mxu0
        %1690 = vdwg.mxu0
        %v1691 = vsel %vm1006, %v1645, -1e+30
        %v1692 = vsel %vm1006, %v1647, -1e+30
        %v1693 = vsel %vm1006, %v1650, -1e+30
        %v1694 = vsel %vm1006, %v1683, -1e+30
        %v1695 = vsel %vm1006, %v1685, -1e+30
        %v1696 = vsel %vm1006, %v1688, -1e+30
        %v1697 = vsel %vm1013, %v1691, -inf
        %1698 = vmax.xlane.f32.xlu0 %v1697
        %v1699 = vpop.xlane.xlu0 %1698
        %v1700 = vsel %vm1013, %v1692, -inf
        %1701 = vmax.xlane.f32.xlu0 %v1700
        %v1702 = vpop.xlane.xlu0 %1701
        %v1703 = vsel %vm1013, %v1693, -inf
        %1704 = vmax.xlane.f32.xlu0 %v1703
        %v1705 = vpop.xlane.xlu0 %1704
        %v1706 = vsel %vm1013, %v1694, -inf
        %1707 = vmax.xlane.f32.xlu0 %v1706
        %v1708 = vpop.xlane.xlu0 %1707
        %v1709 = vsel %vm1013, %v1695, -inf
        %1710 = vmax.xlane.f32.xlu0 %v1709
        %v1711 = vpop.xlane.xlu0 %1710
        %v1712 = vsel %vm1013, %v1696, -inf
        %1713 = vmax.xlane.f32.xlu0 %v1712
        %v1714 = vpop.xlane.xlu0 %1713
        %v1715 = vsub.f32 %v1691, %v1699
        %v1716 = vsub.f32 %v1692, %v1702
        %v1717 = vsub.f32 %v1693, %v1705
        %v1718 = vsub.f32 %v1694, %v1708
        %v1719 = vsub.f32 %v1695, %v1711
        %v1720 = vsub.f32 %v1696, %v1714
        %v1721 = vmul.f32 %v1715, 1.442695
        %v1722 = vpow.pop %v1721
        %v1723 = vmul.f32 %v1716, 1.442695
        %v1724 = vpow.pop %v1723
        %v1725 = vmul.f32 %v1717, 1.442695
        %v1726 = vpow.pop %v1725
        %v1727 = vmul.f32 %v1718, 1.442695
        %v1728 = vpow.pop %v1727
        %v1729 = vmul.f32 %v1719, 1.442695
        %v1730 = vpow.pop %v1729
        %v1731 = vmul.f32 %v1720, 1.442695
        %v1732 = vpow.pop %v1731
        %v1733 = vsel %vm1013, %v1722, 0.0
        %1734 = vadd.xlane.f32.xlu0 %v1733
        %v1735 = vpop.xlane.xlu0 %1734
        %v1736 = vsel %vm1013, %v1724, 0.0
        %1737 = vadd.xlane.f32.xlu0 %v1736
        %v1738 = vpop.xlane.xlu0 %1737
        %v1739 = vsel %vm1013, %v1726, 0.0
        %1740 = vadd.xlane.f32.xlu0 %v1739
        %v1741 = vpop.xlane.xlu0 %1740
        %v1742 = vsel %vm1013, %v1728, 0.0
        %1743 = vadd.xlane.f32.xlu0 %v1742
        %v1744 = vpop.xlane.xlu0 %1743
        %v1745 = vsel %vm1013, %v1730, 0.0
        %1746 = vadd.xlane.f32.xlu0 %v1745
        %v1747 = vpop.xlane.xlu0 %1746
        %v1748 = vsel %vm1013, %v1732, 0.0
        %1749 = vadd.xlane.f32.xlu0 %v1748
        %v1750 = vpop.xlane.xlu0 %1749
        %v1751 = vrcp.pop %v1735
        %v1752 = vmul.f32 %v1735, %v1751
        %v1753 = vsub.f32 1.0, %v1752
        %v1754 = vmul.f32 %v1751, %v1753
        %v1755 = vadd.f32 %v1751, %v1754
        %vm1756 = vweird.f32 %v1735
        %vm1757 = vweird.f32 %v1751
        %vm1758 = vmor %vm1756, %vm1757
        %v1759 = vsel %vm1758, %v1751, %v1755
        %v1760 = vand.u32 2147483647, %v1735
        %vm1761 = vcmp.eq.f32.partialorder %v1760, 8.507059e+37
        %v1762 = vand.u32 %v1735, 2147483648
        %v1763 = vor.u32 1.1754944e-38, %v1762
        %v1764 = vsel %vm1761, %v1763, %v1759
        %v1765 = vmul.f32 %v1722, %v1764
        %v1766 = vrcp.pop %v1738
        %v1767 = vmul.f32 %v1738, %v1766
        %v1768 = vsub.f32 1.0, %v1767
        %v1769 = vmul.f32 %v1766, %v1768
        %v1770 = vadd.f32 %v1766, %v1769
        %vm1771 = vweird.f32 %v1738
        %vm1772 = vweird.f32 %v1766
        %vm1773 = vmor %vm1771, %vm1772
        %v1774 = vsel %vm1773, %v1766, %v1770
        %v1775 = vand.u32 2147483647, %v1738
        %vm1776 = vcmp.eq.f32.partialorder %v1775, 8.507059e+37
        %v1777 = vand.u32 %v1738, 2147483648
        %v1778 = vor.u32 1.1754944e-38, %v1777
        %v1779 = vsel %vm1776, %v1778, %v1774
        %v1780 = vmul.f32 %v1724, %v1779
        %v1781 = vrcp.pop %v1741
        %v1782 = vmul.f32 %v1741, %v1781
        %v1783 = vsub.f32 1.0, %v1782
        %v1784 = vmul.f32 %v1781, %v1783
        %v1785 = vadd.f32 %v1781, %v1784
        %vm1786 = vweird.f32 %v1741
        %vm1787 = vweird.f32 %v1781
        %vm1788 = vmor %vm1786, %vm1787
        %v1789 = vsel %vm1788, %v1781, %v1785
        %v1790 = vand.u32 2147483647, %v1741
        %vm1791 = vcmp.eq.f32.partialorder %v1790, 8.507059e+37
        %v1792 = vand.u32 %v1741, 2147483648
        %v1793 = vor.u32 1.1754944e-38, %v1792
        %v1794 = vsel %vm1791, %v1793, %v1789
        %v1795 = vmul.f32 %v1726, %v1794
        %v1796 = vrcp.pop %v1744
        %v1797 = vmul.f32 %v1744, %v1796
        %v1798 = vsub.f32 1.0, %v1797
        %v1799 = vmul.f32 %v1796, %v1798
        %v1800 = vadd.f32 %v1796, %v1799
        %vm1801 = vweird.f32 %v1744
        %vm1802 = vweird.f32 %v1796
        %vm1803 = vmor %vm1801, %vm1802
        %v1804 = vsel %vm1803, %v1796, %v1800
        %v1805 = vand.u32 2147483647, %v1744
        %vm1806 = vcmp.eq.f32.partialorder %v1805, 8.507059e+37
        %v1807 = vand.u32 %v1744, 2147483648
        %v1808 = vor.u32 1.1754944e-38, %v1807
        %v1809 = vsel %vm1806, %v1808, %v1804
        %v1810 = vmul.f32 %v1728, %v1809
        %v1811 = vrcp.pop %v1747
        %v1812 = vmul.f32 %v1747, %v1811
        %v1813 = vsub.f32 1.0, %v1812
        %v1814 = vmul.f32 %v1811, %v1813
        %v1815 = vadd.f32 %v1811, %v1814
        %vm1816 = vweird.f32 %v1747
        %vm1817 = vweird.f32 %v1811
        %vm1818 = vmor %vm1816, %vm1817
        %v1819 = vsel %vm1818, %v1811, %v1815
        %v1820 = vand.u32 2147483647, %v1747
        %vm1821 = vcmp.eq.f32.partialorder %v1820, 8.507059e+37
        %v1822 = vand.u32 %v1747, 2147483648
        %v1823 = vor.u32 1.1754944e-38, %v1822
        %v1824 = vsel %vm1821, %v1823, %v1819
        %v1825 = vmul.f32 %v1730, %v1824
        %v1826 = vrcp.pop %v1750
        %v1827 = vmul.f32 %v1750, %v1826
        %v1828 = vsub.f32 1.0, %v1827
        %v1829 = vmul.f32 %v1826, %v1828
        %v1830 = vadd.f32 %v1826, %v1829
        %vm1831 = vweird.f32 %v1750
        %vm1832 = vweird.f32 %v1826
        %vm1833 = vmor %vm1831, %vm1832
        %v1834 = vsel %vm1833, %v1826, %v1830
        %v1835 = vand.u32 2147483647, %v1750
        %vm1836 = vcmp.eq.f32.partialorder %v1835, 8.507059e+37
        %v1837 = vand.u32 %v1750, 2147483648
        %v1838 = vor.u32 1.1754944e-38, %v1837
        %v1839 = vsel %vm1836, %v1838, %v1834
        %v1840 = vmul.f32 %v1732, %v1839
        %v1841 = vpack.c.bf16 %v1765, %v1765
        %v1842 = vpack.c.bf16 %v1780, %v1780
        %v1843 = vpack.c.bf16 %v1795, %v1795
        %v1844 = vpack.c.bf16 %v1810, %v1810
        %v1845 = vpack.c.bf16 %v1825, %v1825
        %v1846 = vpack.c.bf16 %v1840, %v1840
        %v1850 = vunpack.c.l.b16 %v1841
        %v1851 = vunpack.c.l.b16 %v1842
        %v1852 = vunpack.c.l.b16 %v1843
        %v1853 = vpack.c.b16 %v1851, %v1850
        %v1854 = vpack.c.b16 %v1852, %v1852
        %1855 = vrot.lane.b32.xlu0 %v1178, 64
        %v1856 = vpop.permute.xlu0 %1855
        %1857 = vrot.lane.b32.xlu0 %v1179, 64
        %v1858 = vpop.permute.xlu0 %1857
        %v1861 = vsel %vm1013, %v1853, 0
        %v1864 = vsel %vm1013, %v1854, 0
        %v1867 = vsel %vm1187, %v1858, 0
        %1869 = vmatpush.bf16.msra.mxu0 0
        %1870 = vmatpush.bf16.msra.mxu0 0
        %1871 = vmatpush.bf16.msra.mxu0 0
        %1872 = vmatpush.bf16.msra.mxu0 0
        %1873 = vmatpush.bf16.msra.mxu0 0
        %1874 = vmatpush.bf16.msra.mxu0 0
        %1875 = vmatpush.bf16.msra.mxu0 %v1867
        %1876 = vmatpush.bf16.msra.mxu0 %v1856
        %1877 = vmatmul.bf16.gmra.mxu0 %v1861
        %v1878 = vpop.f32.mrf.mxu0
        %v1879 = vadd.f32 0.0, %v1878
        %v1880 = vpop.f32.mrf.mxu0
        %v1881 = vadd.f32 0.0, %v1880
        %1882 = vmatmul.bf16.gmra.mxu0 %v1864
        %v1883 = vpop.f32.mrf.mxu0
        %v1884 = vadd.f32 0.0, %v1883
        %v1885 = vpop.f32.mrf.mxu0
        %1886 = vdwg.mxu0
        %v1890 = vunpack.c.l.b16 %v1844
        %v1891 = vunpack.c.l.b16 %v1845
        %v1892 = vunpack.c.l.b16 %v1846
        %v1893 = vpack.c.b16 %v1891, %v1890
        %v1894 = vpack.c.b16 %v1892, %v1892
        %1895 = vrot.lane.b32.xlu0 %v1223, 64
        %v1896 = vpop.permute.xlu0 %1895
        %1897 = vrot.lane.b32.xlu0 %v1224, 64
        %v1898 = vpop.permute.xlu0 %1897
        %v1901 = vsel %vm1013, %v1893, 0
        %v1904 = vsel %vm1013, %v1894, 0
        %v1907 = vsel %vm1187, %v1898, 0
        %1909 = vmatpush.bf16.msra.mxu0 0
        %1910 = vmatpush.bf16.msra.mxu0 0
        %1911 = vmatpush.bf16.msra.mxu0 0
        %1912 = vmatpush.bf16.msra.mxu0 0
        %1913 = vmatpush.bf16.msra.mxu0 0
        %1914 = vmatpush.bf16.msra.mxu0 0
        %1915 = vmatpush.bf16.msra.mxu0 %v1907
        %1916 = vmatpush.bf16.msra.mxu0 %v1896
        %1917 = vmatmul.bf16.gmra.mxu0 %v1901
        %v1918 = vpop.f32.mrf.mxu0
        %v1919 = vadd.f32 0.0, %v1918
        %v1920 = vpop.f32.mrf.mxu0
        %v1921 = vadd.f32 0.0, %v1920
        %1922 = vmatmul.bf16.gmra.mxu0 %v1904
        %v1923 = vpop.f32.mrf.mxu0
        %v1924 = vadd.f32 0.0, %v1923
        %v1925 = vpop.f32.mrf.mxu0
        %1926 = vdwg.mxu0
        %v1927 = vpack.c.bf16 %v1879, %v1879
        %v1928 = vpack.c.bf16 %v1881, %v1881
        %v1929 = vpack.c.bf16 %v1884, %v1884
        %v1930 = vpack.c.bf16 %v1919, %v1919
        %v1931 = vpack.c.bf16 %v1921, %v1921
        %v1932 = vpack.c.bf16 %v1924, %v1924
        %1939 = vrot.lane.b32.xlu0 %v1927, 64
        %v1940 = vpop.permute.xlu0 %1939
        %1941 = vrot.lane.b32.xlu0 %v1928, 64
        %v1942 = vpop.permute.xlu0 %1941
        %1943 = vrot.lane.b32.xlu0 %v1929, 64
        %v1944 = vpop.permute.xlu0 %1943
        %1945 = vrot.lane.b32.xlu0 %v1930, 64
        %v1946 = vpop.permute.xlu0 %1945
        %1947 = vrot.lane.b32.xlu0 %v1931, 64
        %v1948 = vpop.permute.xlu0 %1947
        %1949 = vrot.lane.b32.xlu0 %v1932, 64
        %v1950 = vpop.permute.xlu0 %1949
        %vm1957 = vcmask 781824
        %1958 = vst.msk [vmem:[#allocation2] sm:$0xf] %vm1957, %v1940
        %1959 = vst.msk [vmem:[#allocation2 + $0x4] sm:$0xf] %vm1957, %v1942
        %1960 = vst.msk [vmem:[#allocation2 + $0x8] sm:$0xf] %vm1957, %v1944
        %1961 = vst.msk [vmem:[#allocation2 + $0xc] sm:$0xf] %vm1957, %v1946
        %1962 = vst.msk [vmem:[#allocation2 + $0x10] sm:$0xf] %vm1957, %v1948
        %1963 = vst.msk [vmem:[#allocation2 + $0x14] sm:$0xf] %vm1957, %v1950
        %1964 = vrot.lane.b32.xlu0 %v918, 32
        %v1965 = vpop.permute.xlu0 %1964
        %1966 = vrot.lane.b32.xlu0 %v919, 32
        %v1967 = vpop.permute.xlu0 %1966
        %1968 = vrot.lane.b32.xlu0 %v926, 32
        %v1969 = vpop.permute.xlu0 %1968
        %1970 = vrot.lane.b32.xlu0 %v927, 32
        %v1971 = vpop.permute.xlu0 %1970
        %v1973 = vsel %vm928, %v1965, 0
        %v1976 = vsel %vm928, %v1967, 0
        %v1979 = vsel %vm928, %v1969, 0
        %v1982 = vsel %vm928, %v1971, 0
        %1984 = vmatpush.bf16.xpose.msra.mxu0 0
        %1985 = vmatpush.bf16.xpose.msra.mxu0 0
        %1986 = vmatpush.bf16.xpose.msra.mxu0 0
        %1987 = vmatpush.bf16.xpose.msra.mxu0 0
        %1988 = vmatpush.bf16.xpose.msra.mxu0 0
        %1989 = vmatpush.bf16.xpose.msra.mxu0 0
        %1990 = vmatpush.bf16.xpose.msra.mxu0 %v1982
        %1991 = vmatpush.bf16.xpose.msra.mxu0 %v1979
        %1992 = vmatmul.bf16.gmra.mxu0 %v1973
        %v1993 = vpop.f32.mrf.mxu0
        %v1994 = vadd.f32 0.0, %v1993
        %v1995 = vpop.f32.mrf.mxu0
        %v1996 = vadd.f32 0.0, %v1995
        %1997 = vmatmul.bf16.gmra.mxu0 %v1976
        %v1998 = vpop.f32.mrf.mxu0
        %v1999 = vadd.f32 0.0, %v1998
        %v2000 = vpop.f32.mrf.mxu0
        %2001 = vdwg.mxu0
        %2002 = vrot.lane.b32.xlu0 %v965, 32
        %v2003 = vpop.permute.xlu0 %2002
        %2004 = vrot.lane.b32.xlu0 %v966, 32
        %v2005 = vpop.permute.xlu0 %2004
        %2006 = vrot.lane.b32.xlu0 %v973, 32
        %v2007 = vpop.permute.xlu0 %2006
        %2008 = vrot.lane.b32.xlu0 %v974, 32
        %v2009 = vpop.permute.xlu0 %2008
        %v2011 = vsel %vm928, %v2003, 0
        %v2014 = vsel %vm928, %v2005, 0
        %v2017 = vsel %vm928, %v2007, 0
        %v2020 = vsel %vm928, %v2009, 0
        %2022 = vmatpush.bf16.xpose.msra.mxu0 0
        %2023 = vmatpush.bf16.xpose.msra.mxu0 0
        %2024 = vmatpush.bf16.xpose.msra.mxu0 0
        %2025 = vmatpush.bf16.xpose.msra.mxu0 0
        %2026 = vmatpush.bf16.xpose.msra.mxu0 0
        %2027 = vmatpush.bf16.xpose.msra.mxu0 0
        %2028 = vmatpush.bf16.xpose.msra.mxu0 %v2020
        %2029 = vmatpush.bf16.xpose.msra.mxu0 %v2017
        %2030 = vmatmul.bf16.gmra.mxu0 %v2011
        %v2031 = vpop.f32.mrf.mxu0
        %v2032 = vadd.f32 0.0, %v2031
        %v2033 = vpop.f32.mrf.mxu0
        %v2034 = vadd.f32 0.0, %v2033
        %2035 = vmatmul.bf16.gmra.mxu0 %v2014
        %v2036 = vpop.f32.mrf.mxu0
        %v2037 = vadd.f32 0.0, %v2036
        %v2038 = vpop.f32.mrf.mxu0
        %2039 = vdwg.mxu0
        %v2040 = vsel %vm1006, %v1994, -1e+30
        %v2041 = vsel %vm1006, %v1996, -1e+30
        %v2042 = vsel %vm1006, %v1999, -1e+30
        %v2043 = vsel %vm1006, %v2032, -1e+30
        %v2044 = vsel %vm1006, %v2034, -1e+30
        %v2045 = vsel %vm1006, %v2037, -1e+30
        %v2046 = vsel %vm1013, %v2040, -inf
        %2047 = vmax.xlane.f32.xlu0 %v2046
        %v2048 = vpop.xlane.xlu0 %2047
        %v2049 = vsel %vm1013, %v2041, -inf
        %2050 = vmax.xlane.f32.xlu0 %v2049
        %v2051 = vpop.xlane.xlu0 %2050
        %v2052 = vsel %vm1013, %v2042, -inf
        %2053 = vmax.xlane.f32.xlu0 %v2052
        %v2054 = vpop.xlane.xlu0 %2053
        %v2055 = vsel %vm1013, %v2043, -inf
        %2056 = vmax.xlane.f32.xlu0 %v2055
        %v2057 = vpop.xlane.xlu0 %2056
        %v2058 = vsel %vm1013, %v2044, -inf
        %2059 = vmax.xlane.f32.xlu0 %v2058
        %v2060 = vpop.xlane.xlu0 %2059
        %v2061 = vsel %vm1013, %v2045, -inf
        %2062 = vmax.xlane.f32.xlu0 %v2061
        %v2063 = vpop.xlane.xlu0 %2062
        %v2064 = vsub.f32 %v2040, %v2048
        %v2065 = vsub.f32 %v2041, %v2051
        %v2066 = vsub.f32 %v2042, %v2054
        %v2067 = vsub.f32 %v2043, %v2057
        %v2068 = vsub.f32 %v2044, %v2060
        %v2069 = vsub.f32 %v2045, %v2063
        %v2070 = vmul.f32 %v2064, 1.442695
        %v2071 = vpow.pop %v2070
        %v2072 = vmul.f32 %v2065, 1.442695
        %v2073 = vpow.pop %v2072
        %v2074 = vmul.f32 %v2066, 1.442695
        %v2075 = vpow.pop %v2074
        %v2076 = vmul.f32 %v2067, 1.442695
        %v2077 = vpow.pop %v2076
        %v2078 = vmul.f32 %v2068, 1.442695
        %v2079 = vpow.pop %v2078
        %v2080 = vmul.f32 %v2069, 1.442695
        %v2081 = vpow.pop %v2080
        %v2082 = vsel %vm1013, %v2071, 0.0
        %2083 = vadd.xlane.f32.xlu0 %v2082
        %v2084 = vpop.xlane.xlu0 %2083
        %v2085 = vsel %vm1013, %v2073, 0.0
        %2086 = vadd.xlane.f32.xlu0 %v2085
        %v2087 = vpop.xlane.xlu0 %2086
        %v2088 = vsel %vm1013, %v2075, 0.0
        %2089 = vadd.xlane.f32.xlu0 %v2088
        %v2090 = vpop.xlane.xlu0 %2089
        %v2091 = vsel %vm1013, %v2077, 0.0
        %2092 = vadd.xlane.f32.xlu0 %v2091
        %v2093 = vpop.xlane.xlu0 %2092
        %v2094 = vsel %vm1013, %v2079, 0.0
        %2095 = vadd.xlane.f32.xlu0 %v2094
        %v2096 = vpop.xlane.xlu0 %2095
        %v2097 = vsel %vm1013, %v2081, 0.0
        %2098 = vadd.xlane.f32.xlu0 %v2097
        %v2099 = vpop.xlane.xlu0 %2098
        %v2100 = vrcp.pop %v2084
        %v2101 = vmul.f32 %v2084, %v2100
        %v2102 = vsub.f32 1.0, %v2101
        %v2103 = vmul.f32 %v2100, %v2102
        %v2104 = vadd.f32 %v2100, %v2103
        %vm2105 = vweird.f32 %v2084
        %vm2106 = vweird.f32 %v2100
        %vm2107 = vmor %vm2105, %vm2106
        %v2108 = vsel %vm2107, %v2100, %v2104
        %v2109 = vand.u32 2147483647, %v2084
        %vm2110 = vcmp.eq.f32.partialorder %v2109, 8.507059e+37
        %v2111 = vand.u32 %v2084, 2147483648
        %v2112 = vor.u32 1.1754944e-38, %v2111
        %v2113 = vsel %vm2110, %v2112, %v2108
        %v2114 = vmul.f32 %v2071, %v2113
        %v2115 = vrcp.pop %v2087
        %v2116 = vmul.f32 %v2087, %v2115
        %v2117 = vsub.f32 1.0, %v2116
        %v2118 = vmul.f32 %v2115, %v2117
        %v2119 = vadd.f32 %v2115, %v2118
        %vm2120 = vweird.f32 %v2087
        %vm2121 = vweird.f32 %v2115
        %vm2122 = vmor %vm2120, %vm2121
        %v2123 = vsel %vm2122, %v2115, %v2119
        %v2124 = vand.u32 2147483647, %v2087
        %vm2125 = vcmp.eq.f32.partialorder %v2124, 8.507059e+37
        %v2126 = vand.u32 %v2087, 2147483648
        %v2127 = vor.u32 1.1754944e-38, %v2126
        %v2128 = vsel %vm2125, %v2127, %v2123
        %v2129 = vmul.f32 %v2073, %v2128
        %v2130 = vrcp.pop %v2090
        %v2131 = vmul.f32 %v2090, %v2130
        %v2132 = vsub.f32 1.0, %v2131
        %v2133 = vmul.f32 %v2130, %v2132
        %v2134 = vadd.f32 %v2130, %v2133
        %vm2135 = vweird.f32 %v2090
        %vm2136 = vweird.f32 %v2130
        %vm2137 = vmor %vm2135, %vm2136
        %v2138 = vsel %vm2137, %v2130, %v2134
        %v2139 = vand.u32 2147483647, %v2090
        %vm2140 = vcmp.eq.f32.partialorder %v2139, 8.507059e+37
        %v2141 = vand.u32 %v2090, 2147483648
        %v2142 = vor.u32 1.1754944e-38, %v2141
        %v2143 = vsel %vm2140, %v2142, %v2138
        %v2144 = vmul.f32 %v2075, %v2143
        %v2145 = vrcp.pop %v2093
        %v2146 = vmul.f32 %v2093, %v2145
        %v2147 = vsub.f32 1.0, %v2146
        %v2148 = vmul.f32 %v2145, %v2147
        %v2149 = vadd.f32 %v2145, %v2148
        %vm2150 = vweird.f32 %v2093
        %vm2151 = vweird.f32 %v2145
        %vm2152 = vmor %vm2150, %vm2151
        %v2153 = vsel %vm2152, %v2145, %v2149
        %v2154 = vand.u32 2147483647, %v2093
        %vm2155 = vcmp.eq.f32.partialorder %v2154, 8.507059e+37
        %v2156 = vand.u32 %v2093, 2147483648
        %v2157 = vor.u32 1.1754944e-38, %v2156
        %v2158 = vsel %vm2155, %v2157, %v2153
        %v2159 = vmul.f32 %v2077, %v2158
        %v2160 = vrcp.pop %v2096
        %v2161 = vmul.f32 %v2096, %v2160
        %v2162 = vsub.f32 1.0, %v2161
        %v2163 = vmul.f32 %v2160, %v2162
        %v2164 = vadd.f32 %v2160, %v2163
        %vm2165 = vweird.f32 %v2096
        %vm2166 = vweird.f32 %v2160
        %vm2167 = vmor %vm2165, %vm2166
        %v2168 = vsel %vm2167, %v2160, %v2164
        %v2169 = vand.u32 2147483647, %v2096
        %vm2170 = vcmp.eq.f32.partialorder %v2169, 8.507059e+37
        %v2171 = vand.u32 %v2096, 2147483648
        %v2172 = vor.u32 1.1754944e-38, %v2171
        %v2173 = vsel %vm2170, %v2172, %v2168
        %v2174 = vmul.f32 %v2079, %v2173
        %v2175 = vrcp.pop %v2099
        %v2176 = vmul.f32 %v2099, %v2175
        %v2177 = vsub.f32 1.0, %v2176
        %v2178 = vmul.f32 %v2175, %v2177
        %v2179 = vadd.f32 %v2175, %v2178
        %vm2180 = vweird.f32 %v2099
        %vm2181 = vweird.f32 %v2175
        %vm2182 = vmor %vm2180, %vm2181
        %v2183 = vsel %vm2182, %v2175, %v2179
        %v2184 = vand.u32 2147483647, %v2099
        %vm2185 = vcmp.eq.f32.partialorder %v2184, 8.507059e+37
        %v2186 = vand.u32 %v2099, 2147483648
        %v2187 = vor.u32 1.1754944e-38, %v2186
        %v2188 = vsel %vm2185, %v2187, %v2183
        %v2189 = vmul.f32 %v2081, %v2188
        %v2190 = vpack.c.bf16 %v2114, %v2114
        %v2191 = vpack.c.bf16 %v2129, %v2129
        %v2192 = vpack.c.bf16 %v2144, %v2144
        %v2193 = vpack.c.bf16 %v2159, %v2159
        %v2194 = vpack.c.bf16 %v2174, %v2174
        %v2195 = vpack.c.bf16 %v2189, %v2189
        %v2199 = vunpack.c.l.b16 %v2190
        %v2200 = vunpack.c.l.b16 %v2191
        %v2201 = vunpack.c.l.b16 %v2192
        %v2202 = vpack.c.b16 %v2200, %v2199
        %v2203 = vpack.c.b16 %v2201, %v2201
        %2204 = vrot.lane.b32.xlu0 %v1178, 32
        %v2205 = vpop.permute.xlu0 %2204
        %2206 = vrot.lane.b32.xlu0 %v1179, 32
        %v2207 = vpop.permute.xlu0 %2206
        %v2210 = vsel %vm1013, %v2202, 0
        %v2213 = vsel %vm1013, %v2203, 0
        %v2216 = vsel %vm1187, %v2207, 0
        %2218 = vmatpush.bf16.msra.mxu0 0
        %2219 = vmatpush.bf16.msra.mxu0 0
        %2220 = vmatpush.bf16.msra.mxu0 0
        %2221 = vmatpush.bf16.msra.mxu0 0
        %2222 = vmatpush.bf16.msra.mxu0 0
        %2223 = vmatpush.bf16.msra.mxu0 0
        %2224 = vmatpush.bf16.msra.mxu0 %v2216
        %2225 = vmatpush.bf16.msra.mxu0 %v2205
        %2226 = vmatmul.bf16.gmra.mxu0 %v2210
        %v2227 = vpop.f32.mrf.mxu0
        %v2228 = vadd.f32 0.0, %v2227
        %v2229 = vpop.f32.mrf.mxu0
        %v2230 = vadd.f32 0.0, %v2229
        %2231 = vmatmul.bf16.gmra.mxu0 %v2213
        %v2232 = vpop.f32.mrf.mxu0
        %v2233 = vadd.f32 0.0, %v2232
        %v2234 = vpop.f32.mrf.mxu0
        %2235 = vdwg.mxu0
        %v2239 = vunpack.c.l.b16 %v2193
        %v2240 = vunpack.c.l.b16 %v2194
        %v2241 = vunpack.c.l.b16 %v2195
        %v2242 = vpack.c.b16 %v2240, %v2239
        %v2243 = vpack.c.b16 %v2241, %v2241
        %2244 = vrot.lane.b32.xlu0 %v1223, 32
        %v2245 = vpop.permute.xlu0 %2244
        %2246 = vrot.lane.b32.xlu0 %v1224, 32
        %v2247 = vpop.permute.xlu0 %2246
        %v2250 = vsel %vm1013, %v2242, 0
        %v2253 = vsel %vm1013, %v2243, 0
        %v2256 = vsel %vm1187, %v2247, 0
        %2258 = vmatpush.bf16.msra.mxu0 0
        %2259 = vmatpush.bf16.msra.mxu0 0
        %2260 = vmatpush.bf16.msra.mxu0 0
        %2261 = vmatpush.bf16.msra.mxu0 0
        %2262 = vmatpush.bf16.msra.mxu0 0
        %2263 = vmatpush.bf16.msra.mxu0 0
        %2264 = vmatpush.bf16.msra.mxu0 %v2256
        %2265 = vmatpush.bf16.msra.mxu0 %v2245
        %2266 = vmatmul.bf16.gmra.mxu0 %v2250
        %v2267 = vpop.f32.mrf.mxu0
        %v2268 = vadd.f32 0.0, %v2267
        %v2269 = vpop.f32.mrf.mxu0
        %v2270 = vadd.f32 0.0, %v2269
        %2271 = vmatmul.bf16.gmra.mxu0 %v2253
        %v2272 = vpop.f32.mrf.mxu0
        %v2273 = vadd.f32 0.0, %v2272
        %v2274 = vpop.f32.mrf.mxu0
        %2275 = vdwg.mxu0
        %v2276 = vpack.c.bf16 %v2228, %v2228
        %v2277 = vpack.c.bf16 %v2230, %v2230
        %v2278 = vpack.c.bf16 %v2233, %v2233
        %v2279 = vpack.c.bf16 %v2268, %v2268
        %v2280 = vpack.c.bf16 %v2270, %v2270
        %v2281 = vpack.c.bf16 %v2273, %v2273
        %2288 = vrot.lane.b32.xlu0 %v2276, 96
        %v2289 = vpop.permute.xlu0 %2288
        %2290 = vrot.lane.b32.xlu0 %v2277, 96
        %v2291 = vpop.permute.xlu0 %2290
        %2292 = vrot.lane.b32.xlu0 %v2278, 96
        %v2293 = vpop.permute.xlu0 %2292
        %2294 = vrot.lane.b32.xlu0 %v2279, 96
        %v2295 = vpop.permute.xlu0 %2294
        %2296 = vrot.lane.b32.xlu0 %v2280, 96
        %v2297 = vpop.permute.xlu0 %2296
        %2298 = vrot.lane.b32.xlu0 %v2281, 96
        %v2299 = vpop.permute.xlu0 %2298
        %vm2306 = vcmask 1044224
        %2307 = vst.msk [vmem:[#allocation2] sm:$0xf] %vm2306, %v2289
        %2308 = vst.msk [vmem:[#allocation2 + $0x4] sm:$0xf] %vm2306, %v2291
        %2309 = vst.msk [vmem:[#allocation2 + $0x8] sm:$0xf] %vm2306, %v2293
        %2310 = vst.msk [vmem:[#allocation2 + $0xc] sm:$0xf] %vm2306, %v2295
        %2311 = vst.msk [vmem:[#allocation2 + $0x10] sm:$0xf] %vm2306, %v2297
        %2312 = vst.msk [vmem:[#allocation2 + $0x14] sm:$0xf] %vm2306, %v2299
        %v2313 = vld [vmem:[#allocation2] sm:$0xf]
        %v2314 = vld [vmem:[#allocation2 + $0x4] sm:$0xf]
        %v2315 = vld [vmem:[#allocation2 + $0x8] sm:$0xf]
        %v2316 = vld [vmem:[#allocation2 + $0xc] sm:$0xf]
        %v2317 = vld [vmem:[#allocation2 + $0x10] sm:$0xf]
        %v2318 = vld [vmem:[#allocation2 + $0x14] sm:$0xf]
        %v2319 = vperm.slane %v537, 2
        %v2326 = vunpack.c.l.b16 %v2313
        %v2327 = vunpack.c.l.b16 %v2314
        %v2328 = vunpack.c.l.b16 %v2315
        %v2329 = vunpack.c.l.b16 %v2316
        %v2330 = vunpack.c.l.b16 %v2317
        %v2331 = vunpack.c.l.b16 %v2318
        %v2332 = vpack.c.b16 %v2327, %v2326
        %v2333 = vpack.c.b16 %v2329, %v2328
        %v2334 = vpack.c.b16 %v2331, %v2330
        %v2338 = vunpack.c.h.b16 %v370
        %v2339 = vunpack.c.h.b16 %v372
        %v2340 = vunpack.c.h.b16 %v374
        %v2341 = vunpack.c.h.b16 %v376
        %v2342 = vunpack.c.h.b16 %v378
        %v2343 = vunpack.c.h.b16 %v380
        %v2344 = vunpack.c.h.b16 %v382
        %v2345 = vunpack.c.h.b16 %v384
        %v2346 = vunpack.c.h.b16 %v386
        %v2347 = vunpack.c.h.b16 %v388
        %v2348 = vunpack.c.h.b16 %v390
        %v2349 = vunpack.c.h.b16 %v392
        %v2350 = vunpack.c.h.b16 %v394
        %v2351 = vunpack.c.h.b16 %v396
        %v2352 = vunpack.c.h.b16 %v398
        %v2353 = vunpack.c.h.b16 %v400
        %v2354 = vpack.c.b16 %v2339, %v2338
        %v2355 = vpack.c.b16 %v2341, %v2340
        %v2356 = vpack.c.b16 %v2343, %v2342
        %v2357 = vpack.c.b16 %v2345, %v2344
        %v2358 = vpack.c.b16 %v2347, %v2346
        %v2359 = vpack.c.b16 %v2349, %v2348
        %v2360 = vpack.c.b16 %v2351, %v2350
        %v2361 = vpack.c.b16 %v2353, %v2352
        %2370 = vmatpush.bf16.msra.mxu0 %v2361
        %2371 = vmatpush.bf16.msra.mxu0 %v2360
        %2372 = vmatpush.bf16.msra.mxu0 %v2359
        %2373 = vmatpush.bf16.msra.mxu0 %v2358
        %2374 = vmatpush.bf16.msra.mxu0 %v2357
        %2375 = vmatpush.bf16.msra.mxu0 %v2356
        %2376 = vmatpush.bf16.msra.mxu0 %v2355
        %2377 = vmatpush.bf16.msra.mxu0 %v2354
        %2378 = vmatmul.bf16.gmra.mxu0 %v2332
        %v2379 = vpop.f32.mrf.mxu0
        %v2380 = vadd.f32 %v2319, %v2379
        %v2381 = vpop.f32.mrf.mxu0
        %v2382 = vadd.f32 %v2319, %v2381
        %2383 = vmatmul.bf16.gmra.mxu0 %v2333
        %v2384 = vpop.f32.mrf.mxu0
        %v2385 = vadd.f32 %v2319, %v2384
        %v2386 = vpop.f32.mrf.mxu0
        %v2387 = vadd.f32 %v2319, %v2386
        %2388 = vmatmul.bf16.gmra.mxu0 %v2334
        %v2389 = vpop.f32.mrf.mxu0
        %v2390 = vadd.f32 %v2319, %v2389
        %v2391 = vpop.f32.mrf.mxu0
        %v2392 = vadd.f32 %v2319, %v2391
        %2393 = vdwg.mxu0
        %v2394 = vadd.f32 %v541, %v2380
        %v2395 = vadd.f32 %v542, %v2382
        %v2396 = vadd.f32 %v543, %v2385
        %v2397 = vadd.f32 %v544, %v2387
        %v2398 = vadd.f32 %v545, %v2390
        %v2399 = vadd.f32 %v546, %v2392
        %v2400 = vpack.c.bf16 %v2395, %v2394
        %v2401 = vpack.c.bf16 %v2397, %v2396
        %v2402 = vpack.c.bf16 %v2399, %v2398
        %v2403 = vperm.slane %v533, 1
        %v2404 = vperm.slane %v534, 1
        %v2405 = vperm.slane %v535, 1
        %v2406 = vperm.slane %v536, 1
        %v2439 = vunpack.c.l.b16 %v401
        %v2440 = vunpack.c.h.b16 %v401
        %v2441 = vunpack.c.l.b16 %v402
        %v2442 = vunpack.c.h.b16 %v402
        %v2443 = vunpack.c.l.b16 %v403
        %v2444 = vunpack.c.h.b16 %v403
        %v2445 = vunpack.c.l.b16 %v404
        %v2446 = vunpack.c.h.b16 %v404
        %v2447 = vunpack.c.l.b16 %v405
        %v2448 = vunpack.c.h.b16 %v405
        %v2449 = vunpack.c.l.b16 %v406
        %v2450 = vunpack.c.h.b16 %v406
        %v2451 = vunpack.c.l.b16 %v407
        %v2452 = vunpack.c.h.b16 %v407
        %v2453 = vunpack.c.l.b16 %v408
        %v2454 = vunpack.c.h.b16 %v408
        %v2455 = vunpack.c.l.b16 %v409
        %v2456 = vunpack.c.h.b16 %v409
        %v2457 = vunpack.c.l.b16 %v410
        %v2458 = vunpack.c.h.b16 %v410
        %v2459 = vunpack.c.l.b16 %v411
        %v2460 = vunpack.c.h.b16 %v411
        %v2461 = vunpack.c.l.b16 %v412
        %v2462 = vunpack.c.h.b16 %v412
        %v2463 = vunpack.c.l.b16 %v413
        %v2464 = vunpack.c.h.b16 %v413
        %v2465 = vunpack.c.l.b16 %v414
        %v2466 = vunpack.c.h.b16 %v414
        %v2467 = vunpack.c.l.b16 %v415
        %v2468 = vunpack.c.h.b16 %v415
        %v2469 = vunpack.c.l.b16 %v416
        %v2470 = vunpack.c.h.b16 %v416
        %v2471 = vunpack.c.l.b16 %v417
        %v2472 = vunpack.c.h.b16 %v417
        %v2473 = vunpack.c.l.b16 %v418
        %v2474 = vunpack.c.h.b16 %v418
        %v2475 = vunpack.c.l.b16 %v419
        %v2476 = vunpack.c.h.b16 %v419
        %v2477 = vunpack.c.l.b16 %v420
        %v2478 = vunpack.c.h.b16 %v420
        %v2479 = vunpack.c.l.b16 %v421
        %v2480 = vunpack.c.h.b16 %v421
        %v2481 = vunpack.c.l.b16 %v422
        %v2482 = vunpack.c.h.b16 %v422
        %v2483 = vunpack.c.l.b16 %v423
        %v2484 = vunpack.c.h.b16 %v423
        %v2485 = vunpack.c.l.b16 %v424
        %v2486 = vunpack.c.h.b16 %v424
        %v2487 = vunpack.c.l.b16 %v425
        %v2488 = vunpack.c.h.b16 %v425
        %v2489 = vunpack.c.l.b16 %v426
        %v2490 = vunpack.c.h.b16 %v426
        %v2491 = vunpack.c.l.b16 %v427
        %v2492 = vunpack.c.h.b16 %v427
        %v2493 = vunpack.c.l.b16 %v428
        %v2494 = vunpack.c.h.b16 %v428
        %v2495 = vunpack.c.l.b16 %v429
        %v2496 = vunpack.c.h.b16 %v429
        %v2497 = vunpack.c.l.b16 %v430
        %v2498 = vunpack.c.h.b16 %v430
        %v2499 = vunpack.c.l.b16 %v431
        %v2500 = vunpack.c.h.b16 %v431
        %v2501 = vunpack.c.l.b16 %v432
        %v2502 = vunpack.c.h.b16 %v432
        %v2503 = vpack.c.b16 %v2443, %v2439
        %v2504 = vpack.c.b16 %v2444, %v2440
        %v2505 = vpack.c.b16 %v2445, %v2441
        %v2506 = vpack.c.b16 %v2446, %v2442
        %v2507 = vpack.c.b16 %v2451, %v2447
        %v2508 = vpack.c.b16 %v2452, %v2448
        %v2509 = vpack.c.b16 %v2453, %v2449
        %v2510 = vpack.c.b16 %v2454, %v2450
        %v2511 = vpack.c.b16 %v2459, %v2455
        %v2512 = vpack.c.b16 %v2460, %v2456
        %v2513 = vpack.c.b16 %v2461, %v2457
        %v2514 = vpack.c.b16 %v2462, %v2458
        %v2515 = vpack.c.b16 %v2467, %v2463
        %v2516 = vpack.c.b16 %v2468, %v2464
        %v2517 = vpack.c.b16 %v2469, %v2465
        %v2518 = vpack.c.b16 %v2470, %v2466
        %v2519 = vpack.c.b16 %v2475, %v2471
        %v2520 = vpack.c.b16 %v2476, %v2472
        %v2521 = vpack.c.b16 %v2477, %v2473
        %v2522 = vpack.c.b16 %v2478, %v2474
        %v2523 = vpack.c.b16 %v2483, %v2479
        %v2524 = vpack.c.b16 %v2484, %v2480
        %v2525 = vpack.c.b16 %v2485, %v2481
        %v2526 = vpack.c.b16 %v2486, %v2482
        %v2527 = vpack.c.b16 %v2491, %v2487
        %v2528 = vpack.c.b16 %v2492, %v2488
        %v2529 = vpack.c.b16 %v2493, %v2489
        %v2530 = vpack.c.b16 %v2494, %v2490
        %v2531 = vpack.c.b16 %v2499, %v2495
        %v2532 = vpack.c.b16 %v2500, %v2496
        %v2533 = vpack.c.b16 %v2501, %v2497
        %v2534 = vpack.c.b16 %v2502, %v2498
        %2567 = vmatpush.bf16.msra.mxu0 %v2531
        %2568 = vmatpush.bf16.msra.mxu0 %v2527
        %2569 = vmatpush.bf16.msra.mxu0 %v2523
        %2570 = vmatpush.bf16.msra.mxu0 %v2519
        %2571 = vmatpush.bf16.msra.mxu0 %v2515
        %2572 = vmatpush.bf16.msra.mxu0 %v2511
        %2573 = vmatpush.bf16.msra.mxu0 %v2507
        %2574 = vmatpush.bf16.msra.mxu0 %v2503
        %2575 = vmatmul.bf16.gmra.mxu0 %v2400
        %v2576 = vpop.f32.mrf.mxu0
        %v2577 = vadd.f32 %v2403, %v2576
        %v2578 = vpop.f32.mrf.mxu0
        %v2579 = vadd.f32 %v2403, %v2578
        %2580 = vmatmul.bf16.gmra.mxu0 %v2401
        %v2581 = vpop.f32.mrf.mxu0
        %v2582 = vadd.f32 %v2403, %v2581
        %v2583 = vpop.f32.mrf.mxu0
        %v2584 = vadd.f32 %v2403, %v2583
        %2585 = vmatmul.bf16.gmra.mxu0 %v2402
        %v2586 = vpop.f32.mrf.mxu0
        %v2587 = vadd.f32 %v2403, %v2586
        %v2588 = vpop.f32.mrf.mxu0
        %v2589 = vadd.f32 %v2403, %v2588
        %2590 = vdwg.mxu0
        %2591 = vmatpush.bf16.msra.mxu0 %v2532
        %2592 = vmatpush.bf16.msra.mxu0 %v2528
        %2593 = vmatpush.bf16.msra.mxu0 %v2524
        %2594 = vmatpush.bf16.msra.mxu0 %v2520
        %2595 = vmatpush.bf16.msra.mxu0 %v2516
        %2596 = vmatpush.bf16.msra.mxu0 %v2512
        %2597 = vmatpush.bf16.msra.mxu0 %v2508
        %2598 = vmatpush.bf16.msra.mxu0 %v2504
        %2599 = vmatmul.bf16.gmra.mxu0 %v2400
        %v2600 = vpop.f32.mrf.mxu0
        %v2601 = vadd.f32 %v2404, %v2600
        %v2602 = vpop.f32.mrf.mxu0
        %v2603 = vadd.f32 %v2404, %v2602
        %2604 = vmatmul.bf16.gmra.mxu0 %v2401
        %v2605 = vpop.f32.mrf.mxu0
        %v2606 = vadd.f32 %v2404, %v2605
        %v2607 = vpop.f32.mrf.mxu0
        %v2608 = vadd.f32 %v2404, %v2607
        %2609 = vmatmul.bf16.gmra.mxu0 %v2402
        %v2610 = vpop.f32.mrf.mxu0
        %v2611 = vadd.f32 %v2404, %v2610
        %v2612 = vpop.f32.mrf.mxu0
        %v2613 = vadd.f32 %v2404, %v2612
        %2614 = vdwg.mxu0
        %2615 = vmatpush.bf16.msra.mxu0 %v2533
        %2616 = vmatpush.bf16.msra.mxu0 %v2529
        %2617 = vmatpush.bf16.msra.mxu0 %v2525
        %2618 = vmatpush.bf16.msra.mxu0 %v2521
        %2619 = vmatpush.bf16.msra.mxu0 %v2517
        %2620 = vmatpush.bf16.msra.mxu0 %v2513
        %2621 = vmatpush.bf16.msra.mxu0 %v2509
        %2622 = vmatpush.bf16.msra.mxu0 %v2505
        %2623 = vmatmul.bf16.gmra.mxu0 %v2400
        %v2624 = vpop.f32.mrf.mxu0
        %v2625 = vadd.f32 %v2405, %v2624
        %v2626 = vpop.f32.mrf.mxu0
        %v2627 = vadd.f32 %v2405, %v2626
        %2628 = vmatmul.bf16.gmra.mxu0 %v2401
        %v2629 = vpop.f32.mrf.mxu0
        %v2630 = vadd.f32 %v2405, %v2629
        %v2631 = vpop.f32.mrf.mxu0
        %v2632 = vadd.f32 %v2405, %v2631
        %2633 = vmatmul.bf16.gmra.mxu0 %v2402
        %v2634 = vpop.f32.mrf.mxu0
        %v2635 = vadd.f32 %v2405, %v2634
        %v2636 = vpop.f32.mrf.mxu0
        %v2637 = vadd.f32 %v2405, %v2636
        %2638 = vdwg.mxu0
        %2639 = vmatpush.bf16.msra.mxu0 %v2534
        %2640 = vmatpush.bf16.msra.mxu0 %v2530
        %2641 = vmatpush.bf16.msra.mxu0 %v2526
        %2642 = vmatpush.bf16.msra.mxu0 %v2522
        %2643 = vmatpush.bf16.msra.mxu0 %v2518
        %2644 = vmatpush.bf16.msra.mxu0 %v2514
        %2645 = vmatpush.bf16.msra.mxu0 %v2510
        %2646 = vmatpush.bf16.msra.mxu0 %v2506
        %2647 = vmatmul.bf16.gmra.mxu0 %v2400
        %v2648 = vpop.f32.mrf.mxu0
        %v2649 = vadd.f32 %v2406, %v2648
        %v2650 = vpop.f32.mrf.mxu0
        %v2651 = vadd.f32 %v2406, %v2650
        %2652 = vmatmul.bf16.gmra.mxu0 %v2401
        %v2653 = vpop.f32.mrf.mxu0
        %v2654 = vadd.f32 %v2406, %v2653
        %v2655 = vpop.f32.mrf.mxu0
        %v2656 = vadd.f32 %v2406, %v2655
        %2657 = vmatmul.bf16.gmra.mxu0 %v2402
        %v2658 = vpop.f32.mrf.mxu0
        %v2659 = vadd.f32 %v2406, %v2658
        %v2660 = vpop.f32.mrf.mxu0
        %v2661 = vadd.f32 %v2406, %v2660
        %2662 = vdwg.mxu0
        %v2663 = vadd.f32 %v2577, 3.0
        %v2664 = vadd.f32 %v2601, 3.0
        %v2665 = vadd.f32 %v2625, 3.0
        %v2666 = vadd.f32 %v2649, 3.0
        %v2667 = vadd.f32 %v2579, 3.0
        %v2668 = vadd.f32 %v2603, 3.0
        %v2669 = vadd.f32 %v2627, 3.0
        %v2670 = vadd.f32 %v2651, 3.0
        %v2671 = vadd.f32 %v2582, 3.0
        %v2672 = vadd.f32 %v2606, 3.0
        %v2673 = vadd.f32 %v2630, 3.0
        %v2674 = vadd.f32 %v2654, 3.0
        %v2675 = vadd.f32 %v2584, 3.0
        %v2676 = vadd.f32 %v2608, 3.0
        %v2677 = vadd.f32 %v2632, 3.0
        %v2678 = vadd.f32 %v2656, 3.0
        %v2679 = vadd.f32 %v2587, 3.0
        %v2680 = vadd.f32 %v2611, 3.0
        %v2681 = vadd.f32 %v2635, 3.0
        %v2682 = vadd.f32 %v2659, 3.0
        %v2683 = vadd.f32 %v2589, 3.0
        %v2684 = vadd.f32 %v2613, 3.0
        %v2685 = vadd.f32 %v2637, 3.0
        %v2686 = vadd.f32 %v2661, 3.0
        %v2687 = vmax.f32 %v2663, 0.0
        %v2688 = vmax.f32 %v2664, 0.0
        %v2689 = vmax.f32 %v2665, 0.0
        %v2690 = vmax.f32 %v2666, 0.0
        %v2691 = vmax.f32 %v2667, 0.0
        %v2692 = vmax.f32 %v2668, 0.0
        %v2693 = vmax.f32 %v2669, 0.0
        %v2694 = vmax.f32 %v2670, 0.0
        %v2695 = vmax.f32 %v2671, 0.0
        %v2696 = vmax.f32 %v2672, 0.0
        %v2697 = vmax.f32 %v2673, 0.0
        %v2698 = vmax.f32 %v2674, 0.0
        %v2699 = vmax.f32 %v2675, 0.0
        %v2700 = vmax.f32 %v2676, 0.0
        %v2701 = vmax.f32 %v2677, 0.0
        %v2702 = vmax.f32 %v2678, 0.0
        %v2703 = vmax.f32 %v2679, 0.0
        %v2704 = vmax.f32 %v2680, 0.0
        %v2705 = vmax.f32 %v2681, 0.0
        %v2706 = vmax.f32 %v2682, 0.0
        %v2707 = vmax.f32 %v2683, 0.0
        %v2708 = vmax.f32 %v2684, 0.0
        %v2709 = vmax.f32 %v2685, 0.0
        %v2710 = vmax.f32 %v2686, 0.0
        %v2711 = vmin.f32 %v2687, 6.0
        %v2712 = vmin.f32 %v2688, 6.0
        %v2713 = vmin.f32 %v2689, 6.0
        %v2714 = vmin.f32 %v2690, 6.0
        %v2715 = vmin.f32 %v2691, 6.0
        %v2716 = vmin.f32 %v2692, 6.0
        %v2717 = vmin.f32 %v2693, 6.0
        %v2718 = vmin.f32 %v2694, 6.0
        %v2719 = vmin.f32 %v2695, 6.0
        %v2720 = vmin.f32 %v2696, 6.0
        %v2721 = vmin.f32 %v2697, 6.0
        %v2722 = vmin.f32 %v2698, 6.0
        %v2723 = vmin.f32 %v2699, 6.0
        %v2724 = vmin.f32 %v2700, 6.0
        %v2725 = vmin.f32 %v2701, 6.0
        %v2726 = vmin.f32 %v2702, 6.0
        %v2727 = vmin.f32 %v2703, 6.0
        %v2728 = vmin.f32 %v2704, 6.0
        %v2729 = vmin.f32 %v2705, 6.0
        %v2730 = vmin.f32 %v2706, 6.0
        %v2731 = vmin.f32 %v2707, 6.0
        %v2732 = vmin.f32 %v2708, 6.0
        %v2733 = vmin.f32 %v2709, 6.0
        %v2734 = vmin.f32 %v2710, 6.0
        %v2735 = vmul.f32 %v2711, 0.16666667
        %v2736 = vmul.f32 %v2712, 0.16666667
        %v2737 = vmul.f32 %v2713, 0.16666667
        %v2738 = vmul.f32 %v2714, 0.16666667
        %v2739 = vmul.f32 %v2715, 0.16666667
        %v2740 = vmul.f32 %v2716, 0.16666667
        %v2741 = vmul.f32 %v2717, 0.16666667
        %v2742 = vmul.f32 %v2718, 0.16666667
        %v2743 = vmul.f32 %v2719, 0.16666667
        %v2744 = vmul.f32 %v2720, 0.16666667
        %v2745 = vmul.f32 %v2721, 0.16666667
        %v2746 = vmul.f32 %v2722, 0.16666667
        %v2747 = vmul.f32 %v2723, 0.16666667
        %v2748 = vmul.f32 %v2724, 0.16666667
        %v2749 = vmul.f32 %v2725, 0.16666667
        %v2750 = vmul.f32 %v2726, 0.16666667
        %v2751 = vmul.f32 %v2727, 0.16666667
        %v2752 = vmul.f32 %v2728, 0.16666667
        %v2753 = vmul.f32 %v2729, 0.16666667
        %v2754 = vmul.f32 %v2730, 0.16666667
        %v2755 = vmul.f32 %v2731, 0.16666667
        %v2756 = vmul.f32 %v2732, 0.16666667
        %v2757 = vmul.f32 %v2733, 0.16666667
        %v2758 = vmul.f32 %v2734, 0.16666667
        %v2759 = vmul.f32 %v2577, %v2735
        %v2760 = vmul.f32 %v2601, %v2736
        %v2761 = vmul.f32 %v2625, %v2737
        %v2762 = vmul.f32 %v2649, %v2738
        %v2763 = vmul.f32 %v2579, %v2739
        %v2764 = vmul.f32 %v2603, %v2740
        %v2765 = vmul.f32 %v2627, %v2741
        %v2766 = vmul.f32 %v2651, %v2742
        %v2767 = vmul.f32 %v2582, %v2743
        %v2768 = vmul.f32 %v2606, %v2744
        %v2769 = vmul.f32 %v2630, %v2745
        %v2770 = vmul.f32 %v2654, %v2746
        %v2771 = vmul.f32 %v2584, %v2747
        %v2772 = vmul.f32 %v2608, %v2748
        %v2773 = vmul.f32 %v2632, %v2749
        %v2774 = vmul.f32 %v2656, %v2750
        %v2775 = vmul.f32 %v2587, %v2751
        %v2776 = vmul.f32 %v2611, %v2752
        %v2777 = vmul.f32 %v2635, %v2753
        %v2778 = vmul.f32 %v2659, %v2754
        %v2779 = vmul.f32 %v2589, %v2755
        %v2780 = vmul.f32 %v2613, %v2756
        %v2781 = vmul.f32 %v2637, %v2757
        %v2782 = vmul.f32 %v2661, %v2758
        %v2783 = vrot.slane %v2759, 3
        %v2784 = vrot.slane %v2760, 3
        %v2785 = vrot.slane %v2761, 3
        %v2786 = vrot.slane %v2762, 3
        %v2787 = vrot.slane %v2763, 3
        %v2788 = vrot.slane %v2764, 3
        %v2789 = vrot.slane %v2765, 3
        %v2790 = vrot.slane %v2766, 3
        %v2791 = vrot.slane %v2767, 3
        %v2792 = vrot.slane %v2768, 3
        %v2793 = vrot.slane %v2769, 3
        %v2794 = vrot.slane %v2770, 3
        %v2795 = vrot.slane %v2771, 3
        %v2796 = vrot.slane %v2772, 3
        %v2797 = vrot.slane %v2773, 3
        %v2798 = vrot.slane %v2774, 3
        %v2799 = vrot.slane %v2775, 3
        %v2800 = vrot.slane %v2776, 3
        %v2801 = vrot.slane %v2777, 3
        %v2802 = vrot.slane %v2778, 3
        %v2803 = vrot.slane %v2779, 3
        %v2804 = vrot.slane %v2780, 3
        %v2805 = vrot.slane %v2781, 3
        %v2806 = vrot.slane %v2782, 3
        %v2807 = vlaneseq
        %v2808 = vshrl.u32 %v2807, 7
        %vm2809 = vcmp.lt.s32.totalorder %v2808, 5
        %v2810 = vsel %vm2809, %v2799, %v2803
        %v2811 = vsel %vm2809, %v2800, %v2804
        %v2812 = vsel %vm2809, %v2801, %v2805
        %v2813 = vsel %vm2809, %v2802, %v2806
        %v2814 = vsel %vm2809, %v2795, %v2799
        %v2815 = vsel %vm2809, %v2796, %v2800
        %v2816 = vsel %vm2809, %v2797, %v2801
        %v2817 = vsel %vm2809, %v2798, %v2802
        %v2818 = vsel %vm2809, %v2791, %v2795
        %v2819 = vsel %vm2809, %v2792, %v2796
        %v2820 = vsel %vm2809, %v2793, %v2797
        %v2821 = vsel %vm2809, %v2794, %v2798
        %v2822 = vsel %vm2809, %v2787, %v2791
        %v2823 = vsel %vm2809, %v2788, %v2792
        %v2824 = vsel %vm2809, %v2789, %v2793
        %v2825 = vsel %vm2809, %v2790, %v2794
        %v2826 = vsel %vm2809, %v2783, %v2787
        %v2827 = vsel %vm2809, %v2784, %v2788
        %v2828 = vsel %vm2809, %v2785, %v2789
        %v2829 = vsel %vm2809, %v2786, %v2790
        %v2830 = vsel %vm2809, %v2803, %v2783
        %v2831 = vsel %vm2809, %v2804, %v2784
        %v2832 = vsel %vm2809, %v2805, %v2785
        %v2833 = vsel %vm2809, %v2806, %v2786
        %2835 = vset.pattern.permute.xlu0 0
        %2836 = vperm.xlu0 %2835, %v538
        %v2837 = vpop.permute.xlu0 %2836
        %2840 = vset.pattern.permute.xlu0 0
        %2841 = vperm.xlu0 %2840, %v539
        %v2842 = vpop.permute.xlu0 %2841
        %2845 = vset.pattern.permute.xlu0 0
        %2846 = vperm.xlu0 %2845, %v540
        %v2847 = vpop.permute.xlu0 %2846
        %v2849 = vperm.slane %v529, 0
        %v2850 = vperm.slane %v530, 0
        %v2851 = vperm.slane %v531, 0
        %v2852 = vperm.slane %v532, 0
        %v2853 = vmul.f32 %v2837, %v2849
        %v2854 = vmul.f32 %v2837, %v2850
        %v2855 = vmul.f32 %v2837, %v2851
        %v2856 = vmul.f32 %v2837, %v2852
        %v2857 = vmul.f32 %v2842, %v2849
        %v2858 = vmul.f32 %v2842, %v2850
        %v2859 = vmul.f32 %v2842, %v2851
        %v2860 = vmul.f32 %v2842, %v2852
        %v2861 = vmul.f32 %v2847, %v2849
        %v2862 = vmul.f32 %v2847, %v2850
        %v2863 = vmul.f32 %v2847, %v2851
        %v2864 = vmul.f32 %v2847, %v2852
        %v2865 = vmul.f32 %v2830, %v2853
        %v2866 = vmul.f32 %v2831, %v2854
        %v2867 = vmul.f32 %v2832, %v2855
        %v2868 = vmul.f32 %v2833, %v2856
        %v2869 = vmul.f32 %v2826, %v2857
        %v2870 = vmul.f32 %v2827, %v2858
        %v2871 = vmul.f32 %v2828, %v2859
        %v2872 = vmul.f32 %v2829, %v2860
        %v2873 = vmul.f32 %v2822, %v2861
        %v2874 = vmul.f32 %v2823, %v2862
        %v2875 = vmul.f32 %v2824, %v2863
        %v2876 = vmul.f32 %v2825, %v2864
        %v2877 = vmul.f32 %v2818, %v2853
        %v2878 = vmul.f32 %v2819, %v2854
        %v2879 = vmul.f32 %v2820, %v2855
        %v2880 = vmul.f32 %v2821, %v2856
        %v2881 = vmul.f32 %v2814, %v2857
        %v2882 = vmul.f32 %v2815, %v2858
        %v2883 = vmul.f32 %v2816, %v2859
        %v2884 = vmul.f32 %v2817, %v2860
        %v2885 = vmul.f32 %v2810, %v2861
        %v2886 = vmul.f32 %v2811, %v2862
        %v2887 = vmul.f32 %v2812, %v2863
        %v2888 = vmul.f32 %v2813, %v2864
        %v2889 = vadd.f32 %v2865, 0.0
        %v2890 = vadd.f32 %v2866, 0.0
        %v2891 = vadd.f32 %v2867, 0.0
        %v2892 = vadd.f32 %v2868, 0.0
        %v2893 = vadd.f32 %v2869, 0.0
        %v2894 = vadd.f32 %v2870, 0.0
        %v2895 = vadd.f32 %v2871, 0.0
        %v2896 = vadd.f32 %v2872, 0.0
        %v2897 = vadd.f32 %v2873, 0.0
        %v2898 = vadd.f32 %v2874, 0.0
        %v2899 = vadd.f32 %v2875, 0.0
        %v2900 = vadd.f32 %v2876, 0.0
        %v2901 = vadd.f32 %v2877, 0.0
        %v2902 = vadd.f32 %v2878, 0.0
        %v2903 = vadd.f32 %v2879, 0.0
        %v2904 = vadd.f32 %v2880, 0.0
        %v2905 = vadd.f32 %v2881, 0.0
        %v2906 = vadd.f32 %v2882, 0.0
        %v2907 = vadd.f32 %v2883, 0.0
        %v2908 = vadd.f32 %v2884, 0.0
        %v2909 = vadd.f32 %v2885, 0.0
        %v2910 = vadd.f32 %v2886, 0.0
        %v2911 = vadd.f32 %v2887, 0.0
        %v2912 = vadd.f32 %v2888, 0.0
        %v2913 = vrot.slane %v2759, 4
        %v2914 = vrot.slane %v2760, 4
        %v2915 = vrot.slane %v2761, 4
        %v2916 = vrot.slane %v2762, 4
        %v2917 = vrot.slane %v2763, 4
        %v2918 = vrot.slane %v2764, 4
        %v2919 = vrot.slane %v2765, 4
        %v2920 = vrot.slane %v2766, 4
        %v2921 = vrot.slane %v2767, 4
        %v2922 = vrot.slane %v2768, 4
        %v2923 = vrot.slane %v2769, 4
        %v2924 = vrot.slane %v2770, 4
        %v2925 = vrot.slane %v2771, 4
        %v2926 = vrot.slane %v2772, 4
        %v2927 = vrot.slane %v2773, 4
        %v2928 = vrot.slane %v2774, 4
        %v2929 = vrot.slane %v2775, 4
        %v2930 = vrot.slane %v2776, 4
        %v2931 = vrot.slane %v2777, 4
        %v2932 = vrot.slane %v2778, 4
        %v2933 = vrot.slane %v2779, 4
        %v2934 = vrot.slane %v2780, 4
        %v2935 = vrot.slane %v2781, 4
        %v2936 = vrot.slane %v2782, 4
        %vm2937 = vcmp.lt.s32.totalorder %v2808, 4
        %v2938 = vsel %vm2937, %v2929, %v2933
        %v2939 = vsel %vm2937, %v2930, %v2934
        %v2940 = vsel %vm2937, %v2931, %v2935
        %v2941 = vsel %vm2937, %v2932, %v2936
        %v2942 = vsel %vm2937, %v2925, %v2929
        %v2943 = vsel %vm2937, %v2926, %v2930
        %v2944 = vsel %vm2937, %v2927, %v2931
        %v2945 = vsel %vm2937, %v2928, %v2932
        %v2946 = vsel %vm2937, %v2921, %v2925
        %v2947 = vsel %vm2937, %v2922, %v2926
        %v2948 = vsel %vm2937, %v2923, %v2927
        %v2949 = vsel %vm2937, %v2924, %v2928
        %v2950 = vsel %vm2937, %v2917, %v2921
        %v2951 = vsel %vm2937, %v2918, %v2922
        %v2952 = vsel %vm2937, %v2919, %v2923
        %v2953 = vsel %vm2937, %v2920, %v2924
        %v2954 = vsel %vm2937, %v2913, %v2917
        %v2955 = vsel %vm2937, %v2914, %v2918
        %v2956 = vsel %vm2937, %v2915, %v2919
        %v2957 = vsel %vm2937, %v2916, %v2920
        %v2958 = vsel %vm2937, %v2933, %v2913
        %v2959 = vsel %vm2937, %v2934, %v2914
        %v2960 = vsel %vm2937, %v2935, %v2915
        %v2961 = vsel %vm2937, %v2936, %v2916
        %2962 = vset.pattern.permute.xlu0 1
        %2963 = vperm.xlu0 %2962, %v538
        %v2964 = vpop.permute.xlu0 %2963
        %2966 = vset.pattern.permute.xlu0 1
        %2967 = vperm.xlu0 %2966, %v539
        %v2968 = vpop.permute.xlu0 %2967
        %2970 = vset.pattern.permute.xlu0 1
        %2971 = vperm.xlu0 %2970, %v540
        %v2972 = vpop.permute.xlu0 %2971
        %v2974 = vperm.slane %v529, 1
        %v2975 = vperm.slane %v530, 1
        %v2976 = vperm.slane %v531, 1
        %v2977 = vperm.slane %v532, 1
        %v2978 = vmul.f32 %v2964, %v2974
        %v2979 = vmul.f32 %v2964, %v2975
        %v2980 = vmul.f32 %v2964, %v2976
        %v2981 = vmul.f32 %v2964, %v2977
        %v2982 = vmul.f32 %v2968, %v2974
        %v2983 = vmul.f32 %v2968, %v2975
        %v2984 = vmul.f32 %v2968, %v2976
        %v2985 = vmul.f32 %v2968, %v2977
        %v2986 = vmul.f32 %v2972, %v2974
        %v2987 = vmul.f32 %v2972, %v2975
        %v2988 = vmul.f32 %v2972, %v2976
        %v2989 = vmul.f32 %v2972, %v2977
        %v2990 = vmul.f32 %v2958, %v2978
        %v2991 = vmul.f32 %v2959, %v2979
        %v2992 = vmul.f32 %v2960, %v2980
        %v2993 = vmul.f32 %v2961, %v2981
        %v2994 = vmul.f32 %v2954, %v2982
        %v2995 = vmul.f32 %v2955, %v2983
        %v2996 = vmul.f32 %v2956, %v2984
        %v2997 = vmul.f32 %v2957, %v2985
        %v2998 = vmul.f32 %v2950, %v2986
        %v2999 = vmul.f32 %v2951, %v2987
        %v3000 = vmul.f32 %v2952, %v2988
        %v3001 = vmul.f32 %v2953, %v2989
        %v3002 = vmul.f32 %v2946, %v2978
        %v3003 = vmul.f32 %v2947, %v2979
        %v3004 = vmul.f32 %v2948, %v2980
        %v3005 = vmul.f32 %v2949, %v2981
        %v3006 = vmul.f32 %v2942, %v2982
        %v3007 = vmul.f32 %v2943, %v2983
        %v3008 = vmul.f32 %v2944, %v2984
        %v3009 = vmul.f32 %v2945, %v2985
        %v3010 = vmul.f32 %v2938, %v2986
        %v3011 = vmul.f32 %v2939, %v2987
        %v3012 = vmul.f32 %v2940, %v2988
        %v3013 = vmul.f32 %v2941, %v2989
        %v3014 = vadd.f32 %v2889, %v2990
        %v3015 = vadd.f32 %v2890, %v2991
        %v3016 = vadd.f32 %v2891, %v2992
        %v3017 = vadd.f32 %v2892, %v2993
        %v3018 = vadd.f32 %v2893, %v2994
        %v3019 = vadd.f32 %v2894, %v2995
        %v3020 = vadd.f32 %v2895, %v2996
        %v3021 = vadd.f32 %v2896, %v2997
        %v3022 = vadd.f32 %v2897, %v2998
        %v3023 = vadd.f32 %v2898, %v2999
        %v3024 = vadd.f32 %v2899, %v3000
        %v3025 = vadd.f32 %v2900, %v3001
        %v3026 = vadd.f32 %v2901, %v3002
        %v3027 = vadd.f32 %v2902, %v3003
        %v3028 = vadd.f32 %v2903, %v3004
        %v3029 = vadd.f32 %v2904, %v3005
        %v3030 = vadd.f32 %v2905, %v3006
        %v3031 = vadd.f32 %v2906, %v3007
        %v3032 = vadd.f32 %v2907, %v3008
        %v3033 = vadd.f32 %v2908, %v3009
        %v3034 = vadd.f32 %v2909, %v3010
        %v3035 = vadd.f32 %v2910, %v3011
        %v3036 = vadd.f32 %v2911, %v3012
        %v3037 = vadd.f32 %v2912, %v3013
        %v3038 = vrot.slane %v2759, 5
        %v3039 = vrot.slane %v2760, 5
        %v3040 = vrot.slane %v2761, 5
        %v3041 = vrot.slane %v2762, 5
        %v3042 = vrot.slane %v2763, 5
        %v3043 = vrot.slane %v2764, 5
        %v3044 = vrot.slane %v2765, 5
        %v3045 = vrot.slane %v2766, 5
        %v3046 = vrot.slane %v2767, 5
        %v3047 = vrot.slane %v2768, 5
        %v3048 = vrot.slane %v2769, 5
        %v3049 = vrot.slane %v2770, 5
        %v3050 = vrot.slane %v2771, 5
        %v3051 = vrot.slane %v2772, 5
        %v3052 = vrot.slane %v2773, 5
        %v3053 = vrot.slane %v2774, 5
        %v3054 = vrot.slane %v2775, 5
        %v3055 = vrot.slane %v2776, 5
        %v3056 = vrot.slane %v2777, 5
        %v3057 = vrot.slane %v2778, 5
        %v3058 = vrot.slane %v2779, 5
        %v3059 = vrot.slane %v2780, 5
        %v3060 = vrot.slane %v2781, 5
        %v3061 = vrot.slane %v2782, 5
        %vm3062 = vcmp.lt.s32.totalorder %v2808, 3
        %v3063 = vsel %vm3062, %v3054, %v3058
        %v3064 = vsel %vm3062, %v3055, %v3059
        %v3065 = vsel %vm3062, %v3056, %v3060
        %v3066 = vsel %vm3062, %v3057, %v3061
        %v3067 = vsel %vm3062, %v3050, %v3054
        %v3068 = vsel %vm3062, %v3051, %v3055
        %v3069 = vsel %vm3062, %v3052, %v3056
        %v3070 = vsel %vm3062, %v3053, %v3057
        %v3071 = vsel %vm3062, %v3046, %v3050
        %v3072 = vsel %vm3062, %v3047, %v3051
        %v3073 = vsel %vm3062, %v3048, %v3052
        %v3074 = vsel %vm3062, %v3049, %v3053
        %v3075 = vsel %vm3062, %v3042, %v3046
        %v3076 = vsel %vm3062, %v3043, %v3047
        %v3077 = vsel %vm3062, %v3044, %v3048
        %v3078 = vsel %vm3062, %v3045, %v3049
        %v3079 = vsel %vm3062, %v3038, %v3042
        %v3080 = vsel %vm3062, %v3039, %v3043
        %v3081 = vsel %vm3062, %v3040, %v3044
        %v3082 = vsel %vm3062, %v3041, %v3045
        %v3083 = vsel %vm3062, %v3058, %v3038
        %v3084 = vsel %vm3062, %v3059, %v3039
        %v3085 = vsel %vm3062, %v3060, %v3040
        %v3086 = vsel %vm3062, %v3061, %v3041
        %3087 = vset.pattern.permute.xlu0 2
        %3088 = vperm.xlu0 %3087, %v538
        %v3089 = vpop.permute.xlu0 %3088
        %3091 = vset.pattern.permute.xlu0 2
        %3092 = vperm.xlu0 %3091, %v539
        %v3093 = vpop.permute.xlu0 %3092
        %3095 = vset.pattern.permute.xlu0 2
        %3096 = vperm.xlu0 %3095, %v540
        %v3097 = vpop.permute.xlu0 %3096
        %v3099 = vperm.slane %v529, 2
        %v3100 = vperm.slane %v530, 2
        %v3101 = vperm.slane %v531, 2
        %v3102 = vperm.slane %v532, 2
        %v3103 = vmul.f32 %v3089, %v3099
        %v3104 = vmul.f32 %v3089, %v3100
        %v3105 = vmul.f32 %v3089, %v3101
        %v3106 = vmul.f32 %v3089, %v3102
        %v3107 = vmul.f32 %v3093, %v3099
        %v3108 = vmul.f32 %v3093, %v3100
        %v3109 = vmul.f32 %v3093, %v3101
        %v3110 = vmul.f32 %v3093, %v3102
        %v3111 = vmul.f32 %v3097, %v3099
        %v3112 = vmul.f32 %v3097, %v3100
        %v3113 = vmul.f32 %v3097, %v3101
        %v3114 = vmul.f32 %v3097, %v3102
        %v3115 = vmul.f32 %v3083, %v3103
        %v3116 = vmul.f32 %v3084, %v3104
        %v3117 = vmul.f32 %v3085, %v3105
        %v3118 = vmul.f32 %v3086, %v3106
        %v3119 = vmul.f32 %v3079, %v3107
        %v3120 = vmul.f32 %v3080, %v3108
        %v3121 = vmul.f32 %v3081, %v3109
        %v3122 = vmul.f32 %v3082, %v3110
        %v3123 = vmul.f32 %v3075, %v3111
        %v3124 = vmul.f32 %v3076, %v3112
        %v3125 = vmul.f32 %v3077, %v3113
        %v3126 = vmul.f32 %v3078, %v3114
        %v3127 = vmul.f32 %v3071, %v3103
        %v3128 = vmul.f32 %v3072, %v3104
        %v3129 = vmul.f32 %v3073, %v3105
        %v3130 = vmul.f32 %v3074, %v3106
        %v3131 = vmul.f32 %v3067, %v3107
        %v3132 = vmul.f32 %v3068, %v3108
        %v3133 = vmul.f32 %v3069, %v3109
        %v3134 = vmul.f32 %v3070, %v3110
        %v3135 = vmul.f32 %v3063, %v3111
        %v3136 = vmul.f32 %v3064, %v3112
        %v3137 = vmul.f32 %v3065, %v3113
        %v3138 = vmul.f32 %v3066, %v3114
        %v3139 = vadd.f32 %v3014, %v3115
        %v3140 = vadd.f32 %v3015, %v3116
        %v3141 = vadd.f32 %v3016, %v3117
        %v3142 = vadd.f32 %v3017, %v3118
        %v3143 = vadd.f32 %v3018, %v3119
        %v3144 = vadd.f32 %v3019, %v3120
        %v3145 = vadd.f32 %v3020, %v3121
        %v3146 = vadd.f32 %v3021, %v3122
        %v3147 = vadd.f32 %v3022, %v3123
        %v3148 = vadd.f32 %v3023, %v3124
        %v3149 = vadd.f32 %v3024, %v3125
        %v3150 = vadd.f32 %v3025, %v3126
        %v3151 = vadd.f32 %v3026, %v3127
        %v3152 = vadd.f32 %v3027, %v3128
        %v3153 = vadd.f32 %v3028, %v3129
        %v3154 = vadd.f32 %v3029, %v3130
        %v3155 = vadd.f32 %v3030, %v3131
        %v3156 = vadd.f32 %v3031, %v3132
        %v3157 = vadd.f32 %v3032, %v3133
        %v3158 = vadd.f32 %v3033, %v3134
        %v3159 = vadd.f32 %v3034, %v3135
        %v3160 = vadd.f32 %v3035, %v3136
        %v3161 = vadd.f32 %v3036, %v3137
        %v3162 = vadd.f32 %v3037, %v3138
        %v3163 = vrot.slane %v2759, 7
        %v3164 = vrot.slane %v2760, 7
        %v3165 = vrot.slane %v2761, 7
        %v3166 = vrot.slane %v2762, 7
        %v3167 = vrot.slane %v2763, 7
        %v3168 = vrot.slane %v2764, 7
        %v3169 = vrot.slane %v2765, 7
        %v3170 = vrot.slane %v2766, 7
        %v3171 = vrot.slane %v2767, 7
        %v3172 = vrot.slane %v2768, 7
        %v3173 = vrot.slane %v2769, 7
        %v3174 = vrot.slane %v2770, 7
        %v3175 = vrot.slane %v2771, 7
        %v3176 = vrot.slane %v2772, 7
        %v3177 = vrot.slane %v2773, 7
        %v3178 = vrot.slane %v2774, 7
        %v3179 = vrot.slane %v2775, 7
        %v3180 = vrot.slane %v2776, 7
        %v3181 = vrot.slane %v2777, 7
        %v3182 = vrot.slane %v2778, 7
        %v3183 = vrot.slane %v2779, 7
        %v3184 = vrot.slane %v2780, 7
        %v3185 = vrot.slane %v2781, 7
        %v3186 = vrot.slane %v2782, 7
        %vm3187 = vcmp.lt.s32.totalorder %v2808, 1
        %v3188 = vsel %vm3187, %v3179, %v3183
        %v3189 = vsel %vm3187, %v3180, %v3184
        %v3190 = vsel %vm3187, %v3181, %v3185
        %v3191 = vsel %vm3187, %v3182, %v3186
        %v3192 = vsel %vm3187, %v3175, %v3179
        %v3193 = vsel %vm3187, %v3176, %v3180
        %v3194 = vsel %vm3187, %v3177, %v3181
        %v3195 = vsel %vm3187, %v3178, %v3182
        %v3196 = vsel %vm3187, %v3171, %v3175
        %v3197 = vsel %vm3187, %v3172, %v3176
        %v3198 = vsel %vm3187, %v3173, %v3177
        %v3199 = vsel %vm3187, %v3174, %v3178
        %v3200 = vsel %vm3187, %v3167, %v3171
        %v3201 = vsel %vm3187, %v3168, %v3172
        %v3202 = vsel %vm3187, %v3169, %v3173
        %v3203 = vsel %vm3187, %v3170, %v3174
        %v3204 = vsel %vm3187, %v3163, %v3167
        %v3205 = vsel %vm3187, %v3164, %v3168
        %v3206 = vsel %vm3187, %v3165, %v3169
        %v3207 = vsel %vm3187, %v3166, %v3170
        %v3208 = vsel %vm3187, %v3183, %v3163
        %v3209 = vsel %vm3187, %v3184, %v3164
        %v3210 = vsel %vm3187, %v3185, %v3165
        %v3211 = vsel %vm3187, %v3186, %v3166
        %3212 = vset.pattern.permute.xlu0 3
        %3213 = vperm.xlu0 %3212, %v538
        %v3214 = vpop.permute.xlu0 %3213
        %3216 = vset.pattern.permute.xlu0 3
        %3217 = vperm.xlu0 %3216, %v539
        %v3218 = vpop.permute.xlu0 %3217
        %3220 = vset.pattern.permute.xlu0 3
        %3221 = vperm.xlu0 %3220, %v540
        %v3222 = vpop.permute.xlu0 %3221
        %v3224 = vperm.slane %v529, 3
        %v3225 = vperm.slane %v530, 3
        %v3226 = vperm.slane %v531, 3
        %v3227 = vperm.slane %v532, 3
        %v3228 = vmul.f32 %v3214, %v3224
        %v3229 = vmul.f32 %v3214, %v3225
        %v3230 = vmul.f32 %v3214, %v3226
        %v3231 = vmul.f32 %v3214, %v3227
        %v3232 = vmul.f32 %v3218, %v3224
        %v3233 = vmul.f32 %v3218, %v3225
        %v3234 = vmul.f32 %v3218, %v3226
        %v3235 = vmul.f32 %v3218, %v3227
        %v3236 = vmul.f32 %v3222, %v3224
        %v3237 = vmul.f32 %v3222, %v3225
        %v3238 = vmul.f32 %v3222, %v3226
        %v3239 = vmul.f32 %v3222, %v3227
        %v3240 = vmul.f32 %v3208, %v3228
        %v3241 = vmul.f32 %v3209, %v3229
        %v3242 = vmul.f32 %v3210, %v3230
        %v3243 = vmul.f32 %v3211, %v3231
        %v3244 = vmul.f32 %v3204, %v3232
        %v3245 = vmul.f32 %v3205, %v3233
        %v3246 = vmul.f32 %v3206, %v3234
        %v3247 = vmul.f32 %v3207, %v3235
        %v3248 = vmul.f32 %v3200, %v3236
        %v3249 = vmul.f32 %v3201, %v3237
        %v3250 = vmul.f32 %v3202, %v3238
        %v3251 = vmul.f32 %v3203, %v3239
        %v3252 = vmul.f32 %v3196, %v3228
        %v3253 = vmul.f32 %v3197, %v3229
        %v3254 = vmul.f32 %v3198, %v3230
        %v3255 = vmul.f32 %v3199, %v3231
        %v3256 = vmul.f32 %v3192, %v3232
        %v3257 = vmul.f32 %v3193, %v3233
        %v3258 = vmul.f32 %v3194, %v3234
        %v3259 = vmul.f32 %v3195, %v3235
        %v3260 = vmul.f32 %v3188, %v3236
        %v3261 = vmul.f32 %v3189, %v3237
        %v3262 = vmul.f32 %v3190, %v3238
        %v3263 = vmul.f32 %v3191, %v3239
        %v3264 = vadd.f32 %v3139, %v3240
        %v3265 = vadd.f32 %v3140, %v3241
        %v3266 = vadd.f32 %v3141, %v3242
        %v3267 = vadd.f32 %v3142, %v3243
        %v3268 = vadd.f32 %v3143, %v3244
        %v3269 = vadd.f32 %v3144, %v3245
        %v3270 = vadd.f32 %v3145, %v3246
        %v3271 = vadd.f32 %v3146, %v3247
        %v3272 = vadd.f32 %v3147, %v3248
        %v3273 = vadd.f32 %v3148, %v3249
        %v3274 = vadd.f32 %v3149, %v3250
        %v3275 = vadd.f32 %v3150, %v3251
        %v3276 = vadd.f32 %v3151, %v3252
        %v3277 = vadd.f32 %v3152, %v3253
        %v3278 = vadd.f32 %v3153, %v3254
        %v3279 = vadd.f32 %v3154, %v3255
        %v3280 = vadd.f32 %v3155, %v3256
        %v3281 = vadd.f32 %v3156, %v3257
        %v3282 = vadd.f32 %v3157, %v3258
        %v3283 = vadd.f32 %v3158, %v3259
        %v3284 = vadd.f32 %v3159, %v3260
        %v3285 = vadd.f32 %v3160, %v3261
        %v3286 = vadd.f32 %v3161, %v3262
        %v3287 = vadd.f32 %v3162, %v3263
        %3288 = vset.pattern.permute.xlu0 4
        %3289 = vperm.xlu0 %3288, %v538
        %v3290 = vpop.permute.xlu0 %3289
        %3292 = vset.pattern.permute.xlu0 4
        %3293 = vperm.xlu0 %3292, %v539
        %v3294 = vpop.permute.xlu0 %3293
        %3296 = vset.pattern.permute.xlu0 4
        %3297 = vperm.xlu0 %3296, %v540
        %v3298 = vpop.permute.xlu0 %3297
        %v3300 = vperm.slane %v529, 4
        %v3301 = vperm.slane %v530, 4
        %v3302 = vperm.slane %v531, 4
        %v3303 = vperm.slane %v532, 4
        %v3304 = vmul.f32 %v3290, %v3300
        %v3305 = vmul.f32 %v3290, %v3301
        %v3306 = vmul.f32 %v3290, %v3302
        %v3307 = vmul.f32 %v3290, %v3303
        %v3308 = vmul.f32 %v3294, %v3300
        %v3309 = vmul.f32 %v3294, %v3301
        %v3310 = vmul.f32 %v3294, %v3302
        %v3311 = vmul.f32 %v3294, %v3303
        %v3312 = vmul.f32 %v3298, %v3300
        %v3313 = vmul.f32 %v3298, %v3301
        %v3314 = vmul.f32 %v3298, %v3302
        %v3315 = vmul.f32 %v3298, %v3303
        %v3316 = vmul.f32 %v2759, %v3304
        %v3317 = vmul.f32 %v2760, %v3305
        %v3318 = vmul.f32 %v2761, %v3306
        %v3319 = vmul.f32 %v2762, %v3307
        %v3320 = vmul.f32 %v2763, %v3308
        %v3321 = vmul.f32 %v2764, %v3309
        %v3322 = vmul.f32 %v2765, %v3310
        %v3323 = vmul.f32 %v2766, %v3311
        %v3324 = vmul.f32 %v2767, %v3312
        %v3325 = vmul.f32 %v2768, %v3313
        %v3326 = vmul.f32 %v2769, %v3314
        %v3327 = vmul.f32 %v2770, %v3315
        %v3328 = vmul.f32 %v2771, %v3304
        %v3329 = vmul.f32 %v2772, %v3305
        %v3330 = vmul.f32 %v2773, %v3306
        %v3331 = vmul.f32 %v2774, %v3307
        %v3332 = vmul.f32 %v2775, %v3308
        %v3333 = vmul.f32 %v2776, %v3309
        %v3334 = vmul.f32 %v2777, %v3310
        %v3335 = vmul.f32 %v2778, %v3311
        %v3336 = vmul.f32 %v2779, %v3312
        %v3337 = vmul.f32 %v2780, %v3313
        %v3338 = vmul.f32 %v2781, %v3314
        %v3339 = vmul.f32 %v2782, %v3315
        %v3340 = vadd.f32 %v3264, %v3316
        %v3341 = vadd.f32 %v3265, %v3317
        %v3342 = vadd.f32 %v3266, %v3318
        %v3343 = vadd.f32 %v3267, %v3319
        %v3344 = vadd.f32 %v3268, %v3320
        %v3345 = vadd.f32 %v3269, %v3321
        %v3346 = vadd.f32 %v3270, %v3322
        %v3347 = vadd.f32 %v3271, %v3323
        %v3348 = vadd.f32 %v3272, %v3324
        %v3349 = vadd.f32 %v3273, %v3325
        %v3350 = vadd.f32 %v3274, %v3326
        %v3351 = vadd.f32 %v3275, %v3327
        %v3352 = vadd.f32 %v3276, %v3328
        %v3353 = vadd.f32 %v3277, %v3329
        %v3354 = vadd.f32 %v3278, %v3330
        %v3355 = vadd.f32 %v3279, %v3331
        %v3356 = vadd.f32 %v3280, %v3332
        %v3357 = vadd.f32 %v3281, %v3333
        %v3358 = vadd.f32 %v3282, %v3334
        %v3359 = vadd.f32 %v3283, %v3335
        %v3360 = vadd.f32 %v3284, %v3336
        %v3361 = vadd.f32 %v3285, %v3337
        %v3362 = vadd.f32 %v3286, %v3338
        %v3363 = vadd.f32 %v3287, %v3339
        %v3364 = vrot.slane %v2759, 1
        %v3365 = vrot.slane %v2760, 1
        %v3366 = vrot.slane %v2761, 1
        %v3367 = vrot.slane %v2762, 1
        %v3368 = vrot.slane %v2763, 1
        %v3369 = vrot.slane %v2764, 1
        %v3370 = vrot.slane %v2765, 1
        %v3371 = vrot.slane %v2766, 1
        %v3372 = vrot.slane %v2767, 1
        %v3373 = vrot.slane %v2768, 1
        %v3374 = vrot.slane %v2769, 1
        %v3375 = vrot.slane %v2770, 1
        %v3376 = vrot.slane %v2771, 1
        %v3377 = vrot.slane %v2772, 1
        %v3378 = vrot.slane %v2773, 1
        %v3379 = vrot.slane %v2774, 1
        %v3380 = vrot.slane %v2775, 1
        %v3381 = vrot.slane %v2776, 1
        %v3382 = vrot.slane %v2777, 1
        %v3383 = vrot.slane %v2778, 1
        %v3384 = vrot.slane %v2779, 1
        %v3385 = vrot.slane %v2780, 1
        %v3386 = vrot.slane %v2781, 1
        %v3387 = vrot.slane %v2782, 1
        %vm3388 = vcmp.lt.s32.totalorder %v2808, 7
        %v3389 = vsel %vm3388, %v3380, %v3384
        %v3390 = vsel %vm3388, %v3381, %v3385
        %v3391 = vsel %vm3388, %v3382, %v3386
        %v3392 = vsel %vm3388, %v3383, %v3387
        %v3393 = vsel %vm3388, %v3376, %v3380
        %v3394 = vsel %vm3388, %v3377, %v3381
        %v3395 = vsel %vm3388, %v3378, %v3382
        %v3396 = vsel %vm3388, %v3379, %v3383
        %v3397 = vsel %vm3388, %v3372, %v3376
        %v3398 = vsel %vm3388, %v3373, %v3377
        %v3399 = vsel %vm3388, %v3374, %v3378
        %v3400 = vsel %vm3388, %v3375, %v3379
        %v3401 = vsel %vm3388, %v3368, %v3372
        %v3402 = vsel %vm3388, %v3369, %v3373
        %v3403 = vsel %vm3388, %v3370, %v3374
        %v3404 = vsel %vm3388, %v3371, %v3375
        %v3405 = vsel %vm3388, %v3364, %v3368
        %v3406 = vsel %vm3388, %v3365, %v3369
        %v3407 = vsel %vm3388, %v3366, %v3370
        %v3408 = vsel %vm3388, %v3367, %v3371
        %v3409 = vsel %vm3388, %v3384, %v3364
        %v3410 = vsel %vm3388, %v3385, %v3365
        %v3411 = vsel %vm3388, %v3386, %v3366
        %v3412 = vsel %vm3388, %v3387, %v3367
        %3413 = vset.pattern.permute.xlu0 5
        %3414 = vperm.xlu0 %3413, %v538
        %v3415 = vpop.permute.xlu0 %3414
        %3417 = vset.pattern.permute.xlu0 5
        %3418 = vperm.xlu0 %3417, %v539
        %v3419 = vpop.permute.xlu0 %3418
        %3421 = vset.pattern.permute.xlu0 5
        %3422 = vperm.xlu0 %3421, %v540
        %v3423 = vpop.permute.xlu0 %3422
        %v3425 = vperm.slane %v529, 5
        %v3426 = vperm.slane %v530, 5
        %v3427 = vperm.slane %v531, 5
        %v3428 = vperm.slane %v532, 5
        %v3429 = vmul.f32 %v3415, %v3425
        %v3430 = vmul.f32 %v3415, %v3426
        %v3431 = vmul.f32 %v3415, %v3427
        %v3432 = vmul.f32 %v3415, %v3428
        %v3433 = vmul.f32 %v3419, %v3425
        %v3434 = vmul.f32 %v3419, %v3426
        %v3435 = vmul.f32 %v3419, %v3427
        %v3436 = vmul.f32 %v3419, %v3428
        %v3437 = vmul.f32 %v3423, %v3425
        %v3438 = vmul.f32 %v3423, %v3426
        %v3439 = vmul.f32 %v3423, %v3427
        %v3440 = vmul.f32 %v3423, %v3428
        %v3441 = vmul.f32 %v3405, %v3429
        %v3442 = vmul.f32 %v3406, %v3430
        %v3443 = vmul.f32 %v3407, %v3431
        %v3444 = vmul.f32 %v3408, %v3432
        %v3445 = vmul.f32 %v3401, %v3433
        %v3446 = vmul.f32 %v3402, %v3434
        %v3447 = vmul.f32 %v3403, %v3435
        %v3448 = vmul.f32 %v3404, %v3436
        %v3449 = vmul.f32 %v3397, %v3437
        %v3450 = vmul.f32 %v3398, %v3438
        %v3451 = vmul.f32 %v3399, %v3439
        %v3452 = vmul.f32 %v3400, %v3440
        %v3453 = vmul.f32 %v3393, %v3429
        %v3454 = vmul.f32 %v3394, %v3430
        %v3455 = vmul.f32 %v3395, %v3431
        %v3456 = vmul.f32 %v3396, %v3432
        %v3457 = vmul.f32 %v3389, %v3433
        %v3458 = vmul.f32 %v3390, %v3434
        %v3459 = vmul.f32 %v3391, %v3435
        %v3460 = vmul.f32 %v3392, %v3436
        %v3461 = vmul.f32 %v3409, %v3437
        %v3462 = vmul.f32 %v3410, %v3438
        %v3463 = vmul.f32 %v3411, %v3439
        %v3464 = vmul.f32 %v3412, %v3440
        %v3465 = vadd.f32 %v3340, %v3441
        %v3466 = vadd.f32 %v3341, %v3442
        %v3467 = vadd.f32 %v3342, %v3443
        %v3468 = vadd.f32 %v3343, %v3444
        %v3469 = vadd.f32 %v3344, %v3445
        %v3470 = vadd.f32 %v3345, %v3446
        %v3471 = vadd.f32 %v3346, %v3447
        %v3472 = vadd.f32 %v3347, %v3448
        %v3473 = vadd.f32 %v3348, %v3449
        %v3474 = vadd.f32 %v3349, %v3450
        %v3475 = vadd.f32 %v3350, %v3451
        %v3476 = vadd.f32 %v3351, %v3452
        %v3477 = vadd.f32 %v3352, %v3453
        %v3478 = vadd.f32 %v3353, %v3454
        %v3479 = vadd.f32 %v3354, %v3455
        %v3480 = vadd.f32 %v3355, %v3456
        %v3481 = vadd.f32 %v3356, %v3457
        %v3482 = vadd.f32 %v3357, %v3458
        %v3483 = vadd.f32 %v3358, %v3459
        %v3484 = vadd.f32 %v3359, %v3460
        %v3485 = vadd.f32 %v3360, %v3461
        %v3486 = vadd.f32 %v3361, %v3462
        %v3487 = vadd.f32 %v3362, %v3463
        %v3488 = vadd.f32 %v3363, %v3464
        %3489 = vset.pattern.permute.xlu0 6
        %3490 = vperm.xlu0 %3489, %v538
        %v3491 = vpop.permute.xlu0 %3490
        %3493 = vset.pattern.permute.xlu0 6
        %3494 = vperm.xlu0 %3493, %v539
        %v3495 = vpop.permute.xlu0 %3494
        %3497 = vset.pattern.permute.xlu0 6
        %3498 = vperm.xlu0 %3497, %v540
        %v3499 = vpop.permute.xlu0 %3498
        %v3501 = vperm.slane %v529, 6
        %v3502 = vperm.slane %v530, 6
        %v3503 = vperm.slane %v531, 6
        %v3504 = vperm.slane %v532, 6
        %v3505 = vmul.f32 %v3491, %v3501
        %v3506 = vmul.f32 %v3491, %v3502
        %v3507 = vmul.f32 %v3491, %v3503
        %v3508 = vmul.f32 %v3491, %v3504
        %v3509 = vmul.f32 %v3495, %v3501
        %v3510 = vmul.f32 %v3495, %v3502
        %v3511 = vmul.f32 %v3495, %v3503
        %v3512 = vmul.f32 %v3495, %v3504
        %v3513 = vmul.f32 %v3499, %v3501
        %v3514 = vmul.f32 %v3499, %v3502
        %v3515 = vmul.f32 %v3499, %v3503
        %v3516 = vmul.f32 %v3499, %v3504
        %v3517 = vmul.f32 %v2826, %v3505
        %v3518 = vmul.f32 %v2827, %v3506
        %v3519 = vmul.f32 %v2828, %v3507
        %v3520 = vmul.f32 %v2829, %v3508
        %v3521 = vmul.f32 %v2822, %v3509
        %v3522 = vmul.f32 %v2823, %v3510
        %v3523 = vmul.f32 %v2824, %v3511
        %v3524 = vmul.f32 %v2825, %v3512
        %v3525 = vmul.f32 %v2818, %v3513
        %v3526 = vmul.f32 %v2819, %v3514
        %v3527 = vmul.f32 %v2820, %v3515
        %v3528 = vmul.f32 %v2821, %v3516
        %v3529 = vmul.f32 %v2814, %v3505
        %v3530 = vmul.f32 %v2815, %v3506
        %v3531 = vmul.f32 %v2816, %v3507
        %v3532 = vmul.f32 %v2817, %v3508
        %v3533 = vmul.f32 %v2810, %v3509
        %v3534 = vmul.f32 %v2811, %v3510
        %v3535 = vmul.f32 %v2812, %v3511
        %v3536 = vmul.f32 %v2813, %v3512
        %v3537 = vmul.f32 %v2830, %v3513
        %v3538 = vmul.f32 %v2831, %v3514
        %v3539 = vmul.f32 %v2832, %v3515
        %v3540 = vmul.f32 %v2833, %v3516
        %v3541 = vadd.f32 %v3465, %v3517
        %v3542 = vadd.f32 %v3466, %v3518
        %v3543 = vadd.f32 %v3467, %v3519
        %v3544 = vadd.f32 %v3468, %v3520
        %v3545 = vadd.f32 %v3469, %v3521
        %v3546 = vadd.f32 %v3470, %v3522
        %v3547 = vadd.f32 %v3471, %v3523
        %v3548 = vadd.f32 %v3472, %v3524
        %v3549 = vadd.f32 %v3473, %v3525
        %v3550 = vadd.f32 %v3474, %v3526
        %v3551 = vadd.f32 %v3475, %v3527
        %v3552 = vadd.f32 %v3476, %v3528
        %v3553 = vadd.f32 %v3477, %v3529
        %v3554 = vadd.f32 %v3478, %v3530
        %v3555 = vadd.f32 %v3479, %v3531
        %v3556 = vadd.f32 %v3480, %v3532
        %v3557 = vadd.f32 %v3481, %v3533
        %v3558 = vadd.f32 %v3482, %v3534
        %v3559 = vadd.f32 %v3483, %v3535
        %v3560 = vadd.f32 %v3484, %v3536
        %v3561 = vadd.f32 %v3485, %v3537
        %v3562 = vadd.f32 %v3486, %v3538
        %v3563 = vadd.f32 %v3487, %v3539
        %v3564 = vadd.f32 %v3488, %v3540
        %3565 = vset.pattern.permute.xlu0 7
        %3566 = vperm.xlu0 %3565, %v538
        %v3567 = vpop.permute.xlu0 %3566
        %3569 = vset.pattern.permute.xlu0 7
        %3570 = vperm.xlu0 %3569, %v539
        %v3571 = vpop.permute.xlu0 %3570
        %3573 = vset.pattern.permute.xlu0 7
        %3574 = vperm.xlu0 %3573, %v540
        %v3575 = vpop.permute.xlu0 %3574
        %v3577 = vperm.slane %v529, 7
        %v3578 = vperm.slane %v530, 7
        %v3579 = vperm.slane %v531, 7
        %v3580 = vperm.slane %v532, 7
        %v3581 = vmul.f32 %v3567, %v3577
        %v3582 = vmul.f32 %v3567, %v3578
        %v3583 = vmul.f32 %v3567, %v3579
        %v3584 = vmul.f32 %v3567, %v3580
        %v3585 = vmul.f32 %v3571, %v3577
        %v3586 = vmul.f32 %v3571, %v3578
        %v3587 = vmul.f32 %v3571, %v3579
        %v3588 = vmul.f32 %v3571, %v3580
        %v3589 = vmul.f32 %v3575, %v3577
        %v3590 = vmul.f32 %v3575, %v3578
        %v3591 = vmul.f32 %v3575, %v3579
        %v3592 = vmul.f32 %v3575, %v3580
        %v3593 = vmul.f32 %v2954, %v3581
        %v3594 = vmul.f32 %v2955, %v3582
        %v3595 = vmul.f32 %v2956, %v3583
        %v3596 = vmul.f32 %v2957, %v3584
        %v3597 = vmul.f32 %v2950, %v3585
        %v3598 = vmul.f32 %v2951, %v3586
        %v3599 = vmul.f32 %v2952, %v3587
        %v3600 = vmul.f32 %v2953, %v3588
        %v3601 = vmul.f32 %v2946, %v3589
        %v3602 = vmul.f32 %v2947, %v3590
        %v3603 = vmul.f32 %v2948, %v3591
        %v3604 = vmul.f32 %v2949, %v3592
        %v3605 = vmul.f32 %v2942, %v3581
        %v3606 = vmul.f32 %v2943, %v3582
        %v3607 = vmul.f32 %v2944, %v3583
        %v3608 = vmul.f32 %v2945, %v3584
        %v3609 = vmul.f32 %v2938, %v3585
        %v3610 = vmul.f32 %v2939, %v3586
        %v3611 = vmul.f32 %v2940, %v3587
        %v3612 = vmul.f32 %v2941, %v3588
        %v3613 = vmul.f32 %v2958, %v3589
        %v3614 = vmul.f32 %v2959, %v3590
        %v3615 = vmul.f32 %v2960, %v3591
        %v3616 = vmul.f32 %v2961, %v3592
        %v3617 = vadd.f32 %v3541, %v3593
        %v3618 = vadd.f32 %v3542, %v3594
        %v3619 = vadd.f32 %v3543, %v3595
        %v3620 = vadd.f32 %v3544, %v3596
        %v3621 = vadd.f32 %v3545, %v3597
        %v3622 = vadd.f32 %v3546, %v3598
        %v3623 = vadd.f32 %v3547, %v3599
        %v3624 = vadd.f32 %v3548, %v3600
        %v3625 = vadd.f32 %v3549, %v3601
        %v3626 = vadd.f32 %v3550, %v3602
        %v3627 = vadd.f32 %v3551, %v3603
        %v3628 = vadd.f32 %v3552, %v3604
        %v3629 = vadd.f32 %v3553, %v3605
        %v3630 = vadd.f32 %v3554, %v3606
        %v3631 = vadd.f32 %v3555, %v3607
        %v3632 = vadd.f32 %v3556, %v3608
        %v3633 = vadd.f32 %v3557, %v3609
        %v3634 = vadd.f32 %v3558, %v3610
        %v3635 = vadd.f32 %v3559, %v3611
        %v3636 = vadd.f32 %v3560, %v3612
        %v3637 = vadd.f32 %v3561, %v3613
        %v3638 = vadd.f32 %v3562, %v3614
        %v3639 = vadd.f32 %v3563, %v3615
        %v3640 = vadd.f32 %v3564, %v3616
        %3641 = vset.pattern.permute.xlu0 8
        %3642 = vperm.xlu0 %3641, %v538
        %v3643 = vpop.permute.xlu0 %3642
        %3645 = vset.pattern.permute.xlu0 8
        %3646 = vperm.xlu0 %3645, %v539
        %v3647 = vpop.permute.xlu0 %3646
        %3649 = vset.pattern.permute.xlu0 8
        %3650 = vperm.xlu0 %3649, %v540
        %v3651 = vpop.permute.xlu0 %3650
        %v3653 = vperm.slane %v533, 0
        %v3654 = vperm.slane %v534, 0
        %v3655 = vperm.slane %v535, 0
        %v3656 = vperm.slane %v536, 0
        %v3657 = vmul.f32 %v3643, %v3653
        %v3658 = vmul.f32 %v3643, %v3654
        %v3659 = vmul.f32 %v3643, %v3655
        %v3660 = vmul.f32 %v3643, %v3656
        %v3661 = vmul.f32 %v3647, %v3653
        %v3662 = vmul.f32 %v3647, %v3654
        %v3663 = vmul.f32 %v3647, %v3655
        %v3664 = vmul.f32 %v3647, %v3656
        %v3665 = vmul.f32 %v3651, %v3653
        %v3666 = vmul.f32 %v3651, %v3654
        %v3667 = vmul.f32 %v3651, %v3655
        %v3668 = vmul.f32 %v3651, %v3656
        %v3669 = vmul.f32 %v3079, %v3657
        %v3670 = vmul.f32 %v3080, %v3658
        %v3671 = vmul.f32 %v3081, %v3659
        %v3672 = vmul.f32 %v3082, %v3660
        %v3673 = vmul.f32 %v3075, %v3661
        %v3674 = vmul.f32 %v3076, %v3662
        %v3675 = vmul.f32 %v3077, %v3663
        %v3676 = vmul.f32 %v3078, %v3664
        %v3677 = vmul.f32 %v3071, %v3665
        %v3678 = vmul.f32 %v3072, %v3666
        %v3679 = vmul.f32 %v3073, %v3667
        %v3680 = vmul.f32 %v3074, %v3668
        %v3681 = vmul.f32 %v3067, %v3657
        %v3682 = vmul.f32 %v3068, %v3658
        %v3683 = vmul.f32 %v3069, %v3659
        %v3684 = vmul.f32 %v3070, %v3660
        %v3685 = vmul.f32 %v3063, %v3661
        %v3686 = vmul.f32 %v3064, %v3662
        %v3687 = vmul.f32 %v3065, %v3663
        %v3688 = vmul.f32 %v3066, %v3664
        %v3689 = vmul.f32 %v3083, %v3665
        %v3690 = vmul.f32 %v3084, %v3666
        %v3691 = vmul.f32 %v3085, %v3667
        %v3692 = vmul.f32 %v3086, %v3668
        %v3693 = vadd.f32 %v3617, %v3669
        %v3694 = vadd.f32 %v3618, %v3670
        %v3695 = vadd.f32 %v3619, %v3671
        %v3696 = vadd.f32 %v3620, %v3672
        %v3697 = vadd.f32 %v3621, %v3673
        %v3698 = vadd.f32 %v3622, %v3674
        %v3699 = vadd.f32 %v3623, %v3675
        %v3700 = vadd.f32 %v3624, %v3676
        %v3701 = vadd.f32 %v3625, %v3677
        %v3702 = vadd.f32 %v3626, %v3678
        %v3703 = vadd.f32 %v3627, %v3679
        %v3704 = vadd.f32 %v3628, %v3680
        %v3705 = vadd.f32 %v3629, %v3681
        %v3706 = vadd.f32 %v3630, %v3682
        %v3707 = vadd.f32 %v3631, %v3683
        %v3708 = vadd.f32 %v3632, %v3684
        %v3709 = vadd.f32 %v3633, %v3685
        %v3710 = vadd.f32 %v3634, %v3686
        %v3711 = vadd.f32 %v3635, %v3687
        %v3712 = vadd.f32 %v3636, %v3688
        %v3713 = vadd.f32 %v3637, %v3689
        %v3714 = vadd.f32 %v3638, %v3690
        %v3715 = vadd.f32 %v3639, %v3691
        %v3716 = vadd.f32 %v3640, %v3692
        %v3717 = vperm.slane %v533, 2
        %v3718 = vperm.slane %v534, 2
        %v3719 = vperm.slane %v535, 2
        %v3720 = vperm.slane %v536, 2
        %v3721 = vadd.f32 %v3693, %v3717
        %v3722 = vadd.f32 %v3694, %v3718
        %v3723 = vadd.f32 %v3695, %v3719
        %v3724 = vadd.f32 %v3696, %v3720
        %v3725 = vadd.f32 %v3697, %v3717
        %v3726 = vadd.f32 %v3698, %v3718
        %v3727 = vadd.f32 %v3699, %v3719
        %v3728 = vadd.f32 %v3700, %v3720
        %v3729 = vadd.f32 %v3701, %v3717
        %v3730 = vadd.f32 %v3702, %v3718
        %v3731 = vadd.f32 %v3703, %v3719
        %v3732 = vadd.f32 %v3704, %v3720
        %v3733 = vadd.f32 %v3705, %v3717
        %v3734 = vadd.f32 %v3706, %v3718
        %v3735 = vadd.f32 %v3707, %v3719
        %v3736 = vadd.f32 %v3708, %v3720
        %v3737 = vadd.f32 %v3709, %v3717
        %v3738 = vadd.f32 %v3710, %v3718
        %v3739 = vadd.f32 %v3711, %v3719
        %v3740 = vadd.f32 %v3712, %v3720
        %v3741 = vadd.f32 %v3713, %v3717
        %v3742 = vadd.f32 %v3714, %v3718
        %v3743 = vadd.f32 %v3715, %v3719
        %v3744 = vadd.f32 %v3716, %v3720
        %v3745 = vadd.f32 %v3721, 3.0
        %v3746 = vadd.f32 %v3722, 3.0
        %v3747 = vadd.f32 %v3723, 3.0
        %v3748 = vadd.f32 %v3724, 3.0
        %v3749 = vadd.f32 %v3725, 3.0
        %v3750 = vadd.f32 %v3726, 3.0
        %v3751 = vadd.f32 %v3727, 3.0
        %v3752 = vadd.f32 %v3728, 3.0
        %v3753 = vadd.f32 %v3729, 3.0
        %v3754 = vadd.f32 %v3730, 3.0
        %v3755 = vadd.f32 %v3731, 3.0
        %v3756 = vadd.f32 %v3732, 3.0
        %v3757 = vadd.f32 %v3733, 3.0
        %v3758 = vadd.f32 %v3734, 3.0
        %v3759 = vadd.f32 %v3735, 3.0
        %v3760 = vadd.f32 %v3736, 3.0
        %v3761 = vadd.f32 %v3737, 3.0
        %v3762 = vadd.f32 %v3738, 3.0
        %v3763 = vadd.f32 %v3739, 3.0
        %v3764 = vadd.f32 %v3740, 3.0
        %v3765 = vadd.f32 %v3741, 3.0
        %v3766 = vadd.f32 %v3742, 3.0
        %v3767 = vadd.f32 %v3743, 3.0
        %v3768 = vadd.f32 %v3744, 3.0
        %v3769 = vmax.f32 %v3745, 0.0
        %v3770 = vmax.f32 %v3746, 0.0
        %v3771 = vmax.f32 %v3747, 0.0
        %v3772 = vmax.f32 %v3748, 0.0
        %v3773 = vmax.f32 %v3749, 0.0
        %v3774 = vmax.f32 %v3750, 0.0
        %v3775 = vmax.f32 %v3751, 0.0
        %v3776 = vmax.f32 %v3752, 0.0
        %v3777 = vmax.f32 %v3753, 0.0
        %v3778 = vmax.f32 %v3754, 0.0
        %v3779 = vmax.f32 %v3755, 0.0
        %v3780 = vmax.f32 %v3756, 0.0
        %v3781 = vmax.f32 %v3757, 0.0
        %v3782 = vmax.f32 %v3758, 0.0
        %v3783 = vmax.f32 %v3759, 0.0
        %v3784 = vmax.f32 %v3760, 0.0
        %v3785 = vmax.f32 %v3761, 0.0
        %v3786 = vmax.f32 %v3762, 0.0
        %v3787 = vmax.f32 %v3763, 0.0
        %v3788 = vmax.f32 %v3764, 0.0
        %v3789 = vmax.f32 %v3765, 0.0
        %v3790 = vmax.f32 %v3766, 0.0
        %v3791 = vmax.f32 %v3767, 0.0
        %v3792 = vmax.f32 %v3768, 0.0
        %v3793 = vmin.f32 %v3769, 6.0
        %v3794 = vmin.f32 %v3770, 6.0
        %v3795 = vmin.f32 %v3771, 6.0
        %v3796 = vmin.f32 %v3772, 6.0
        %v3797 = vmin.f32 %v3773, 6.0
        %v3798 = vmin.f32 %v3774, 6.0
        %v3799 = vmin.f32 %v3775, 6.0
        %v3800 = vmin.f32 %v3776, 6.0
        %v3801 = vmin.f32 %v3777, 6.0
        %v3802 = vmin.f32 %v3778, 6.0
        %v3803 = vmin.f32 %v3779, 6.0
        %v3804 = vmin.f32 %v3780, 6.0
        %v3805 = vmin.f32 %v3781, 6.0
        %v3806 = vmin.f32 %v3782, 6.0
        %v3807 = vmin.f32 %v3783, 6.0
        %v3808 = vmin.f32 %v3784, 6.0
        %v3809 = vmin.f32 %v3785, 6.0
        %v3810 = vmin.f32 %v3786, 6.0
        %v3811 = vmin.f32 %v3787, 6.0
        %v3812 = vmin.f32 %v3788, 6.0
        %v3813 = vmin.f32 %v3789, 6.0
        %v3814 = vmin.f32 %v3790, 6.0
        %v3815 = vmin.f32 %v3791, 6.0
        %v3816 = vmin.f32 %v3792, 6.0
        %v3817 = vmul.f32 %v3793, 0.16666667
        %v3818 = vmul.f32 %v3794, 0.16666667
        %v3819 = vmul.f32 %v3795, 0.16666667
        %v3820 = vmul.f32 %v3796, 0.16666667
        %v3821 = vmul.f32 %v3797, 0.16666667
        %v3822 = vmul.f32 %v3798, 0.16666667
        %v3823 = vmul.f32 %v3799, 0.16666667
        %v3824 = vmul.f32 %v3800, 0.16666667
        %v3825 = vmul.f32 %v3801, 0.16666667
        %v3826 = vmul.f32 %v3802, 0.16666667
        %v3827 = vmul.f32 %v3803, 0.16666667
        %v3828 = vmul.f32 %v3804, 0.16666667
        %v3829 = vmul.f32 %v3805, 0.16666667
        %v3830 = vmul.f32 %v3806, 0.16666667
        %v3831 = vmul.f32 %v3807, 0.16666667
        %v3832 = vmul.f32 %v3808, 0.16666667
        %v3833 = vmul.f32 %v3809, 0.16666667
        %v3834 = vmul.f32 %v3810, 0.16666667
        %v3835 = vmul.f32 %v3811, 0.16666667
        %v3836 = vmul.f32 %v3812, 0.16666667
        %v3837 = vmul.f32 %v3813, 0.16666667
        %v3838 = vmul.f32 %v3814, 0.16666667
        %v3839 = vmul.f32 %v3815, 0.16666667
        %v3840 = vmul.f32 %v3816, 0.16666667
        %v3841 = vmul.f32 %v3721, %v3817
        %v3842 = vmul.f32 %v3722, %v3818
        %v3843 = vmul.f32 %v3723, %v3819
        %v3844 = vmul.f32 %v3724, %v3820
        %v3845 = vmul.f32 %v3725, %v3821
        %v3846 = vmul.f32 %v3726, %v3822
        %v3847 = vmul.f32 %v3727, %v3823
        %v3848 = vmul.f32 %v3728, %v3824
        %v3849 = vmul.f32 %v3729, %v3825
        %v3850 = vmul.f32 %v3730, %v3826
        %v3851 = vmul.f32 %v3731, %v3827
        %v3852 = vmul.f32 %v3732, %v3828
        %v3853 = vmul.f32 %v3733, %v3829
        %v3854 = vmul.f32 %v3734, %v3830
        %v3855 = vmul.f32 %v3735, %v3831
        %v3856 = vmul.f32 %v3736, %v3832
        %v3857 = vmul.f32 %v3737, %v3833
        %v3858 = vmul.f32 %v3738, %v3834
        %v3859 = vmul.f32 %v3739, %v3835
        %v3860 = vmul.f32 %v3740, %v3836
        %v3861 = vmul.f32 %v3741, %v3837
        %v3862 = vmul.f32 %v3742, %v3838
        %v3863 = vmul.f32 %v3743, %v3839
        %v3864 = vmul.f32 %v3744, %v3840
        %3865 = vset.pattern.permute.xlu0 9
        %3866 = vperm.xlu0 %3865, %v538
        %v3867 = vpop.permute.xlu0 %3866
        %3869 = vset.pattern.permute.xlu0 9
        %3870 = vperm.xlu0 %3869, %v539
        %v3871 = vpop.permute.xlu0 %3870
        %3873 = vset.pattern.permute.xlu0 9
        %3874 = vperm.xlu0 %3873, %v540
        %v3875 = vpop.permute.xlu0 %3874
        %v3877 = vmul.f32 %v3841, %v3867
        %v3878 = vmul.f32 %v3842, %v3867
        %v3879 = vmul.f32 %v3843, %v3867
        %v3880 = vmul.f32 %v3844, %v3867
        %v3881 = vmul.f32 %v3845, %v3871
        %v3882 = vmul.f32 %v3846, %v3871
        %v3883 = vmul.f32 %v3847, %v3871
        %v3884 = vmul.f32 %v3848, %v3871
        %v3885 = vmul.f32 %v3849, %v3875
        %v3886 = vmul.f32 %v3850, %v3875
        %v3887 = vmul.f32 %v3851, %v3875
        %v3888 = vmul.f32 %v3852, %v3875
        %v3889 = vmul.f32 %v3853, %v3867
        %v3890 = vmul.f32 %v3854, %v3867
        %v3891 = vmul.f32 %v3855, %v3867
        %v3892 = vmul.f32 %v3856, %v3867
        %v3893 = vmul.f32 %v3857, %v3871
        %v3894 = vmul.f32 %v3858, %v3871
        %v3895 = vmul.f32 %v3859, %v3871
        %v3896 = vmul.f32 %v3860, %v3871
        %v3897 = vmul.f32 %v3861, %v3875
        %v3898 = vmul.f32 %v3862, %v3875
        %v3899 = vmul.f32 %v3863, %v3875
        %v3900 = vmul.f32 %v3864, %v3875
        %v3901 = vadd.f32 %v3877, %v3881
        %v3902 = vadd.f32 %v3901, %v3885
        %v3903 = vrot.slane %v3902, 4
        %v3904 = vadd.f32 %v3902, %v3903
        %v3905 = vrot.slane %v3904, 2
        %v3906 = vadd.f32 %v3904, %v3905
        %v3907 = vrot.slane %v3906, 1
        %v3908 = vadd.f32 %v3906, %v3907
        %v3909 = vadd.f32 %v3878, %v3882
        %v3910 = vadd.f32 %v3909, %v3886
        %v3911 = vrot.slane %v3910, 4
        %v3912 = vadd.f32 %v3910, %v3911
        %v3913 = vrot.slane %v3912, 2
        %v3914 = vadd.f32 %v3912, %v3913
        %v3915 = vrot.slane %v3914, 1
        %v3916 = vadd.f32 %v3914, %v3915
        %v3917 = vadd.f32 %v3879, %v3883
        %v3918 = vadd.f32 %v3917, %v3887
        %v3919 = vrot.slane %v3918, 4
        %v3920 = vadd.f32 %v3918, %v3919
        %v3921 = vrot.slane %v3920, 2
        %v3922 = vadd.f32 %v3920, %v3921
        %v3923 = vrot.slane %v3922, 1
        %v3924 = vadd.f32 %v3922, %v3923
        %v3925 = vadd.f32 %v3880, %v3884
        %v3926 = vadd.f32 %v3925, %v3888
        %v3927 = vrot.slane %v3926, 4
        %v3928 = vadd.f32 %v3926, %v3927
        %v3929 = vrot.slane %v3928, 2
        %v3930 = vadd.f32 %v3928, %v3929
        %v3931 = vrot.slane %v3930, 1
        %v3932 = vadd.f32 %v3930, %v3931
        %v3933 = vadd.f32 %v3889, %v3893
        %v3934 = vadd.f32 %v3933, %v3897
        %v3935 = vrot.slane %v3934, 4
        %v3936 = vadd.f32 %v3934, %v3935
        %v3937 = vrot.slane %v3936, 2
        %v3938 = vadd.f32 %v3936, %v3937
        %v3939 = vrot.slane %v3938, 1
        %v3940 = vadd.f32 %v3938, %v3939
        %v3941 = vadd.f32 %v3890, %v3894
        %v3942 = vadd.f32 %v3941, %v3898
        %v3943 = vrot.slane %v3942, 4
        %v3944 = vadd.f32 %v3942, %v3943
        %v3945 = vrot.slane %v3944, 2
        %v3946 = vadd.f32 %v3944, %v3945
        %v3947 = vrot.slane %v3946, 1
        %v3948 = vadd.f32 %v3946, %v3947
        %v3949 = vadd.f32 %v3891, %v3895
        %v3950 = vadd.f32 %v3949, %v3899
        %v3951 = vrot.slane %v3950, 4
        %v3952 = vadd.f32 %v3950, %v3951
        %v3953 = vrot.slane %v3952, 2
        %v3954 = vadd.f32 %v3952, %v3953
        %v3955 = vrot.slane %v3954, 1
        %v3956 = vadd.f32 %v3954, %v3955
        %v3957 = vadd.f32 %v3892, %v3896
        %v3958 = vadd.f32 %v3957, %v3900
        %v3959 = vrot.slane %v3958, 4
        %v3960 = vadd.f32 %v3958, %v3959
        %v3961 = vrot.slane %v3960, 2
        %v3962 = vadd.f32 %v3960, %v3961
        %v3963 = vrot.slane %v3962, 1
        %v3964 = vadd.f32 %v3962, %v3963
        %v3965 = vmul.f32 %v3908, 0.0625
        %v3966 = vmul.f32 %v3916, 0.0625
        %v3967 = vmul.f32 %v3924, 0.0625
        %v3968 = vmul.f32 %v3932, 0.0625
        %v3969 = vmul.f32 %v3940, 0.0625
        %v3970 = vmul.f32 %v3948, 0.0625
        %v3971 = vmul.f32 %v3956, 0.0625
        %v3972 = vmul.f32 %v3964, 0.0625
        %v3973 = vpack.c.bf16 %v3965, %v3965
        %v3974 = vpack.c.bf16 %v3966, %v3966
        %v3975 = vpack.c.bf16 %v3967, %v3967
        %v3976 = vpack.c.bf16 %v3968, %v3968
        %v3977 = vpack.c.bf16 %v3969, %v3969
        %v3978 = vpack.c.bf16 %v3970, %v3970
        %v3979 = vpack.c.bf16 %v3971, %v3971
        %v3980 = vpack.c.bf16 %v3972, %v3972
        %v3981 = vperm.slane %v537, 4
        %v3990 = vunpack.c.l.b16 %v3973
        %v3991 = vunpack.c.l.b16 %v3974
        %v3992 = vunpack.c.l.b16 %v3975
        %v3993 = vunpack.c.l.b16 %v3976
        %v3994 = vunpack.c.l.b16 %v3977
        %v3995 = vunpack.c.l.b16 %v3978
        %v3996 = vunpack.c.l.b16 %v3979
        %v3997 = vunpack.c.l.b16 %v3980
        %vm3998 = vcmask 1041409
        %v3999 = vsel %vm3998, %v3994, %v3990
        %v4000 = vsel %vm3998, %v3995, %v3991
        %v4001 = vsel %vm3998, %v3996, %v3992
        %v4002 = vsel %vm3998, %v3997, %v3993
        %v4003 = vpack.c.b16 %v3999, %v3999
        %v4004 = vpack.c.b16 %v4000, %v4000
        %v4005 = vpack.c.b16 %v4001, %v4001
        %v4006 = vpack.c.b16 %v4002, %v4002
        %v4075 = vunpack.c.h.b16 %v465
        %v4076 = vunpack.c.h.b16 %v466
        %v4077 = vunpack.c.h.b16 %v467
        %v4078 = vunpack.c.h.b16 %v468
        %v4079 = vunpack.c.h.b16 %v469
        %v4080 = vunpack.c.h.b16 %v470
        %v4081 = vunpack.c.h.b16 %v471
        %v4082 = vunpack.c.h.b16 %v472
        %v4083 = vunpack.c.h.b16 %v473
        %v4084 = vunpack.c.h.b16 %v474
        %v4085 = vunpack.c.h.b16 %v475
        %v4086 = vunpack.c.h.b16 %v476
        %v4087 = vunpack.c.h.b16 %v477
        %v4088 = vunpack.c.h.b16 %v478
        %v4089 = vunpack.c.h.b16 %v479
        %v4090 = vunpack.c.h.b16 %v480
        %v4091 = vunpack.c.h.b16 %v481
        %v4092 = vunpack.c.h.b16 %v482
        %v4093 = vunpack.c.h.b16 %v483
        %v4094 = vunpack.c.h.b16 %v484
        %v4095 = vunpack.c.h.b16 %v485
        %v4096 = vunpack.c.h.b16 %v486
        %v4097 = vunpack.c.h.b16 %v487
        %v4098 = vunpack.c.h.b16 %v488
        %v4099 = vunpack.c.h.b16 %v489
        %v4100 = vunpack.c.h.b16 %v490
        %v4101 = vunpack.c.h.b16 %v491
        %v4102 = vunpack.c.h.b16 %v492
        %v4103 = vunpack.c.h.b16 %v493
        %v4104 = vunpack.c.h.b16 %v494
        %v4105 = vunpack.c.h.b16 %v495
        %v4106 = vunpack.c.h.b16 %v496
        %v4107 = vunpack.c.h.b16 %v497
        %v4108 = vunpack.c.h.b16 %v498
        %v4109 = vunpack.c.h.b16 %v499
        %v4110 = vunpack.c.h.b16 %v500
        %v4111 = vunpack.c.h.b16 %v501
        %v4112 = vunpack.c.h.b16 %v502
        %v4113 = vunpack.c.h.b16 %v503
        %v4114 = vunpack.c.h.b16 %v504
        %v4115 = vunpack.c.h.b16 %v505
        %v4116 = vunpack.c.h.b16 %v506
        %v4117 = vunpack.c.h.b16 %v507
        %v4118 = vunpack.c.h.b16 %v508
        %v4119 = vunpack.c.h.b16 %v509
        %v4120 = vunpack.c.h.b16 %v510
        %v4121 = vunpack.c.h.b16 %v511
        %v4122 = vunpack.c.h.b16 %v512
        %v4123 = vunpack.c.h.b16 %v513
        %v4124 = vunpack.c.h.b16 %v514
        %v4125 = vunpack.c.h.b16 %v515
        %v4126 = vunpack.c.h.b16 %v516
        %v4127 = vunpack.c.h.b16 %v517
        %v4128 = vunpack.c.h.b16 %v518
        %v4129 = vunpack.c.h.b16 %v519
        %v4130 = vunpack.c.h.b16 %v520
        %v4131 = vunpack.c.h.b16 %v521
        %v4132 = vunpack.c.h.b16 %v522
        %v4133 = vunpack.c.h.b16 %v523
        %v4134 = vunpack.c.h.b16 %v524
        %v4135 = vunpack.c.h.b16 %v525
        %v4136 = vunpack.c.h.b16 %v526
        %v4137 = vunpack.c.h.b16 %v527
        %v4138 = vunpack.c.h.b16 %v528
        %v4139 = vpack.c.b16 %v4076, %v4075
        %v4140 = vpack.c.b16 %v4078, %v4077
        %v4141 = vpack.c.b16 %v4080, %v4079
        %v4142 = vpack.c.b16 %v4082, %v4081
        %v4143 = vpack.c.b16 %v4084, %v4083
        %v4144 = vpack.c.b16 %v4086, %v4085
        %v4145 = vpack.c.b16 %v4088, %v4087
        %v4146 = vpack.c.b16 %v4090, %v4089
        %v4147 = vpack.c.b16 %v4092, %v4091
        %v4148 = vpack.c.b16 %v4094, %v4093
        %v4149 = vpack.c.b16 %v4096, %v4095
        %v4150 = vpack.c.b16 %v4098, %v4097
        %v4151 = vpack.c.b16 %v4100, %v4099
        %v4152 = vpack.c.b16 %v4102, %v4101
        %v4153 = vpack.c.b16 %v4104, %v4103
        %v4154 = vpack.c.b16 %v4106, %v4105
        %v4155 = vpack.c.b16 %v4108, %v4107
        %v4156 = vpack.c.b16 %v4110, %v4109
        %v4157 = vpack.c.b16 %v4112, %v4111
        %v4158 = vpack.c.b16 %v4114, %v4113
        %v4159 = vpack.c.b16 %v4116, %v4115
        %v4160 = vpack.c.b16 %v4118, %v4117
        %v4161 = vpack.c.b16 %v4120, %v4119
        %v4162 = vpack.c.b16 %v4122, %v4121
        %v4163 = vpack.c.b16 %v4124, %v4123
        %v4164 = vpack.c.b16 %v4126, %v4125
        %v4165 = vpack.c.b16 %v4128, %v4127
        %v4166 = vpack.c.b16 %v4130, %v4129
        %v4167 = vpack.c.b16 %v4132, %v4131
        %v4168 = vpack.c.b16 %v4134, %v4133
        %v4169 = vpack.c.b16 %v4136, %v4135
        %v4170 = vpack.c.b16 %v4138, %v4137
        %4203 = vmatpush.bf16.msra.mxu0 %v4146
        %4204 = vmatpush.bf16.msra.mxu0 %v4145
        %4205 = vmatpush.bf16.msra.mxu0 %v4144
        %4206 = vmatpush.bf16.msra.mxu0 %v4143
        %4207 = vmatpush.bf16.msra.mxu0 %v4142
        %4208 = vmatpush.bf16.msra.mxu0 %v4141
        %4209 = vmatpush.bf16.msra.mxu0 %v4140
        %4210 = vmatpush.bf16.msra.mxu0 %v4139
        %4211 = vmatmul.bf16.gmra.mxu0 %v4003
        %v4212 = vpop.f32.mrf.mxu0
        %v4213 = vadd.f32 %v3981, %v4212
        %v4214 = vpop.f32.mrf.mxu0
        %4215 = vdwg.mxu0
        %4216 = vmatpush.bf16.msra.mxu0 %v4154
        %4217 = vmatpush.bf16.msra.mxu0 %v4153
        %4218 = vmatpush.bf16.msra.mxu0 %v4152
        %4219 = vmatpush.bf16.msra.mxu0 %v4151
        %4220 = vmatpush.bf16.msra.mxu0 %v4150
        %4221 = vmatpush.bf16.msra.mxu0 %v4149
        %4222 = vmatpush.bf16.msra.mxu0 %v4148
        %4223 = vmatpush.bf16.msra.mxu0 %v4147
        %4224 = vmatmul.bf16.gmra.mxu0 %v4004
        %v4225 = vpop.f32.mrf.mxu0
        %v4226 = vadd.f32 %v4213, %v4225
        %v4227 = vpop.f32.mrf.mxu0
        %4228 = vdwg.mxu0
        %4229 = vmatpush.bf16.msra.mxu0 %v4162
        %4230 = vmatpush.bf16.msra.mxu0 %v4161
        %4231 = vmatpush.bf16.msra.mxu0 %v4160
        %4232 = vmatpush.bf16.msra.mxu0 %v4159
        %4233 = vmatpush.bf16.msra.mxu0 %v4158
        %4234 = vmatpush.bf16.msra.mxu0 %v4157
        %4235 = vmatpush.bf16.msra.mxu0 %v4156
        %4236 = vmatpush.bf16.msra.mxu0 %v4155
        %4237 = vmatmul.bf16.gmra.mxu0 %v4005
        %v4238 = vpop.f32.mrf.mxu0
        %v4239 = vadd.f32 %v4226, %v4238
        %v4240 = vpop.f32.mrf.mxu0
        %4241 = vdwg.mxu0
        %4242 = vmatpush.bf16.msra.mxu0 %v4170
        %4243 = vmatpush.bf16.msra.mxu0 %v4169
        %4244 = vmatpush.bf16.msra.mxu0 %v4168
        %4245 = vmatpush.bf16.msra.mxu0 %v4167
        %4246 = vmatpush.bf16.msra.mxu0 %v4166
        %4247 = vmatpush.bf16.msra.mxu0 %v4165
        %4248 = vmatpush.bf16.msra.mxu0 %v4164
        %4249 = vmatpush.bf16.msra.mxu0 %v4163
        %4250 = vmatmul.bf16.gmra.mxu0 %v4006
        %v4251 = vpop.f32.mrf.mxu0
        %v4252 = vadd.f32 %v4239, %v4251
        %v4253 = vpop.f32.mrf.mxu0
        %4254 = vdwg.mxu0
        %v4255 = vmax.f32 %v4252, 0.0
        %v4256 = vpack.c.bf16 %v4255, %v4255
        %v4257 = vperm.slane %v533, 3
        %v4258 = vperm.slane %v534, 3
        %v4259 = vperm.slane %v535, 3
        %v4260 = vperm.slane %v536, 3
        %v4293 = vunpack.c.l.b16 %v433
        %v4294 = vunpack.c.h.b16 %v433
        %v4295 = vunpack.c.l.b16 %v434
        %v4296 = vunpack.c.h.b16 %v434
        %v4297 = vunpack.c.l.b16 %v435
        %v4298 = vunpack.c.h.b16 %v435
        %v4299 = vunpack.c.l.b16 %v436
        %v4300 = vunpack.c.h.b16 %v436
        %v4301 = vunpack.c.l.b16 %v437
        %v4302 = vunpack.c.h.b16 %v437
        %v4303 = vunpack.c.l.b16 %v438
        %v4304 = vunpack.c.h.b16 %v438
        %v4305 = vunpack.c.l.b16 %v439
        %v4306 = vunpack.c.h.b16 %v439
        %v4307 = vunpack.c.l.b16 %v440
        %v4308 = vunpack.c.h.b16 %v440
        %v4309 = vunpack.c.l.b16 %v441
        %v4310 = vunpack.c.h.b16 %v441
        %v4311 = vunpack.c.l.b16 %v442
        %v4312 = vunpack.c.h.b16 %v442
        %v4313 = vunpack.c.l.b16 %v443
        %v4314 = vunpack.c.h.b16 %v443
        %v4315 = vunpack.c.l.b16 %v444
        %v4316 = vunpack.c.h.b16 %v444
        %v4317 = vunpack.c.l.b16 %v445
        %v4318 = vunpack.c.h.b16 %v445
        %v4319 = vunpack.c.l.b16 %v446
        %v4320 = vunpack.c.h.b16 %v446
        %v4321 = vunpack.c.l.b16 %v447
        %v4322 = vunpack.c.h.b16 %v447
        %v4323 = vunpack.c.l.b16 %v448
        %v4324 = vunpack.c.h.b16 %v448
        %v4325 = vunpack.c.l.b16 %v449
        %v4326 = vunpack.c.h.b16 %v449
        %v4327 = vunpack.c.l.b16 %v450
        %v4328 = vunpack.c.h.b16 %v450
        %v4329 = vunpack.c.l.b16 %v451
        %v4330 = vunpack.c.h.b16 %v451
        %v4331 = vunpack.c.l.b16 %v452
        %v4332 = vunpack.c.h.b16 %v452
        %v4333 = vunpack.c.l.b16 %v453
        %v4334 = vunpack.c.h.b16 %v453
        %v4335 = vunpack.c.l.b16 %v454
        %v4336 = vunpack.c.h.b16 %v454
        %v4337 = vunpack.c.l.b16 %v455
        %v4338 = vunpack.c.h.b16 %v455
        %v4339 = vunpack.c.l.b16 %v456
        %v4340 = vunpack.c.h.b16 %v456
        %v4341 = vunpack.c.l.b16 %v457
        %v4342 = vunpack.c.h.b16 %v457
        %v4343 = vunpack.c.l.b16 %v458
        %v4344 = vunpack.c.h.b16 %v458
        %v4345 = vunpack.c.l.b16 %v459
        %v4346 = vunpack.c.h.b16 %v459
        %v4347 = vunpack.c.l.b16 %v460
        %v4348 = vunpack.c.h.b16 %v460
        %v4349 = vunpack.c.l.b16 %v461
        %v4350 = vunpack.c.h.b16 %v461
        %v4351 = vunpack.c.l.b16 %v462
        %v4352 = vunpack.c.h.b16 %v462
        %v4353 = vunpack.c.l.b16 %v463
        %v4354 = vunpack.c.h.b16 %v463
        %v4355 = vunpack.c.l.b16 %v464
        %v4356 = vunpack.c.h.b16 %v464
        %v4357 = vpack.c.b16 %v4297, %v4293
        %v4358 = vpack.c.b16 %v4298, %v4294
        %v4359 = vpack.c.b16 %v4299, %v4295
        %v4360 = vpack.c.b16 %v4300, %v4296
        %v4361 = vpack.c.b16 %v4305, %v4301
        %v4362 = vpack.c.b16 %v4306, %v4302
        %v4363 = vpack.c.b16 %v4307, %v4303
        %v4364 = vpack.c.b16 %v4308, %v4304
        %v4365 = vpack.c.b16 %v4313, %v4309
        %v4366 = vpack.c.b16 %v4314, %v4310
        %v4367 = vpack.c.b16 %v4315, %v4311
        %v4368 = vpack.c.b16 %v4316, %v4312
        %v4369 = vpack.c.b16 %v4321, %v4317
        %v4370 = vpack.c.b16 %v4322, %v4318
        %v4371 = vpack.c.b16 %v4323, %v4319
        %v4372 = vpack.c.b16 %v4324, %v4320
        %v4373 = vpack.c.b16 %v4329, %v4325
        %v4374 = vpack.c.b16 %v4330, %v4326
        %v4375 = vpack.c.b16 %v4331, %v4327
        %v4376 = vpack.c.b16 %v4332, %v4328
        %v4377 = vpack.c.b16 %v4337, %v4333
        %v4378 = vpack.c.b16 %v4338, %v4334
        %v4379 = vpack.c.b16 %v4339, %v4335
        %v4380 = vpack.c.b16 %v4340, %v4336
        %v4381 = vpack.c.b16 %v4345, %v4341
        %v4382 = vpack.c.b16 %v4346, %v4342
        %v4383 = vpack.c.b16 %v4347, %v4343
        %v4384 = vpack.c.b16 %v4348, %v4344
        %v4385 = vpack.c.b16 %v4353, %v4349
        %v4386 = vpack.c.b16 %v4354, %v4350
        %v4387 = vpack.c.b16 %v4355, %v4351
        %v4388 = vpack.c.b16 %v4356, %v4352
        %4421 = vmatpush.bf16.msra.mxu0 %v4385
        %4422 = vmatpush.bf16.msra.mxu0 %v4381
        %4423 = vmatpush.bf16.msra.mxu0 %v4377
        %4424 = vmatpush.bf16.msra.mxu0 %v4373
        %4425 = vmatpush.bf16.msra.mxu0 %v4369
        %4426 = vmatpush.bf16.msra.mxu0 %v4365
        %4427 = vmatpush.bf16.msra.mxu0 %v4361
        %4428 = vmatpush.bf16.msra.mxu0 %v4357
        %4429 = vmatmul.bf16.gmra.mxu0 %v4256
        %v4430 = vpop.f32.mrf.mxu0
        %v4431 = vadd.f32 %v4257, %v4430
        %v4432 = vpop.f32.mrf.mxu0
        %4433 = vdwg.mxu0
        %4434 = vmatpush.bf16.msra.mxu0 %v4386
        %4435 = vmatpush.bf16.msra.mxu0 %v4382
        %4436 = vmatpush.bf16.msra.mxu0 %v4378
        %4437 = vmatpush.bf16.msra.mxu0 %v4374
        %4438 = vmatpush.bf16.msra.mxu0 %v4370
        %4439 = vmatpush.bf16.msra.mxu0 %v4366
        %4440 = vmatpush.bf16.msra.mxu0 %v4362
        %4441 = vmatpush.bf16.msra.mxu0 %v4358
        %4442 = vmatmul.bf16.gmra.mxu0 %v4256
        %v4443 = vpop.f32.mrf.mxu0
        %v4444 = vadd.f32 %v4258, %v4443
        %v4445 = vpop.f32.mrf.mxu0
        %4446 = vdwg.mxu0
        %4447 = vmatpush.bf16.msra.mxu0 %v4387
        %4448 = vmatpush.bf16.msra.mxu0 %v4383
        %4449 = vmatpush.bf16.msra.mxu0 %v4379
        %4450 = vmatpush.bf16.msra.mxu0 %v4375
        %4451 = vmatpush.bf16.msra.mxu0 %v4371
        %4452 = vmatpush.bf16.msra.mxu0 %v4367
        %4453 = vmatpush.bf16.msra.mxu0 %v4363
        %4454 = vmatpush.bf16.msra.mxu0 %v4359
        %4455 = vmatmul.bf16.gmra.mxu0 %v4256
        %v4456 = vpop.f32.mrf.mxu0
        %v4457 = vadd.f32 %v4259, %v4456
        %v4458 = vpop.f32.mrf.mxu0
        %4459 = vdwg.mxu0
        %4460 = vmatpush.bf16.msra.mxu0 %v4388
        %4461 = vmatpush.bf16.msra.mxu0 %v4384
        %4462 = vmatpush.bf16.msra.mxu0 %v4380
        %4463 = vmatpush.bf16.msra.mxu0 %v4376
        %4464 = vmatpush.bf16.msra.mxu0 %v4372
        %4465 = vmatpush.bf16.msra.mxu0 %v4368
        %4466 = vmatpush.bf16.msra.mxu0 %v4364
        %4467 = vmatpush.bf16.msra.mxu0 %v4360
        %4468 = vmatmul.bf16.gmra.mxu0 %v4256
        %v4469 = vpop.f32.mrf.mxu0
        %v4470 = vadd.f32 %v4260, %v4469
        %v4471 = vpop.f32.mrf.mxu0
        %4472 = vdwg.mxu0
        %v4473 = vadd.f32 %v4431, 3.0
        %v4474 = vadd.f32 %v4444, 3.0
        %v4475 = vadd.f32 %v4457, 3.0
        %v4476 = vadd.f32 %v4470, 3.0
        %v4477 = vmax.f32 %v4473, 0.0
        %v4478 = vmax.f32 %v4474, 0.0
        %v4479 = vmax.f32 %v4475, 0.0
        %v4480 = vmax.f32 %v4476, 0.0
        %v4481 = vmin.f32 %v4477, 6.0
        %v4482 = vmin.f32 %v4478, 6.0
        %v4483 = vmin.f32 %v4479, 6.0
        %v4484 = vmin.f32 %v4480, 6.0
        %v4485 = vmul.f32 %v4481, 0.16666667
        %v4486 = vmul.f32 %v4482, 0.16666667
        %v4487 = vmul.f32 %v4483, 0.16666667
        %v4488 = vmul.f32 %v4484, 0.16666667
        %v4493 = vrot.slane %v4486, 7
        %v4494 = vrot.slane %v4487, 6
        %v4495 = vrot.slane %v4488, 5
        %vm4496 = vcmask 1040384
        %v4497 = vsel %vm4496, %v4485, %v4493
        %vm4498 = vcmask 1042434
        %v4499 = vsel %vm4498, %v4494, %v4495
        %vm4500 = vcmask 1041408
        %v4501 = vsel %vm4500, %v4497, %v4499
        %v4502 = vsel %vm3998, %v4485, %v4493
        %vm4503 = vcmask 1043459
        %v4504 = vsel %vm4503, %v4494, %v4495
        %vm4505 = vcmask 1042433
        %v4506 = vsel %vm4505, %v4502, %v4504
        %v4507 = vrot.slane %v4506, 1
        %v4508 = vperm.slane %v4501, 0
        %v4509 = vperm.slane %v4501, 1
        %v4510 = vperm.slane %v4501, 2
        %v4511 = vperm.slane %v4501, 3
        %v4512 = vperm.slane %v4507, 0
        %v4513 = vperm.slane %v4507, 1
        %v4514 = vperm.slane %v4507, 2
        %v4515 = vperm.slane %v4507, 3
        %v4524 = vmul.f32 %v3841, %v4508
        %v4525 = vmul.f32 %v3842, %v4509
        %v4526 = vmul.f32 %v3843, %v4510
        %v4527 = vmul.f32 %v3844, %v4511
        %v4528 = vmul.f32 %v3845, %v4508
        %v4529 = vmul.f32 %v3846, %v4509
        %v4530 = vmul.f32 %v3847, %v4510
        %v4531 = vmul.f32 %v3848, %v4511
        %v4532 = vmul.f32 %v3849, %v4508
        %v4533 = vmul.f32 %v3850, %v4509
        %v4534 = vmul.f32 %v3851, %v4510
        %v4535 = vmul.f32 %v3852, %v4511
        %v4536 = vmul.f32 %v3853, %v4512
        %v4537 = vmul.f32 %v3854, %v4513
        %v4538 = vmul.f32 %v3855, %v4514
        %v4539 = vmul.f32 %v3856, %v4515
        %v4540 = vmul.f32 %v3857, %v4512
        %v4541 = vmul.f32 %v3858, %v4513
        %v4542 = vmul.f32 %v3859, %v4514
        %v4543 = vmul.f32 %v3860, %v4515
        %v4544 = vmul.f32 %v3861, %v4512
        %v4545 = vmul.f32 %v3862, %v4513
        %v4546 = vmul.f32 %v3863, %v4514
        %v4547 = vmul.f32 %v3864, %v4515
        %v4548 = vpack.c.bf16 %v4528, %v4524
        %v4549 = vpack.c.bf16 %v4529, %v4525
        %v4550 = vpack.c.bf16 %v4530, %v4526
        %v4551 = vpack.c.bf16 %v4531, %v4527
        %v4552 = vpack.c.bf16 %v4536, %v4532
        %v4553 = vpack.c.bf16 %v4537, %v4533
        %v4554 = vpack.c.bf16 %v4538, %v4534
        %v4555 = vpack.c.bf16 %v4539, %v4535
        %v4556 = vpack.c.bf16 %v4544, %v4540
        %v4557 = vpack.c.bf16 %v4545, %v4541
        %v4558 = vpack.c.bf16 %v4546, %v4542
        %v4559 = vpack.c.bf16 %v4547, %v4543
        %v4560 = vperm.slane %v537, 3
        %v4561 = vunpack.c.l.b16 %v465
        %v4562 = vunpack.c.l.b16 %v466
        %v4563 = vunpack.c.l.b16 %v467
        %v4564 = vunpack.c.l.b16 %v468
        %v4565 = vunpack.c.l.b16 %v469
        %v4566 = vunpack.c.l.b16 %v470
        %v4567 = vunpack.c.l.b16 %v471
        %v4568 = vunpack.c.l.b16 %v472
        %v4569 = vunpack.c.l.b16 %v473
        %v4570 = vunpack.c.l.b16 %v474
        %v4571 = vunpack.c.l.b16 %v475
        %v4572 = vunpack.c.l.b16 %v476
        %v4573 = vunpack.c.l.b16 %v477
        %v4574 = vunpack.c.l.b16 %v478
        %v4575 = vunpack.c.l.b16 %v479
        %v4576 = vunpack.c.l.b16 %v480
        %v4577 = vunpack.c.l.b16 %v481
        %v4578 = vunpack.c.l.b16 %v482
        %v4579 = vunpack.c.l.b16 %v483
        %v4580 = vunpack.c.l.b16 %v484
        %v4581 = vunpack.c.l.b16 %v485
        %v4582 = vunpack.c.l.b16 %v486
        %v4583 = vunpack.c.l.b16 %v487
        %v4584 = vunpack.c.l.b16 %v488
        %v4585 = vunpack.c.l.b16 %v489
        %v4586 = vunpack.c.l.b16 %v490
        %v4587 = vunpack.c.l.b16 %v491
        %v4588 = vunpack.c.l.b16 %v492
        %v4589 = vunpack.c.l.b16 %v493
        %v4590 = vunpack.c.l.b16 %v494
        %v4591 = vunpack.c.l.b16 %v495
        %v4592 = vunpack.c.l.b16 %v496
        %v4593 = vunpack.c.l.b16 %v497
        %v4594 = vunpack.c.l.b16 %v498
        %v4595 = vunpack.c.l.b16 %v499
        %v4596 = vunpack.c.l.b16 %v500
        %v4597 = vunpack.c.l.b16 %v501
        %v4598 = vunpack.c.l.b16 %v502
        %v4599 = vunpack.c.l.b16 %v503
        %v4600 = vunpack.c.l.b16 %v504
        %v4601 = vunpack.c.l.b16 %v505
        %v4602 = vunpack.c.l.b16 %v506
        %v4603 = vunpack.c.l.b16 %v507
        %v4604 = vunpack.c.l.b16 %v508
        %v4605 = vunpack.c.l.b16 %v509
        %v4606 = vunpack.c.l.b16 %v510
        %v4607 = vunpack.c.l.b16 %v511
        %v4608 = vunpack.c.l.b16 %v512
        %v4609 = vunpack.c.l.b16 %v513
        %v4610 = vunpack.c.l.b16 %v514
        %v4611 = vunpack.c.l.b16 %v515
        %v4612 = vunpack.c.l.b16 %v516
        %v4613 = vunpack.c.l.b16 %v517
        %v4614 = vunpack.c.l.b16 %v518
        %v4615 = vunpack.c.l.b16 %v519
        %v4616 = vunpack.c.l.b16 %v520
        %v4617 = vunpack.c.l.b16 %v521
        %v4618 = vunpack.c.l.b16 %v522
        %v4619 = vunpack.c.l.b16 %v523
        %v4620 = vunpack.c.l.b16 %v524
        %v4621 = vunpack.c.l.b16 %v525
        %v4622 = vunpack.c.l.b16 %v526
        %v4623 = vunpack.c.l.b16 %v527
        %v4624 = vunpack.c.l.b16 %v528
        %v4625 = vpack.c.b16 %v4562, %v4561
        %v4626 = vpack.c.b16 %v4564, %v4563
        %v4627 = vpack.c.b16 %v4566, %v4565
        %v4628 = vpack.c.b16 %v4568, %v4567
        %v4629 = vpack.c.b16 %v4570, %v4569
        %v4630 = vpack.c.b16 %v4572, %v4571
        %v4631 = vpack.c.b16 %v4574, %v4573
        %v4632 = vpack.c.b16 %v4576, %v4575
        %v4633 = vpack.c.b16 %v4578, %v4577
        %v4634 = vpack.c.b16 %v4580, %v4579
        %v4635 = vpack.c.b16 %v4582, %v4581
        %v4636 = vpack.c.b16 %v4584, %v4583
        %v4637 = vpack.c.b16 %v4586, %v4585
        %v4638 = vpack.c.b16 %v4588, %v4587
        %v4639 = vpack.c.b16 %v4590, %v4589
        %v4640 = vpack.c.b16 %v4592, %v4591
        %v4641 = vpack.c.b16 %v4594, %v4593
        %v4642 = vpack.c.b16 %v4596, %v4595
        %v4643 = vpack.c.b16 %v4598, %v4597
        %v4644 = vpack.c.b16 %v4600, %v4599
        %v4645 = vpack.c.b16 %v4602, %v4601
        %v4646 = vpack.c.b16 %v4604, %v4603
        %v4647 = vpack.c.b16 %v4606, %v4605
        %v4648 = vpack.c.b16 %v4608, %v4607
        %v4649 = vpack.c.b16 %v4610, %v4609
        %v4650 = vpack.c.b16 %v4612, %v4611
        %v4651 = vpack.c.b16 %v4614, %v4613
        %v4652 = vpack.c.b16 %v4616, %v4615
        %v4653 = vpack.c.b16 %v4618, %v4617
        %v4654 = vpack.c.b16 %v4620, %v4619
        %v4655 = vpack.c.b16 %v4622, %v4621
        %v4656 = vpack.c.b16 %v4624, %v4623
        %4689 = vmatpush.bf16.msra.mxu0 %v4632
        %4690 = vmatpush.bf16.msra.mxu0 %v4631
        %4691 = vmatpush.bf16.msra.mxu0 %v4630
        %4692 = vmatpush.bf16.msra.mxu0 %v4629
        %4693 = vmatpush.bf16.msra.mxu0 %v4628
        %4694 = vmatpush.bf16.msra.mxu0 %v4627
        %4695 = vmatpush.bf16.msra.mxu0 %v4626
        %4696 = vmatpush.bf16.msra.mxu0 %v4625
        %4697 = vmatmul.bf16.gmra.mxu0 %v4548
        %v4698 = vpop.f32.mrf.mxu0
        %v4699 = vadd.f32 %v4560, %v4698
        %v4700 = vpop.f32.mrf.mxu0
        %v4701 = vadd.f32 %v4560, %v4700
        %4702 = vmatmul.bf16.gmra.mxu0 %v4552
        %v4703 = vpop.f32.mrf.mxu0
        %v4704 = vadd.f32 %v4560, %v4703
        %v4705 = vpop.f32.mrf.mxu0
        %v4706 = vadd.f32 %v4560, %v4705
        %4707 = vmatmul.bf16.gmra.mxu0 %v4556
        %v4708 = vpop.f32.mrf.mxu0
        %v4709 = vadd.f32 %v4560, %v4708
        %v4710 = vpop.f32.mrf.mxu0
        %v4711 = vadd.f32 %v4560, %v4710
        %4712 = vdwg.mxu0
        %4713 = vmatpush.bf16.msra.mxu0 %v4640
        %4714 = vmatpush.bf16.msra.mxu0 %v4639
        %4715 = vmatpush.bf16.msra.mxu0 %v4638
        %4716 = vmatpush.bf16.msra.mxu0 %v4637
        %4717 = vmatpush.bf16.msra.mxu0 %v4636
        %4718 = vmatpush.bf16.msra.mxu0 %v4635
        %4719 = vmatpush.bf16.msra.mxu0 %v4634
        %4720 = vmatpush.bf16.msra.mxu0 %v4633
        %4721 = vmatmul.bf16.gmra.mxu0 %v4549
        %v4722 = vpop.f32.mrf.mxu0
        %v4723 = vadd.f32 %v4699, %v4722
        %v4724 = vpop.f32.mrf.mxu0
        %v4725 = vadd.f32 %v4701, %v4724
        %4726 = vmatmul.bf16.gmra.mxu0 %v4553
        %v4727 = vpop.f32.mrf.mxu0
        %v4728 = vadd.f32 %v4704, %v4727
        %v4729 = vpop.f32.mrf.mxu0
        %v4730 = vadd.f32 %v4706, %v4729
        %4731 = vmatmul.bf16.gmra.mxu0 %v4557
        %v4732 = vpop.f32.mrf.mxu0
        %v4733 = vadd.f32 %v4709, %v4732
        %v4734 = vpop.f32.mrf.mxu0
        %v4735 = vadd.f32 %v4711, %v4734
        %4736 = vdwg.mxu0
        %4737 = vmatpush.bf16.msra.mxu0 %v4648
        %4738 = vmatpush.bf16.msra.mxu0 %v4647
        %4739 = vmatpush.bf16.msra.mxu0 %v4646
        %4740 = vmatpush.bf16.msra.mxu0 %v4645
        %4741 = vmatpush.bf16.msra.mxu0 %v4644
        %4742 = vmatpush.bf16.msra.mxu0 %v4643
        %4743 = vmatpush.bf16.msra.mxu0 %v4642
        %4744 = vmatpush.bf16.msra.mxu0 %v4641
        %4745 = vmatmul.bf16.gmra.mxu0 %v4550
        %v4746 = vpop.f32.mrf.mxu0
        %v4747 = vadd.f32 %v4723, %v4746
        %v4748 = vpop.f32.mrf.mxu0
        %v4749 = vadd.f32 %v4725, %v4748
        %4750 = vmatmul.bf16.gmra.mxu0 %v4554
        %v4751 = vpop.f32.mrf.mxu0
        %v4752 = vadd.f32 %v4728, %v4751
        %v4753 = vpop.f32.mrf.mxu0
        %v4754 = vadd.f32 %v4730, %v4753
        %4755 = vmatmul.bf16.gmra.mxu0 %v4558
        %v4756 = vpop.f32.mrf.mxu0
        %v4757 = vadd.f32 %v4733, %v4756
        %v4758 = vpop.f32.mrf.mxu0
        %v4759 = vadd.f32 %v4735, %v4758
        %4760 = vdwg.mxu0
        %4761 = vmatpush.bf16.msra.mxu0 %v4656
        %4762 = vmatpush.bf16.msra.mxu0 %v4655
        %4763 = vmatpush.bf16.msra.mxu0 %v4654
        %4764 = vmatpush.bf16.msra.mxu0 %v4653
        %4765 = vmatpush.bf16.msra.mxu0 %v4652
        %4766 = vmatpush.bf16.msra.mxu0 %v4651
        %4767 = vmatpush.bf16.msra.mxu0 %v4650
        %4768 = vmatpush.bf16.msra.mxu0 %v4649
        %4769 = vmatmul.bf16.gmra.mxu0 %v4551
        %v4770 = vpop.f32.mrf.mxu0
        %v4771 = vadd.f32 %v4747, %v4770
        %v4772 = vpop.f32.mrf.mxu0
        %v4773 = vadd.f32 %v4749, %v4772
        %4774 = vmatmul.bf16.gmra.mxu0 %v4555
        %v4775 = vpop.f32.mrf.mxu0
        %v4776 = vadd.f32 %v4752, %v4775
        %v4777 = vpop.f32.mrf.mxu0
        %v4778 = vadd.f32 %v4754, %v4777
        %4779 = vmatmul.bf16.gmra.mxu0 %v4559
        %v4780 = vpop.f32.mrf.mxu0
        %v4781 = vadd.f32 %v4757, %v4780
        %v4782 = vpop.f32.mrf.mxu0
        %v4783 = vadd.f32 %v4759, %v4782
        %4784 = vdwg.mxu0
        %v4785 = vmul.f32 %v4771, %v3867
        %v4786 = vmul.f32 %v4773, %v3871
        %v4787 = vmul.f32 %v4776, %v3875
        %v4788 = vmul.f32 %v4778, %v3867
        %v4789 = vmul.f32 %v4781, %v3871
        %v4790 = vmul.f32 %v4783, %v3875
        %v4791 = vadd.f32 %v2394, %v4785
        %v4792 = vadd.f32 %v2395, %v4786
        %v4793 = vadd.f32 %v2396, %v4787
        %v4794 = vadd.f32 %v2397, %v4788
        %v4795 = vadd.f32 %v2398, %v4789
        %v4796 = vadd.f32 %v2399, %v4790
        %4797 = vst [vmem:[%s365] sm:$0xff] %v4791
        %4798 = vst [vmem:[%s365 + $0x8] sm:$0xff] %v4792
        %4799 = vst [vmem:[%s365 + $0x10] sm:$0xff] %v4793
        %4800 = vst [vmem:[%s365 + $0x18] sm:$0xff] %v4794
        %4801 = vst [vmem:[%s365 + $0x20] sm:$0xff] %v4795
        %4802 = vst [vmem:[%s365 + $0x28] sm:$0xff] %v4796
        %s4803 = sand.u32 %s186, 1
        %s4804 = scalar_lea.sflag [#allocation5], %s4803
        %s4805 = sand.u32 %s186, 1
        %s4806 = smul.addr %s4805, 48
        %s4807 = scalar_lea.vmem [#allocation12], %s4806
        // Predicated region
        $region69: #{tpu_custom_call.1} parent=47 // pred_check
          %p4808 = pneg %p196
        $region70: #{tpu_custom_call.1} parent=47 // pred_check_branch
          %4810 = sbr.rel (%p4808) target = $region72
        $region71: #{tpu_custom_call.1} parent=47 // pred_region
          %s4811 = smul.u32 2, %s26
          %4813 = vsyncadd %s4804, 0
          %s4814 = smul.addr %s4811, 3
          %s4815 = smul.addr %s4814, 8
          %s4816 = scalar_lea.hbm %s7, %s4815
          %s4817 = sshll.u32 %s4807, 4
          %s4818 = int_to_ptr.vmem [resolvable:$true] %s4817
          %s4819 = sshll.u32 %s4816, 4
          %s4820 = int_to_ptr.hbm [resolvable:$true] %s4819
          %4825 = dma.vmem_to_hbm [thread:$0]  %s4818, 768, %s4820, %s4804, 128, 128, 8
        $region72: #{tpu_custom_call.1} parent=47 // pred_fallthru
          _
      $region48: #{tpu_custom_call.1} parent=5 // pred_fallthru
        _
      %p4826 = scmp.le.s32.totalorder 2, %s21
      // Predicated region
      $region73: #{tpu_custom_call.1} parent=5 // pred_check
        %p4827 = pneg %p4826
      $region74: #{tpu_custom_call.1} parent=5 // pred_check_branch
        %4829 = sbr.rel (%p4827) target = $region76
      $region75: #{tpu_custom_call.1} parent=5 // pred_region
        %s4830 = ssub.s32 %s21, 2
        // Predicated region
        $region77: #{tpu_custom_call.1} parent=75 // pred_check
          %p4831 = pneg %p202
        $region78: #{tpu_custom_call.1} parent=75 // pred_check_branch
          %4833 = sbr.rel (%p4831) target = $region80
        $region79: #{tpu_custom_call.1} parent=75 // pred_region
          %s4834 = sand.u32 %s187, 1
          %s4835 = scalar_lea.sflag [#allocation5], %s4834
          %s4836 = sand.u32 %s187, 1
          %s4837 = smul.addr %s4836, 48
          %s4838 = scalar_lea.vmem [#allocation12], %s4837
          %4840 = dma.done %s4835, 768
        $region80: #{tpu_custom_call.1} parent=75 // pred_fallthru
          _
      $region76: #{tpu_custom_call.1} parent=5 // pred_fallthru
        _
    $region6: #{tpu_custom_call.1} parent=1 // loop_footer
      %s25 = sadd.s32 1, %s21
    $region7: #{tpu_custom_call.1} parent=1 // loop_footer_branch
      %20 = sbr.rel target = $region3
    $region8: #{tpu_custom_call.1} parent=1 // loop_exit
      _
    %4841 = vsyncpa [#allocation4], 1
    %s4842 = scalar_lea.sflag [#allocation4], 1
    %4843 = vsyncpa %s4842, 1
    %4844 = vsyncpa [#allocation7], 1
    %4845 = vsyncpa [#allocation10], 1
    %4846 = vsyncpa [#allocation5], 1
    %s4847 = scalar_lea.sflag [#allocation5], 1
    %4848 = vsyncpa %s4847, 1

</llo_original>
